<compile_context>
chip_gen: v6e
topology: v6e:2x2x1
jax: 0.10.0
libtpu: 0.0.40
codegen_flags: <defaults>
</compile_context>

<pallas_src>
import functools
import math

import jax
import jax.numpy as jnp
from jax.experimental import pallas as pl
from jax.experimental.pallas import tpu as pltpu

# ----------------------------- model config (small, lane-dense) ------------------
VOCAB = 64
MAX_POS = 64
HIDDEN = 128          # full 128-lane width
NUM_HEADS = 2
HEAD_DIM = HIDDEN // NUM_HEADS
INTERMEDIATE = 256
NUM_LAYERS = 2
LN_EPS = 1e-5


# ----------------------------- helpers --------------------------------------------
def _gelu_tanh(x):
    # tanh-approx GELU (HF "gelu" is erf-based; tanh approximation used for
    # robust Mosaic lowering — numerically very close).
    c = math.sqrt(2.0 / math.pi)
    return 0.5 * x * (1.0 + jnp.tanh(c * (x + 0.044715 * x * x * x)))


def _layernorm(x, g, b):
    mu = jnp.mean(x, axis=-1, keepdims=True)
    d = x - mu
    var = jnp.mean(d * d, axis=-1, keepdims=True)
    return d * jax.lax.rsqrt(var + LN_EPS) * g + b


# ----------------------------- fused Pallas kernel --------------------------------
def fused_encoder_kernel(x_ref, bias_ref, embg_ref, embb_ref,
                         wqkv_ref, bqkv_ref, wo_ref, bo_ref,
                         ln1g_ref, ln1b_ref, wi_ref, bi_ref,
                         wo2_ref, bo2_ref, ln2g_ref, ln2b_ref,
                         poolw_ref, poolb_ref,
                         hidden_ref, pooled_ref):
    """One grid step = a block of BB batch elements. Everything stays in VMEM."""
    BB, S, H = x_ref.shape
    dh, nh = HEAD_DIM, NUM_HEADS
    bf16 = jnp.bfloat16

    # embeddings for the whole batch block, folded to [BB*S, H] for all matmuls
    x = x_ref[...].reshape(BB * S, H)
    x = _layernorm(x, embg_ref[...], embb_ref[...])          # embedding LN (no residual)

    # additive mask bias, broadcast ONCE (hoisted out of the unrolled layer loop)
    bias = jnp.broadcast_to(bias_ref[...], (BB, S, S))        # [BB, S, S]
    bias_g = jnp.concatenate([bias] * nh, axis=0)              # [nh*BB, S, S], head-major

    def split_heads(blk):
        # [BB*S, H] -> [nh*BB, S, dh] head-major groups (leading-dim ops only)
        parts = [blk[:, h * dh:(h + 1) * dh].reshape(BB, S, dh) for h in range(nh)]
        return jnp.concatenate(parts, axis=0).astype(bf16)

    for l in range(NUM_LAYERS):                                # static unroll (2 layers)
        # ---- fused QKV projection: one bf16 [BB*S,H] @ [H,3H] MXU pass ----
        #      (1/sqrt(dh) already folded into the Q columns of wqkv/bqkv)
        qkv = jnp.dot(x.astype(bf16), wqkv_ref[l],
                      preferred_element_type=jnp.float32) + bqkv_ref[l]
        q = split_heads(qkv[:, 0 * H:1 * H])
        k = split_heads(qkv[:, 1 * H:2 * H])
        v = split_heads(qkv[:, 2 * H:3 * H])

        # ---- attention batched over (head x batch) groups: one scores matmul,
        #      one context matmul, no per-head Python matmul loop ----
        s = jnp.einsum('gqd,gkd->gqk', q, k,
                       preferred_element_type=jnp.float32)      # [G, S, S]
        s = s + bias_g
        s = s - jnp.max(s, axis=-1, keepdims=True)
        p = jnp.exp(s)
        p = p * pl.reciprocal(jnp.sum(p, axis=-1, keepdims=True), approx=True)
        ctx = jnp.einsum('gqk,gkd->gqd', p.astype(bf16), v,
                         preferred_element_type=jnp.float32)    # [G, S, dh]

        # ---- output projection: accumulate per-head partial matmuls
        #      (mathematically identical to concat(heads) @ Wo, no lane concat) ----
        wo_l = wo_ref[l]
        attn_out = None
        for h in range(nh):
            ctx_h = ctx[h * BB:(h + 1) * BB].reshape(BB * S, dh).astype(bf16)
            part = jnp.dot(ctx_h, wo_l[h * dh:(h + 1) * dh, :],
                           preferred_element_type=jnp.float32)
            attn_out = part if attn_out is None else attn_out + part
        attn_out = attn_out + bo_ref[l]
        x = _layernorm(x + attn_out, ln1g_ref[l], ln1b_ref[l])

        # ---- FFN (bf16 MXU, f32 accumulate) + residual + LN ----
        inter = jnp.dot(x.astype(bf16), wi_ref[l],
                        preferred_element_type=jnp.float32) + bi_ref[l]
        inter = _gelu_tanh(inter)
        ffn = jnp.dot(inter.astype(bf16), wo2_ref[l],
                      preferred_element_type=jnp.float32) + bo2_ref[l]
        x = _layernorm(x + ffn, ln2g_ref[l], ln2b_ref[l])

    x3 = x.reshape(BB, S, H)
    hidden_ref[...] = x3                                        # lane-dense [BB,S,128] store

    # ---- pooler epilogue: tanh(dense(<s> token)) ----
    cls = x3[:, 0:1, :].reshape(BB, H)                          # [BB, H]
    pooled = jnp.tanh(jnp.dot(cls.astype(bf16), poolw_ref[...],
                              preferred_element_type=jnp.float32) + poolb_ref[...])
    pooled_ref[...] = pooled.reshape(BB, 1, H)


def _pick_batch_block(batch):
    """Fold the whole batch into one grid step on single-TC chips (v5e/v6e);
    split across two 'parallel' grid steps on dual-TC v7x."""
    kind = ""
    try:
        kind = jax.devices()[0].device_kind.lower()
    except Exception:
        pass
    dual_tc = ("v7" in kind) or ("tpu7" in kind)
    if dual_tc and batch % 2 == 0:
        return batch // 2
    return batch


def fused_encoder(x_emb, mask_bias, p, batch_block):
    """x_emb: [B,S,H] f32, mask_bias: [B,1,S] f32 -> (last_hidden [B,S,H], pooled [B,1,H])."""
    B, S, H = x_emb.shape
    BB = batch_block
    blk3 = lambda i: (i, 0, 0)
    cst2 = lambda i: (0, 0)
    cst3 = lambda i: (0, 0, 0)

    # NOTE: the constant-index weight specs would ideally be single-buffered
    # (pipeline_mode=pl.Buffered(1)) once weights are streamed per layer at
    # real size; irrelevant at this toy size.
    in_specs = [
        pl.BlockSpec((BB, S, H), blk3),               # x_emb
        pl.BlockSpec((BB, 1, S), blk3),               # mask bias
        pl.BlockSpec(p["emb_ln_g"].shape, cst2),
        pl.BlockSpec(p["emb_ln_b"].shape, cst2),
        pl.BlockSpec(p["wqkv"].shape, cst3),
        pl.BlockSpec(p["bqkv"].shape, cst3),
        pl.BlockSpec(p["wo"].shape, cst3),
        pl.BlockSpec(p["bo"].shape, cst3),
        pl.BlockSpec(p["ln1_g"].shape, cst3),
        pl.BlockSpec(p["ln1_b"].shape, cst3),
        pl.BlockSpec(p["wi"].shape, cst3),
        pl.BlockSpec(p["bi"].shape, cst3),
        pl.BlockSpec(p["wo2"].shape, cst3),
        pl.BlockSpec(p["bo2"].shape, cst3),
        pl.BlockSpec(p["ln2_g"].shape, cst3),
        pl.BlockSpec(p["ln2_b"].shape, cst3),
        pl.BlockSpec(p["pool_w"].shape, cst2),
        pl.BlockSpec(p["pool_b"].shape, cst2),
    ]
    out_shape = (
        jax.ShapeDtypeStruct((B, S, H), jnp.float32),
        jax.ShapeDtypeStruct((B, 1, H), jnp.float32),
    )
    out_specs = (
        pl.BlockSpec((BB, S, H), blk3),
        pl.BlockSpec((BB, 1, H), blk3),
    )
    return pl.pallas_call(
        fused_encoder_kernel,
        out_shape=out_shape,
        grid=(B // BB,),
        in_specs=in_specs,
        out_specs=out_specs,
        compiler_params=pltpu.CompilerParams(dimension_semantics=("parallel",)),
    )(x_emb, mask_bias, p["emb_ln_g"], p["emb_ln_b"],
      p["wqkv"], p["bqkv"], p["wo"], p["bo"], p["ln1_g"], p["ln1_b"],
      p["wi"], p["bi"], p["wo2"], p["bo2"], p["ln2_g"], p["ln2_b"],
      p["pool_w"], p["pool_b"])


# ----------------------------- model glue (plain JAX) ------------------------------
def init_params(key):
    def norm(k, shape, dtype=jnp.float32):
        return (0.02 * jax.random.normal(k, shape, dtype=jnp.float32)).astype(dtype)

    L, H, I = NUM_LAYERS, HIDDEN, INTERMEDIATE
    keys = jax.random.split(key, 8)

    # fused QKV weight; fold 1/sqrt(HEAD_DIM) into the Q columns (and Q bias) at init
    scale = 1.0 / math.sqrt(HEAD_DIM)
    wqkv = 0.02 * jax.random.normal(keys[4], (L, H, 3 * H), dtype=jnp.float32)
    wqkv = wqkv.at[:, :, :H].multiply(scale)
    bqkv = jnp.zeros((L, 1, 3 * H), jnp.float32)
    bqkv = bqkv.at[:, :, :H].multiply(scale)

    return {
        "word_emb": norm(keys[0], (VOCAB, H)),
        "pos_emb": norm(keys[1], (MAX_POS, H)),
        "type_emb": norm(keys[2], (1, H)),
        "emb_ln_g": jnp.ones((1, H), jnp.float32),
        "emb_ln_b": jnp.zeros((1, H), jnp.float32),
        "pool_w": norm(keys[3], (H, H), jnp.bfloat16),      # bf16 matmul weights
        "pool_b": jnp.zeros((1, H), jnp.float32),
        # per-layer weights stacked along a leading layer axis (matmul weights bf16)
        "wqkv": wqkv.astype(jnp.bfloat16),
        "bqkv": bqkv,
        "wo": norm(keys[5], (L, H, H), jnp.bfloat16),
        "bo": jnp.zeros((L, 1, H), jnp.float32),
        "ln1_g": jnp.ones((L, 1, H), jnp.float32),
        "ln1_b": jnp.zeros((L, 1, H), jnp.float32),
        "wi": norm(keys[6], (L, H, I), jnp.bfloat16),
        "bi": jnp.zeros((L, 1, I), jnp.float32),
        "wo2": norm(keys[7], (L, I, H), jnp.bfloat16),
        "bo2": jnp.zeros((L, 1, H), jnp.float32),
        "ln2_g": jnp.ones((L, 1, H), jnp.float32),
        "ln2_b": jnp.zeros((L, 1, H), jnp.float32),
    }


@jax.jit
def _encode(params, word, mask):
    """word, mask: [B, S] int32 -> (last_hidden [B,S,H], pooled [B,H])."""
    B, S = word.shape
    # RoBERTa-style position ids (padding_idx = 1).
    position_ids = jnp.cumsum(mask, axis=1) * mask + 1
    x = (params["word_emb"][word]
         + params["pos_emb"][position_ids]
         + params["type_emb"][0]).astype(jnp.float32)          # broadcast type emb
    mask_bias = ((1.0 - mask.astype(jnp.float32)) * (-1e9)).reshape(B, 1, S)
    bb = _pick_batch_block(B)                                   # trace-time, device-aware
    last_hidden, pooled = fused_encoder(x, mask_bias, params, bb)
    return last_hidden, pooled[:, 0, :]


def roberta_sentence_encoder(params, inputs, cat_entity_rep=False):
    last_hidden, pooled = _encode(params, inputs["word"], inputs["mask"])
    if not cat_entity_rep:
        return pooled
    B = inputs["word"].shape[0]
    rng = jnp.arange(B)
    h_state = last_hidden[rng, inputs["pos1"]]
    t_state = last_hidden[rng, inputs["pos2"]]
    return jnp.concatenate([h_state, t_state], axis=-1)


# ----------------------------- main -------------------------------------------------
if __name__ == "__main__":
    key = jax.random.PRNGKey(0)
    pkey, wkey = jax.random.split(key)
    params = init_params(pkey)

    B, S = 2, 16
    word = jax.random.randint(wkey, (B, S), 0, VOCAB, dtype=jnp.int32)
    word = word.at[:, 0].set(0)                     # <s> token
    mask = jnp.array([[1] * 12 + [0] * 4,
                      [1] * 16], dtype=jnp.int32)
    pos1 = jnp.array([1, 2], dtype=jnp.int32)
    pos2 = jnp.array([3, 5], dtype=jnp.int32)
    inputs = {"word": word, "mask": mask, "pos1": pos1, "pos2": pos2}

    pooled = roberta_sentence_encoder(params, inputs, cat_entity_rep=False)
    jax.block_until_ready(pooled)
    assert pooled.shape == (B, HIDDEN)
    assert bool(jnp.all(jnp.isfinite(pooled)))

    state = roberta_sentence_encoder(params, inputs, cat_entity_rep=True)
    jax.block_until_ready(state)
    assert state.shape == (B, 2 * HIDDEN)
    assert bool(jnp.all(jnp.isfinite(state)))

    print("KERNEL_OK")
</pallas_src>

<mosaic_0001>
module attributes {stable_mosaic.version = 11 : i64} {
  func.func @fused_encoder_kernel(%arg0: i32, %arg1: memref<2x16x128xf32, #tpu.memory_space<vmem>>, %arg2: memref<2x1x16xf32, #tpu.memory_space<vmem>>, %arg3: memref<1x128xf32, #tpu.memory_space<vmem>>, %arg4: memref<1x128xf32, #tpu.memory_space<vmem>>, %arg5: memref<2x128x384xbf16, #tpu.memory_space<vmem>>, %arg6: memref<2x1x384xf32, #tpu.memory_space<vmem>>, %arg7: memref<2x128x128xbf16, #tpu.memory_space<vmem>>, %arg8: memref<2x1x128xf32, #tpu.memory_space<vmem>>, %arg9: memref<2x1x128xf32, #tpu.memory_space<vmem>>, %arg10: memref<2x1x128xf32, #tpu.memory_space<vmem>>, %arg11: memref<2x128x256xbf16, #tpu.memory_space<vmem>>, %arg12: memref<2x1x256xf32, #tpu.memory_space<vmem>>, %arg13: memref<2x256x128xbf16, #tpu.memory_space<vmem>>, %arg14: memref<2x1x128xf32, #tpu.memory_space<vmem>>, %arg15: memref<2x1x128xf32, #tpu.memory_space<vmem>>, %arg16: memref<2x1x128xf32, #tpu.memory_space<vmem>>, %arg17: memref<128x128xbf16, #tpu.memory_space<vmem>>, %arg18: memref<1x128xf32, #tpu.memory_space<vmem>>, %arg19: memref<2x16x128xf32, #tpu.memory_space<vmem>>, %arg20: memref<2x1x128xf32, #tpu.memory_space<vmem>>) attributes {dimension_semantics = [#tpu.dimension_semantics<parallel>], iteration_bounds = array<i64: 1>, scalar_prefetch = 0 : i64, scratch_operands = 0 : i64, tpu.core_type = #tpu.core_type<tc>, window_params = [{transform_indices = @transform_0, window_bounds = array<i64: 2, 16, 128>}, {transform_indices = @transform_1, window_bounds = array<i64: 2, 1, 16>}, {pipeline_mode = #tpu.pipeline_mode<synchronous>, transform_indices = @transform_2, window_bounds = array<i64: 1, 128>}, {pipeline_mode = #tpu.pipeline_mode<synchronous>, transform_indices = @transform_3, window_bounds = array<i64: 1, 128>}, {pipeline_mode = #tpu.pipeline_mode<synchronous>, transform_indices = @transform_4, window_bounds = array<i64: 2, 128, 384>}, {pipeline_mode = #tpu.pipeline_mode<synchronous>, transform_indices = @transform_5, window_bounds = array<i64: 2, 1, 384>}, {pipeline_mode = #tpu.pipeline_mode<synchronous>, transform_indices = @transform_6, window_bounds = array<i64: 2, 128, 128>}, {pipeline_mode = #tpu.pipeline_mode<synchronous>, transform_indices = @transform_7, window_bounds = array<i64: 2, 1, 128>}, {pipeline_mode = #tpu.pipeline_mode<synchronous>, transform_indices = @transform_8, window_bounds = array<i64: 2, 1, 128>}, {pipeline_mode = #tpu.pipeline_mode<synchronous>, transform_indices = @transform_9, window_bounds = array<i64: 2, 1, 128>}, {pipeline_mode = #tpu.pipeline_mode<synchronous>, transform_indices = @transform_10, window_bounds = array<i64: 2, 128, 256>}, {pipeline_mode = #tpu.pipeline_mode<synchronous>, transform_indices = @transform_11, window_bounds = array<i64: 2, 1, 256>}, {pipeline_mode = #tpu.pipeline_mode<synchronous>, transform_indices = @transform_12, window_bounds = array<i64: 2, 256, 128>}, {pipeline_mode = #tpu.pipeline_mode<synchronous>, transform_indices = @transform_13, window_bounds = array<i64: 2, 1, 128>}, {pipeline_mode = #tpu.pipeline_mode<synchronous>, transform_indices = @transform_14, window_bounds = array<i64: 2, 1, 128>}, {pipeline_mode = #tpu.pipeline_mode<synchronous>, transform_indices = @transform_15, window_bounds = array<i64: 2, 1, 128>}, {pipeline_mode = #tpu.pipeline_mode<synchronous>, transform_indices = @transform_16, window_bounds = array<i64: 128, 128>}, {pipeline_mode = #tpu.pipeline_mode<synchronous>, transform_indices = @transform_17, window_bounds = array<i64: 1, 128>}, {transform_indices = @transform_18, window_bounds = array<i64: 2, 16, 128>}, {transform_indices = @transform_19, window_bounds = array<i64: 2, 1, 128>}]} {
    %c0 = arith.constant 0 : index
    %c0_0 = arith.constant 0 : index
    %c0_1 = arith.constant 0 : index
    %0 = vector.load %arg1[%c0, %c0_0, %c0_1] : memref<2x16x128xf32, #tpu.memory_space<vmem>>, vector<2x16x128xf32>
    %1 = vector.shape_cast %0 : vector<2x16x128xf32> to vector<32x128xf32>
    %c0_2 = arith.constant 0 : index
    %c0_3 = arith.constant 0 : index
    %2 = vector.load %arg3[%c0_2, %c0_3] : memref<1x128xf32, #tpu.memory_space<vmem>>, vector<1x128xf32>
    %c0_4 = arith.constant 0 : index
    %c0_5 = arith.constant 0 : index
    %3 = vector.load %arg4[%c0_4, %c0_5] : memref<1x128xf32, #tpu.memory_space<vmem>>, vector<1x128xf32>
    %cst = arith.constant dense<0.000000e+00> : vector<32xf32>
    %4 = vector.multi_reduction <add>, %1, %cst [1] : vector<32x128xf32> to vector<32xf32>
    %5 = vector.shape_cast %4 : vector<32xf32> to vector<32x1xf32>
    %cst_6 = arith.constant 1.280000e+02 : f32
    %6 = vector.broadcast %cst_6 : f32 to vector<32x1xf32>
    %7 = arith.divf %5, %6 : vector<32x1xf32>
    %8 = vector.broadcast %7 : vector<32x1xf32> to vector<32x128xf32>
    %9 = arith.subf %1, %8 : vector<32x128xf32>
    %10 = arith.mulf %9, %9 : vector<32x128xf32>
    %cst_7 = arith.constant dense<0.000000e+00> : vector<32xf32>
    %11 = vector.multi_reduction <add>, %10, %cst_7 [1] : vector<32x128xf32> to vector<32xf32>
    %12 = vector.shape_cast %11 : vector<32xf32> to vector<32x1xf32>
    %cst_8 = arith.constant 1.280000e+02 : f32
    %13 = vector.broadcast %cst_8 : f32 to vector<32x1xf32>
    %14 = arith.divf %12, %13 : vector<32x1xf32>
    %cst_9 = arith.constant 9.99999974E-6 : f32
    %15 = vector.broadcast %cst_9 : f32 to vector<32x1xf32>
    %16 = arith.addf %14, %15 : vector<32x1xf32>
    %17 = math.rsqrt %16 : vector<32x1xf32>
    %18 = vector.broadcast %17 : vector<32x1xf32> to vector<32x128xf32>
    %19 = arith.mulf %9, %18 : vector<32x128xf32>
    %20 = vector.broadcast %2 : vector<1x128xf32> to vector<32x128xf32>
    %21 = arith.mulf %19, %20 : vector<32x128xf32>
    %22 = vector.broadcast %3 : vector<1x128xf32> to vector<32x128xf32>
    %23 = arith.addf %21, %22 : vector<32x128xf32>
    %c0_10 = arith.constant 0 : index
    %c0_11 = arith.constant 0 : index
    %c0_12 = arith.constant 0 : index
    %24 = vector.load %arg2[%c0_10, %c0_11, %c0_12] : memref<2x1x16xf32, #tpu.memory_space<vmem>>, vector<2x1x16xf32>
    %25 = vector.shape_cast %24 : vector<2x1x16xf32> to vector<2x1x16xf32>
    %26 = vector.broadcast %25 : vector<2x1x16xf32> to vector<2x16x16xf32>
    %27 = tpu.concatenate %26, %26 in 0 : vector<2x16x16xf32>, vector<2x16x16xf32> -> vector<4x16x16xf32>
    %28 = arith.truncf %23 : vector<32x128xf32> to vector<32x128xbf16>
    %c0_13 = arith.constant 0 : index
    %c0_14 = arith.constant 0 : index
    %c0_15 = arith.constant 0 : index
    %29 = vector.load %arg5[%c0_13, %c0_14, %c0_15] : memref<2x128x384xbf16, #tpu.memory_space<vmem>>, vector<1x128x384xbf16>
    %30 = vector.shape_cast %29 : vector<1x128x384xbf16> to vector<128x384xbf16>
    %cst_16 = arith.constant dense<0.000000e+00> : vector<32x384xf32>
    %31 = tpu.matmul %28, %30, %cst_16 {dimension_numbers = #tpu.dot_dimension_numbers<[1], [0], [0], [1], [0, 0, 1, 1], [], []>} : vector<32x128xbf16>, vector<128x384xbf16>, vector<32x384xf32> -> vector<32x384xf32>
    %c0_17 = arith.constant 0 : index
    %c0_18 = arith.constant 0 : index
    %c0_19 = arith.constant 0 : index
    %32 = vector.load %arg6[%c0_17, %c0_18, %c0_19] : memref<2x1x384xf32, #tpu.memory_space<vmem>>, vector<1x1x384xf32>
    %33 = vector.shape_cast %32 : vector<1x1x384xf32> to vector<1x384xf32>
    %34 = vector.broadcast %33 : vector<1x384xf32> to vector<32x384xf32>
    %35 = arith.addf %31, %34 : vector<32x384xf32>
    %36 = vector.extract_strided_slice %35 {offsets = [0, 0], sizes = [32, 128], strides = [1, 1]} : vector<32x384xf32> to vector<32x128xf32>
    %37 = vector.extract_strided_slice %36 {offsets = [0, 0], sizes = [32, 64], strides = [1, 1]} : vector<32x128xf32> to vector<32x64xf32>
    %38 = vector.shape_cast %37 : vector<32x64xf32> to vector<2x16x64xf32>
    %39 = vector.extract_strided_slice %36 {offsets = [0, 64], sizes = [32, 64], strides = [1, 1]} : vector<32x128xf32> to vector<32x64xf32>
    %40 = vector.shape_cast %39 : vector<32x64xf32> to vector<2x16x64xf32>
    %41 = tpu.concatenate %38, %40 in 0 : vector<2x16x64xf32>, vector<2x16x64xf32> -> vector<4x16x64xf32>
    %42 = arith.truncf %41 : vector<4x16x64xf32> to vector<4x16x64xbf16>
    %43 = vector.extract_strided_slice %35 {offsets = [0, 128], sizes = [32, 128], strides = [1, 1]} : vector<32x384xf32> to vector<32x128xf32>
    %44 = vector.extract_strided_slice %43 {offsets = [0, 0], sizes = [32, 64], strides = [1, 1]} : vector<32x128xf32> to vector<32x64xf32>
    %45 = vector.shape_cast %44 : vector<32x64xf32> to vector<2x16x64xf32>
    %46 = vector.extract_strided_slice %43 {offsets = [0, 64], sizes = [32, 64], strides = [1, 1]} : vector<32x128xf32> to vector<32x64xf32>
    %47 = vector.shape_cast %46 : vector<32x64xf32> to vector<2x16x64xf32>
    %48 = tpu.concatenate %45, %47 in 0 : vector<2x16x64xf32>, vector<2x16x64xf32> -> vector<4x16x64xf32>
    %49 = arith.truncf %48 : vector<4x16x64xf32> to vector<4x16x64xbf16>
    %50 = vector.extract_strided_slice %35 {offsets = [0, 256], sizes = [32, 128], strides = [1, 1]} : vector<32x384xf32> to vector<32x128xf32>
    %51 = vector.extract_strided_slice %50 {offsets = [0, 0], sizes = [32, 64], strides = [1, 1]} : vector<32x128xf32> to vector<32x64xf32>
    %52 = vector.shape_cast %51 : vector<32x64xf32> to vector<2x16x64xf32>
    %53 = vector.extract_strided_slice %50 {offsets = [0, 64], sizes = [32, 64], strides = [1, 1]} : vector<32x128xf32> to vector<32x64xf32>
    %54 = vector.shape_cast %53 : vector<32x64xf32> to vector<2x16x64xf32>
    %55 = tpu.concatenate %52, %54 in 0 : vector<2x16x64xf32>, vector<2x16x64xf32> -> vector<4x16x64xf32>
    %56 = arith.truncf %55 : vector<4x16x64xf32> to vector<4x16x64xbf16>
    "tpu.trace_start"() <{level = 10 : i32, message = "gqd,gkd->gqk"}> : () -> ()
    %cst_20 = arith.constant dense<0.000000e+00> : vector<4x16x16xf32>
    %57 = tpu.matmul %42, %49, %cst_20 {dimension_numbers = #tpu.dot_dimension_numbers<[2], [2], [1], [1], [0, 0, 0, 1, 1, 1], [0], [0]>} : vector<4x16x64xbf16>, vector<4x16x64xbf16>, vector<4x16x16xf32> -> vector<4x16x16xf32>
    "tpu.trace_stop"() : () -> ()
    %58 = arith.addf %57, %27 : vector<4x16x16xf32>
    %cst_21 = arith.constant dense<0xFF800000> : vector<4x16xf32>
    %59 = vector.multi_reduction <maximumf>, %58, %cst_21 [2] : vector<4x16x16xf32> to vector<4x16xf32>
    %60 = vector.shape_cast %59 : vector<4x16xf32> to vector<4x16x1xf32>
    %61 = vector.broadcast %60 : vector<4x16x1xf32> to vector<4x16x16xf32>
    %62 = arith.subf %58, %61 : vector<4x16x16xf32>
    %63 = math.exp %62 : vector<4x16x16xf32>
    %cst_22 = arith.constant dense<0.000000e+00> : vector<4x16xf32>
    %64 = vector.multi_reduction <add>, %63, %cst_22 [2] : vector<4x16x16xf32> to vector<4x16xf32>
    %65 = vector.shape_cast %64 : vector<4x16xf32> to vector<4x16x1xf32>
    %66 = tpu.reciprocal %65 {approx = true} : vector<4x16x1xf32> -> vector<4x16x1xf32>
    %67 = vector.broadcast %66 : vector<4x16x1xf32> to vector<4x16x16xf32>
    %68 = arith.mulf %63, %67 : vector<4x16x16xf32>
    %69 = arith.truncf %68 : vector<4x16x16xf32> to vector<4x16x16xbf16>
    "tpu.trace_start"() <{level = 10 : i32, message = "gqk,gkd->gqd"}> : () -> ()
    %cst_23 = arith.constant dense<0.000000e+00> : vector<4x16x64xf32>
    %70 = tpu.matmul %69, %56, %cst_23 {dimension_numbers = #tpu.dot_dimension_numbers<[2], [1], [1], [2], [0, 0, 0, 1, 1, 2], [0], [0]>} : vector<4x16x16xbf16>, vector<4x16x64xbf16>, vector<4x16x64xf32> -> vector<4x16x64xf32>
    "tpu.trace_stop"() : () -> ()
    %c0_24 = arith.constant 0 : index
    %c0_25 = arith.constant 0 : index
    %c0_26 = arith.constant 0 : index
    %71 = vector.load %arg7[%c0_24, %c0_25, %c0_26] : memref<2x128x128xbf16, #tpu.memory_space<vmem>>, vector<1x128x128xbf16>
    %72 = vector.shape_cast %71 : vector<1x128x128xbf16> to vector<128x128xbf16>
    %73 = vector.extract_strided_slice %70 {offsets = [0, 0, 0], sizes = [2, 16, 64], strides = [1, 1, 1]} : vector<4x16x64xf32> to vector<2x16x64xf32>
    %74 = vector.shape_cast %73 : vector<2x16x64xf32> to vector<32x64xf32>
    %75 = arith.truncf %74 : vector<32x64xf32> to vector<32x64xbf16>
    %76 = vector.extract_strided_slice %72 {offsets = [0, 0], sizes = [64, 128], strides = [1, 1]} : vector<128x128xbf16> to vector<64x128xbf16>
    %cst_27 = arith.constant dense<0.000000e+00> : vector<32x128xf32>
    %77 = tpu.matmul %75, %76, %cst_27 {dimension_numbers = #tpu.dot_dimension_numbers<[1], [0], [0], [1], [0, 0, 1, 1], [], []>} : vector<32x64xbf16>, vector<64x128xbf16>, vector<32x128xf32> -> vector<32x128xf32>
    %78 = vector.extract_strided_slice %70 {offsets = [2, 0, 0], sizes = [2, 16, 64], strides = [1, 1, 1]} : vector<4x16x64xf32> to vector<2x16x64xf32>
    %79 = vector.shape_cast %78 : vector<2x16x64xf32> to vector<32x64xf32>
    %80 = arith.truncf %79 : vector<32x64xf32> to vector<32x64xbf16>
    %81 = vector.extract_strided_slice %72 {offsets = [64, 0], sizes = [64, 128], strides = [1, 1]} : vector<128x128xbf16> to vector<64x128xbf16>
    %cst_28 = arith.constant dense<0.000000e+00> : vector<32x128xf32>
    %82 = tpu.matmul %80, %81, %cst_28 {dimension_numbers = #tpu.dot_dimension_numbers<[1], [0], [0], [1], [0, 0, 1, 1], [], []>} : vector<32x64xbf16>, vector<64x128xbf16>, vector<32x128xf32> -> vector<32x128xf32>
    %83 = arith.addf %77, %82 : vector<32x128xf32>
    %c0_29 = arith.constant 0 : index
    %c0_30 = arith.constant 0 : index
    %c0_31 = arith.constant 0 : index
    %84 = vector.load %arg8[%c0_29, %c0_30, %c0_31] : memref<2x1x128xf32, #tpu.memory_space<vmem>>, vector<1x1x128xf32>
    %85 = vector.shape_cast %84 : vector<1x1x128xf32> to vector<1x128xf32>
    %86 = vector.broadcast %85 : vector<1x128xf32> to vector<32x128xf32>
    %87 = arith.addf %83, %86 : vector<32x128xf32>
    %88 = arith.addf %23, %87 : vector<32x128xf32>
    %c0_32 = arith.constant 0 : index
    %c0_33 = arith.constant 0 : index
    %c0_34 = arith.constant 0 : index
    %89 = vector.load %arg9[%c0_32, %c0_33, %c0_34] : memref<2x1x128xf32, #tpu.memory_space<vmem>>, vector<1x1x128xf32>
    %90 = vector.shape_cast %89 : vector<1x1x128xf32> to vector<1x128xf32>
    %c0_35 = arith.constant 0 : index
    %c0_36 = arith.constant 0 : index
    %c0_37 = arith.constant 0 : index
    %91 = vector.load %arg10[%c0_35, %c0_36, %c0_37] : memref<2x1x128xf32, #tpu.memory_space<vmem>>, vector<1x1x128xf32>
    %92 = vector.shape_cast %91 : vector<1x1x128xf32> to vector<1x128xf32>
    %cst_38 = arith.constant dense<0.000000e+00> : vector<32xf32>
    %93 = vector.multi_reduction <add>, %88, %cst_38 [1] : vector<32x128xf32> to vector<32xf32>
    %94 = vector.shape_cast %93 : vector<32xf32> to vector<32x1xf32>
    %cst_39 = arith.constant 1.280000e+02 : f32
    %95 = vector.broadcast %cst_39 : f32 to vector<32x1xf32>
    %96 = arith.divf %94, %95 : vector<32x1xf32>
    %97 = vector.broadcast %96 : vector<32x1xf32> to vector<32x128xf32>
    %98 = arith.subf %88, %97 : vector<32x128xf32>
    %99 = arith.mulf %98, %98 : vector<32x128xf32>
    %cst_40 = arith.constant dense<0.000000e+00> : vector<32xf32>
    %100 = vector.multi_reduction <add>, %99, %cst_40 [1] : vector<32x128xf32> to vector<32xf32>
    %101 = vector.shape_cast %100 : vector<32xf32> to vector<32x1xf32>
    %cst_41 = arith.constant 1.280000e+02 : f32
    %102 = vector.broadcast %cst_41 : f32 to vector<32x1xf32>
    %103 = arith.divf %101, %102 : vector<32x1xf32>
    %cst_42 = arith.constant 9.99999974E-6 : f32
    %104 = vector.broadcast %cst_42 : f32 to vector<32x1xf32>
    %105 = arith.addf %103, %104 : vector<32x1xf32>
    %106 = math.rsqrt %105 : vector<32x1xf32>
    %107 = vector.broadcast %106 : vector<32x1xf32> to vector<32x128xf32>
    %108 = arith.mulf %98, %107 : vector<32x128xf32>
    %109 = vector.broadcast %90 : vector<1x128xf32> to vector<32x128xf32>
    %110 = arith.mulf %108, %109 : vector<32x128xf32>
    %111 = vector.broadcast %92 : vector<1x128xf32> to vector<32x128xf32>
    %112 = arith.addf %110, %111 : vector<32x128xf32>
    %113 = arith.truncf %112 : vector<32x128xf32> to vector<32x128xbf16>
    %c0_43 = arith.constant 0 : index
    %c0_44 = arith.constant 0 : index
    %c0_45 = arith.constant 0 : index
    %114 = vector.load %arg11[%c0_43, %c0_44, %c0_45] : memref<2x128x256xbf16, #tpu.memory_space<vmem>>, vector<1x128x256xbf16>
    %115 = vector.shape_cast %114 : vector<1x128x256xbf16> to vector<128x256xbf16>
    %cst_46 = arith.constant dense<0.000000e+00> : vector<32x256xf32>
    %116 = tpu.matmul %113, %115, %cst_46 {dimension_numbers = #tpu.dot_dimension_numbers<[1], [0], [0], [1], [0, 0, 1, 1], [], []>} : vector<32x128xbf16>, vector<128x256xbf16>, vector<32x256xf32> -> vector<32x256xf32>
    %c0_47 = arith.constant 0 : index
    %c0_48 = arith.constant 0 : index
    %c0_49 = arith.constant 0 : index
    %117 = vector.load %arg12[%c0_47, %c0_48, %c0_49] : memref<2x1x256xf32, #tpu.memory_space<vmem>>, vector<1x1x256xf32>
    %118 = vector.shape_cast %117 : vector<1x1x256xf32> to vector<1x256xf32>
    %119 = vector.broadcast %118 : vector<1x256xf32> to vector<32x256xf32>
    %120 = arith.addf %116, %119 : vector<32x256xf32>
    %cst_50 = arith.constant 5.000000e-01 : f32
    %121 = vector.broadcast %cst_50 : f32 to vector<32x256xf32>
    %122 = arith.mulf %121, %120 : vector<32x256xf32>
    %cst_51 = arith.constant 4.471500e-02 : f32
    %123 = vector.broadcast %cst_51 : f32 to vector<32x256xf32>
    %124 = arith.mulf %123, %120 : vector<32x256xf32>
    %125 = arith.mulf %124, %120 : vector<32x256xf32>
    %126 = arith.mulf %125, %120 : vector<32x256xf32>
    %127 = arith.addf %120, %126 : vector<32x256xf32>
    %cst_52 = arith.constant 0.797884583 : f32
    %128 = vector.broadcast %cst_52 : f32 to vector<32x256xf32>
    %129 = arith.mulf %128, %127 : vector<32x256xf32>
    %130 = math.tanh %129 : vector<32x256xf32>
    %cst_53 = arith.constant 1.000000e+00 : f32
    %131 = vector.broadcast %cst_53 : f32 to vector<32x256xf32>
    %132 = arith.addf %131, %130 : vector<32x256xf32>
    %133 = arith.mulf %122, %132 : vector<32x256xf32>
    %134 = arith.truncf %133 : vector<32x256xf32> to vector<32x256xbf16>
    %c0_54 = arith.constant 0 : index
    %c0_55 = arith.constant 0 : index
    %c0_56 = arith.constant 0 : index
    %135 = vector.load %arg13[%c0_54, %c0_55, %c0_56] : memref<2x256x128xbf16, #tpu.memory_space<vmem>>, vector<1x256x128xbf16>
    %136 = vector.shape_cast %135 : vector<1x256x128xbf16> to vector<256x128xbf16>
    %cst_57 = arith.constant dense<0.000000e+00> : vector<32x128xf32>
    %137 = tpu.matmul %134, %136, %cst_57 {dimension_numbers = #tpu.dot_dimension_numbers<[1], [0], [0], [1], [0, 0, 1, 1], [], []>} : vector<32x256xbf16>, vector<256x128xbf16>, vector<32x128xf32> -> vector<32x128xf32>
    %c0_58 = arith.constant 0 : index
    %c0_59 = arith.constant 0 : index
    %c0_60 = arith.constant 0 : index
    %138 = vector.load %arg14[%c0_58, %c0_59, %c0_60] : memref<2x1x128xf32, #tpu.memory_space<vmem>>, vector<1x1x128xf32>
    %139 = vector.shape_cast %138 : vector<1x1x128xf32> to vector<1x128xf32>
    %140 = vector.broadcast %139 : vector<1x128xf32> to vector<32x128xf32>
    %141 = arith.addf %137, %140 : vector<32x128xf32>
    %142 = arith.addf %112, %141 : vector<32x128xf32>
    %c0_61 = arith.constant 0 : index
    %c0_62 = arith.constant 0 : index
    %c0_63 = arith.constant 0 : index
    %143 = vector.load %arg15[%c0_61, %c0_62, %c0_63] : memref<2x1x128xf32, #tpu.memory_space<vmem>>, vector<1x1x128xf32>
    %144 = vector.shape_cast %143 : vector<1x1x128xf32> to vector<1x128xf32>
    %c0_64 = arith.constant 0 : index
    %c0_65 = arith.constant 0 : index
    %c0_66 = arith.constant 0 : index
    %145 = vector.load %arg16[%c0_64, %c0_65, %c0_66] : memref<2x1x128xf32, #tpu.memory_space<vmem>>, vector<1x1x128xf32>
    %146 = vector.shape_cast %145 : vector<1x1x128xf32> to vector<1x128xf32>
    %cst_67 = arith.constant dense<0.000000e+00> : vector<32xf32>
    %147 = vector.multi_reduction <add>, %142, %cst_67 [1] : vector<32x128xf32> to vector<32xf32>
    %148 = vector.shape_cast %147 : vector<32xf32> to vector<32x1xf32>
    %cst_68 = arith.constant 1.280000e+02 : f32
    %149 = vector.broadcast %cst_68 : f32 to vector<32x1xf32>
    %150 = arith.divf %148, %149 : vector<32x1xf32>
    %151 = vector.broadcast %150 : vector<32x1xf32> to vector<32x128xf32>
    %152 = arith.subf %142, %151 : vector<32x128xf32>
    %153 = arith.mulf %152, %152 : vector<32x128xf32>
    %cst_69 = arith.constant dense<0.000000e+00> : vector<32xf32>
    %154 = vector.multi_reduction <add>, %153, %cst_69 [1] : vector<32x128xf32> to vector<32xf32>
    %155 = vector.shape_cast %154 : vector<32xf32> to vector<32x1xf32>
    %cst_70 = arith.constant 1.280000e+02 : f32
    %156 = vector.broadcast %cst_70 : f32 to vector<32x1xf32>
    %157 = arith.divf %155, %156 : vector<32x1xf32>
    %cst_71 = arith.constant 9.99999974E-6 : f32
    %158 = vector.broadcast %cst_71 : f32 to vector<32x1xf32>
    %159 = arith.addf %157, %158 : vector<32x1xf32>
    %160 = math.rsqrt %159 : vector<32x1xf32>
    %161 = vector.broadcast %160 : vector<32x1xf32> to vector<32x128xf32>
    %162 = arith.mulf %152, %161 : vector<32x128xf32>
    %163 = vector.broadcast %144 : vector<1x128xf32> to vector<32x128xf32>
    %164 = arith.mulf %162, %163 : vector<32x128xf32>
    %165 = vector.broadcast %146 : vector<1x128xf32> to vector<32x128xf32>
    %166 = arith.addf %164, %165 : vector<32x128xf32>
    %167 = arith.truncf %166 : vector<32x128xf32> to vector<32x128xbf16>
    %c1 = arith.constant 1 : index
    %c0_72 = arith.constant 0 : index
    %c0_73 = arith.constant 0 : index
    %168 = vector.load %arg5[%c1, %c0_72, %c0_73] : memref<2x128x384xbf16, #tpu.memory_space<vmem>>, vector<1x128x384xbf16>
    %169 = vector.shape_cast %168 : vector<1x128x384xbf16> to vector<128x384xbf16>
    %cst_74 = arith.constant dense<0.000000e+00> : vector<32x384xf32>
    %170 = tpu.matmul %167, %169, %cst_74 {dimension_numbers = #tpu.dot_dimension_numbers<[1], [0], [0], [1], [0, 0, 1, 1], [], []>} : vector<32x128xbf16>, vector<128x384xbf16>, vector<32x384xf32> -> vector<32x384xf32>
    %c1_75 = arith.constant 1 : index
    %c0_76 = arith.constant 0 : index
    %c0_77 = arith.constant 0 : index
    %171 = vector.load %arg6[%c1_75, %c0_76, %c0_77] : memref<2x1x384xf32, #tpu.memory_space<vmem>>, vector<1x1x384xf32>
    %172 = vector.shape_cast %171 : vector<1x1x384xf32> to vector<1x384xf32>
    %173 = vector.broadcast %172 : vector<1x384xf32> to vector<32x384xf32>
    %174 = arith.addf %170, %173 : vector<32x384xf32>
    %175 = vector.extract_strided_slice %174 {offsets = [0, 0], sizes = [32, 128], strides = [1, 1]} : vector<32x384xf32> to vector<32x128xf32>
    %176 = vector.extract_strided_slice %175 {offsets = [0, 0], sizes = [32, 64], strides = [1, 1]} : vector<32x128xf32> to vector<32x64xf32>
    %177 = vector.shape_cast %176 : vector<32x64xf32> to vector<2x16x64xf32>
    %178 = vector.extract_strided_slice %175 {offsets = [0, 64], sizes = [32, 64], strides = [1, 1]} : vector<32x128xf32> to vector<32x64xf32>
    %179 = vector.shape_cast %178 : vector<32x64xf32> to vector<2x16x64xf32>
    %180 = tpu.concatenate %177, %179 in 0 : vector<2x16x64xf32>, vector<2x16x64xf32> -> vector<4x16x64xf32>
    %181 = arith.truncf %180 : vector<4x16x64xf32> to vector<4x16x64xbf16>
    %182 = vector.extract_strided_slice %174 {offsets = [0, 128], sizes = [32, 128], strides = [1, 1]} : vector<32x384xf32> to vector<32x128xf32>
    %183 = vector.extract_strided_slice %182 {offsets = [0, 0], sizes = [32, 64], strides = [1, 1]} : vector<32x128xf32> to vector<32x64xf32>
    %184 = vector.shape_cast %183 : vector<32x64xf32> to vector<2x16x64xf32>
    %185 = vector.extract_strided_slice %182 {offsets = [0, 64], sizes = [32, 64], strides = [1, 1]} : vector<32x128xf32> to vector<32x64xf32>
    %186 = vector.shape_cast %185 : vector<32x64xf32> to vector<2x16x64xf32>
    %187 = tpu.concatenate %184, %186 in 0 : vector<2x16x64xf32>, vector<2x16x64xf32> -> vector<4x16x64xf32>
    %188 = arith.truncf %187 : vector<4x16x64xf32> to vector<4x16x64xbf16>
    %189 = vector.extract_strided_slice %174 {offsets = [0, 256], sizes = [32, 128], strides = [1, 1]} : vector<32x384xf32> to vector<32x128xf32>
    %190 = vector.extract_strided_slice %189 {offsets = [0, 0], sizes = [32, 64], strides = [1, 1]} : vector<32x128xf32> to vector<32x64xf32>
    %191 = vector.shape_cast %190 : vector<32x64xf32> to vector<2x16x64xf32>
    %192 = vector.extract_strided_slice %189 {offsets = [0, 64], sizes = [32, 64], strides = [1, 1]} : vector<32x128xf32> to vector<32x64xf32>
    %193 = vector.shape_cast %192 : vector<32x64xf32> to vector<2x16x64xf32>
    %194 = tpu.concatenate %191, %193 in 0 : vector<2x16x64xf32>, vector<2x16x64xf32> -> vector<4x16x64xf32>
    %195 = arith.truncf %194 : vector<4x16x64xf32> to vector<4x16x64xbf16>
    "tpu.trace_start"() <{level = 10 : i32, message = "gqd,gkd->gqk"}> : () -> ()
    %cst_78 = arith.constant dense<0.000000e+00> : vector<4x16x16xf32>
    %196 = tpu.matmul %181, %188, %cst_78 {dimension_numbers = #tpu.dot_dimension_numbers<[2], [2], [1], [1], [0, 0, 0, 1, 1, 1], [0], [0]>} : vector<4x16x64xbf16>, vector<4x16x64xbf16>, vector<4x16x16xf32> -> vector<4x16x16xf32>
    "tpu.trace_stop"() : () -> ()
    %197 = arith.addf %196, %27 : vector<4x16x16xf32>
    %cst_79 = arith.constant dense<0xFF800000> : vector<4x16xf32>
    %198 = vector.multi_reduction <maximumf>, %197, %cst_79 [2] : vector<4x16x16xf32> to vector<4x16xf32>
    %199 = vector.shape_cast %198 : vector<4x16xf32> to vector<4x16x1xf32>
    %200 = vector.broadcast %199 : vector<4x16x1xf32> to vector<4x16x16xf32>
    %201 = arith.subf %197, %200 : vector<4x16x16xf32>
    %202 = math.exp %201 : vector<4x16x16xf32>
    %cst_80 = arith.constant dense<0.000000e+00> : vector<4x16xf32>
    %203 = vector.multi_reduction <add>, %202, %cst_80 [2] : vector<4x16x16xf32> to vector<4x16xf32>
    %204 = vector.shape_cast %203 : vector<4x16xf32> to vector<4x16x1xf32>
    %205 = tpu.reciprocal %204 {approx = true} : vector<4x16x1xf32> -> vector<4x16x1xf32>
    %206 = vector.broadcast %205 : vector<4x16x1xf32> to vector<4x16x16xf32>
    %207 = arith.mulf %202, %206 : vector<4x16x16xf32>
    %208 = arith.truncf %207 : vector<4x16x16xf32> to vector<4x16x16xbf16>
    "tpu.trace_start"() <{level = 10 : i32, message = "gqk,gkd->gqd"}> : () -> ()
    %cst_81 = arith.constant dense<0.000000e+00> : vector<4x16x64xf32>
    %209 = tpu.matmul %208, %195, %cst_81 {dimension_numbers = #tpu.dot_dimension_numbers<[2], [1], [1], [2], [0, 0, 0, 1, 1, 2], [0], [0]>} : vector<4x16x16xbf16>, vector<4x16x64xbf16>, vector<4x16x64xf32> -> vector<4x16x64xf32>
    "tpu.trace_stop"() : () -> ()
    %c1_82 = arith.constant 1 : index
    %c0_83 = arith.constant 0 : index
    %c0_84 = arith.constant 0 : index
    %210 = vector.load %arg7[%c1_82, %c0_83, %c0_84] : memref<2x128x128xbf16, #tpu.memory_space<vmem>>, vector<1x128x128xbf16>
    %211 = vector.shape_cast %210 : vector<1x128x128xbf16> to vector<128x128xbf16>
    %212 = vector.extract_strided_slice %209 {offsets = [0, 0, 0], sizes = [2, 16, 64], strides = [1, 1, 1]} : vector<4x16x64xf32> to vector<2x16x64xf32>
    %213 = vector.shape_cast %212 : vector<2x16x64xf32> to vector<32x64xf32>
    %214 = arith.truncf %213 : vector<32x64xf32> to vector<32x64xbf16>
    %215 = vector.extract_strided_slice %211 {offsets = [0, 0], sizes = [64, 128], strides = [1, 1]} : vector<128x128xbf16> to vector<64x128xbf16>
    %cst_85 = arith.constant dense<0.000000e+00> : vector<32x128xf32>
    %216 = tpu.matmul %214, %215, %cst_85 {dimension_numbers = #tpu.dot_dimension_numbers<[1], [0], [0], [1], [0, 0, 1, 1], [], []>} : vector<32x64xbf16>, vector<64x128xbf16>, vector<32x128xf32> -> vector<32x128xf32>
    %217 = vector.extract_strided_slice %209 {offsets = [2, 0, 0], sizes = [2, 16, 64], strides = [1, 1, 1]} : vector<4x16x64xf32> to vector<2x16x64xf32>
    %218 = vector.shape_cast %217 : vector<2x16x64xf32> to vector<32x64xf32>
    %219 = arith.truncf %218 : vector<32x64xf32> to vector<32x64xbf16>
    %220 = vector.extract_strided_slice %211 {offsets = [64, 0], sizes = [64, 128], strides = [1, 1]} : vector<128x128xbf16> to vector<64x128xbf16>
    %cst_86 = arith.constant dense<0.000000e+00> : vector<32x128xf32>
    %221 = tpu.matmul %219, %220, %cst_86 {dimension_numbers = #tpu.dot_dimension_numbers<[1], [0], [0], [1], [0, 0, 1, 1], [], []>} : vector<32x64xbf16>, vector<64x128xbf16>, vector<32x128xf32> -> vector<32x128xf32>
    %222 = arith.addf %216, %221 : vector<32x128xf32>
    %c1_87 = arith.constant 1 : index
    %c0_88 = arith.constant 0 : index
    %c0_89 = arith.constant 0 : index
    %223 = vector.load %arg8[%c1_87, %c0_88, %c0_89] : memref<2x1x128xf32, #tpu.memory_space<vmem>>, vector<1x1x128xf32>
    %224 = vector.shape_cast %223 : vector<1x1x128xf32> to vector<1x128xf32>
    %225 = vector.broadcast %224 : vector<1x128xf32> to vector<32x128xf32>
    %226 = arith.addf %222, %225 : vector<32x128xf32>
    %227 = arith.addf %166, %226 : vector<32x128xf32>
    %c1_90 = arith.constant 1 : index
    %c0_91 = arith.constant 0 : index
    %c0_92 = arith.constant 0 : index
    %228 = vector.load %arg9[%c1_90, %c0_91, %c0_92] : memref<2x1x128xf32, #tpu.memory_space<vmem>>, vector<1x1x128xf32>
    %229 = vector.shape_cast %228 : vector<1x1x128xf32> to vector<1x128xf32>
    %c1_93 = arith.constant 1 : index
    %c0_94 = arith.constant 0 : index
    %c0_95 = arith.constant 0 : index
    %230 = vector.load %arg10[%c1_93, %c0_94, %c0_95] : memref<2x1x128xf32, #tpu.memory_space<vmem>>, vector<1x1x128xf32>
    %231 = vector.shape_cast %230 : vector<1x1x128xf32> to vector<1x128xf32>
    %cst_96 = arith.constant dense<0.000000e+00> : vector<32xf32>
    %232 = vector.multi_reduction <add>, %227, %cst_96 [1] : vector<32x128xf32> to vector<32xf32>
    %233 = vector.shape_cast %232 : vector<32xf32> to vector<32x1xf32>
    %cst_97 = arith.constant 1.280000e+02 : f32
    %234 = vector.broadcast %cst_97 : f32 to vector<32x1xf32>
    %235 = arith.divf %233, %234 : vector<32x1xf32>
    %236 = vector.broadcast %235 : vector<32x1xf32> to vector<32x128xf32>
    %237 = arith.subf %227, %236 : vector<32x128xf32>
    %238 = arith.mulf %237, %237 : vector<32x128xf32>
    %cst_98 = arith.constant dense<0.000000e+00> : vector<32xf32>
    %239 = vector.multi_reduction <add>, %238, %cst_98 [1] : vector<32x128xf32> to vector<32xf32>
    %240 = vector.shape_cast %239 : vector<32xf32> to vector<32x1xf32>
    %cst_99 = arith.constant 1.280000e+02 : f32
    %241 = vector.broadcast %cst_99 : f32 to vector<32x1xf32>
    %242 = arith.divf %240, %241 : vector<32x1xf32>
    %cst_100 = arith.constant 9.99999974E-6 : f32
    %243 = vector.broadcast %cst_100 : f32 to vector<32x1xf32>
    %244 = arith.addf %242, %243 : vector<32x1xf32>
    %245 = math.rsqrt %244 : vector<32x1xf32>
    %246 = vector.broadcast %245 : vector<32x1xf32> to vector<32x128xf32>
    %247 = arith.mulf %237, %246 : vector<32x128xf32>
    %248 = vector.broadcast %229 : vector<1x128xf32> to vector<32x128xf32>
    %249 = arith.mulf %247, %248 : vector<32x128xf32>
    %250 = vector.broadcast %231 : vector<1x128xf32> to vector<32x128xf32>
    %251 = arith.addf %249, %250 : vector<32x128xf32>
    %252 = arith.truncf %251 : vector<32x128xf32> to vector<32x128xbf16>
    %c1_101 = arith.constant 1 : index
    %c0_102 = arith.constant 0 : index
    %c0_103 = arith.constant 0 : index
    %253 = vector.load %arg11[%c1_101, %c0_102, %c0_103] : memref<2x128x256xbf16, #tpu.memory_space<vmem>>, vector<1x128x256xbf16>
    %254 = vector.shape_cast %253 : vector<1x128x256xbf16> to vector<128x256xbf16>
    %cst_104 = arith.constant dense<0.000000e+00> : vector<32x256xf32>
    %255 = tpu.matmul %252, %254, %cst_104 {dimension_numbers = #tpu.dot_dimension_numbers<[1], [0], [0], [1], [0, 0, 1, 1], [], []>} : vector<32x128xbf16>, vector<128x256xbf16>, vector<32x256xf32> -> vector<32x256xf32>
    %c1_105 = arith.constant 1 : index
    %c0_106 = arith.constant 0 : index
    %c0_107 = arith.constant 0 : index
    %256 = vector.load %arg12[%c1_105, %c0_106, %c0_107] : memref<2x1x256xf32, #tpu.memory_space<vmem>>, vector<1x1x256xf32>
    %257 = vector.shape_cast %256 : vector<1x1x256xf32> to vector<1x256xf32>
    %258 = vector.broadcast %257 : vector<1x256xf32> to vector<32x256xf32>
    %259 = arith.addf %255, %258 : vector<32x256xf32>
    %cst_108 = arith.constant 5.000000e-01 : f32
    %260 = vector.broadcast %cst_108 : f32 to vector<32x256xf32>
    %261 = arith.mulf %260, %259 : vector<32x256xf32>
    %cst_109 = arith.constant 4.471500e-02 : f32
    %262 = vector.broadcast %cst_109 : f32 to vector<32x256xf32>
    %263 = arith.mulf %262, %259 : vector<32x256xf32>
    %264 = arith.mulf %263, %259 : vector<32x256xf32>
    %265 = arith.mulf %264, %259 : vector<32x256xf32>
    %266 = arith.addf %259, %265 : vector<32x256xf32>
    %cst_110 = arith.constant 0.797884583 : f32
    %267 = vector.broadcast %cst_110 : f32 to vector<32x256xf32>
    %268 = arith.mulf %267, %266 : vector<32x256xf32>
    %269 = math.tanh %268 : vector<32x256xf32>
    %cst_111 = arith.constant 1.000000e+00 : f32
    %270 = vector.broadcast %cst_111 : f32 to vector<32x256xf32>
    %271 = arith.addf %270, %269 : vector<32x256xf32>
    %272 = arith.mulf %261, %271 : vector<32x256xf32>
    %273 = arith.truncf %272 : vector<32x256xf32> to vector<32x256xbf16>
    %c1_112 = arith.constant 1 : index
    %c0_113 = arith.constant 0 : index
    %c0_114 = arith.constant 0 : index
    %274 = vector.load %arg13[%c1_112, %c0_113, %c0_114] : memref<2x256x128xbf16, #tpu.memory_space<vmem>>, vector<1x256x128xbf16>
    %275 = vector.shape_cast %274 : vector<1x256x128xbf16> to vector<256x128xbf16>
    %cst_115 = arith.constant dense<0.000000e+00> : vector<32x128xf32>
    %276 = tpu.matmul %273, %275, %cst_115 {dimension_numbers = #tpu.dot_dimension_numbers<[1], [0], [0], [1], [0, 0, 1, 1], [], []>} : vector<32x256xbf16>, vector<256x128xbf16>, vector<32x128xf32> -> vector<32x128xf32>
    %c1_116 = arith.constant 1 : index
    %c0_117 = arith.constant 0 : index
    %c0_118 = arith.constant 0 : index
    %277 = vector.load %arg14[%c1_116, %c0_117, %c0_118] : memref<2x1x128xf32, #tpu.memory_space<vmem>>, vector<1x1x128xf32>
    %278 = vector.shape_cast %277 : vector<1x1x128xf32> to vector<1x128xf32>
    %279 = vector.broadcast %278 : vector<1x128xf32> to vector<32x128xf32>
    %280 = arith.addf %276, %279 : vector<32x128xf32>
    %281 = arith.addf %251, %280 : vector<32x128xf32>
    %c1_119 = arith.constant 1 : index
    %c0_120 = arith.constant 0 : index
    %c0_121 = arith.constant 0 : index
    %282 = vector.load %arg15[%c1_119, %c0_120, %c0_121] : memref<2x1x128xf32, #tpu.memory_space<vmem>>, vector<1x1x128xf32>
    %283 = vector.shape_cast %282 : vector<1x1x128xf32> to vector<1x128xf32>
    %c1_122 = arith.constant 1 : index
    %c0_123 = arith.constant 0 : index
    %c0_124 = arith.constant 0 : index
    %284 = vector.load %arg16[%c1_122, %c0_123, %c0_124] : memref<2x1x128xf32, #tpu.memory_space<vmem>>, vector<1x1x128xf32>
    %285 = vector.shape_cast %284 : vector<1x1x128xf32> to vector<1x128xf32>
    %cst_125 = arith.constant dense<0.000000e+00> : vector<32xf32>
    %286 = vector.multi_reduction <add>, %281, %cst_125 [1] : vector<32x128xf32> to vector<32xf32>
    %287 = vector.shape_cast %286 : vector<32xf32> to vector<32x1xf32>
    %cst_126 = arith.constant 1.280000e+02 : f32
    %288 = vector.broadcast %cst_126 : f32 to vector<32x1xf32>
    %289 = arith.divf %287, %288 : vector<32x1xf32>
    %290 = vector.broadcast %289 : vector<32x1xf32> to vector<32x128xf32>
    %291 = arith.subf %281, %290 : vector<32x128xf32>
    %292 = arith.mulf %291, %291 : vector<32x128xf32>
    %cst_127 = arith.constant dense<0.000000e+00> : vector<32xf32>
    %293 = vector.multi_reduction <add>, %292, %cst_127 [1] : vector<32x128xf32> to vector<32xf32>
    %294 = vector.shape_cast %293 : vector<32xf32> to vector<32x1xf32>
    %cst_128 = arith.constant 1.280000e+02 : f32
    %295 = vector.broadcast %cst_128 : f32 to vector<32x1xf32>
    %296 = arith.divf %294, %295 : vector<32x1xf32>
    %cst_129 = arith.constant 9.99999974E-6 : f32
    %297 = vector.broadcast %cst_129 : f32 to vector<32x1xf32>
    %298 = arith.addf %296, %297 : vector<32x1xf32>
    %299 = math.rsqrt %298 : vector<32x1xf32>
    %300 = vector.broadcast %299 : vector<32x1xf32> to vector<32x128xf32>
    %301 = arith.mulf %291, %300 : vector<32x128xf32>
    %302 = vector.broadcast %283 : vector<1x128xf32> to vector<32x128xf32>
    %303 = arith.mulf %301, %302 : vector<32x128xf32>
    %304 = vector.broadcast %285 : vector<1x128xf32> to vector<32x128xf32>
    %305 = arith.addf %303, %304 : vector<32x128xf32>
    %306 = vector.shape_cast %305 : vector<32x128xf32> to vector<2x16x128xf32>
    %c0_130 = arith.constant 0 : index
    %c0_131 = arith.constant 0 : index
    %c0_132 = arith.constant 0 : index
    %307 = vector.load %arg19[%c0_130, %c0_131, %c0_132] : memref<2x16x128xf32, #tpu.memory_space<vmem>>, vector<2x16x128xf32>
    tpu.vector_store %arg19[%c0_130, %c0_131, %c0_132], %306 {strides = array<i32>} : memref<2x16x128xf32, #tpu.memory_space<vmem>>, vector<2x16x128xf32>,
    %308 = vector.extract_strided_slice %306 {offsets = [0, 0, 0], sizes = [2, 1, 128], strides = [1, 1, 1]} : vector<2x16x128xf32> to vector<2x1x128xf32>
    %309 = vector.shape_cast %308 : vector<2x1x128xf32> to vector<2x128xf32>
    %310 = arith.truncf %309 : vector<2x128xf32> to vector<2x128xbf16>
    %c0_133 = arith.constant 0 : index
    %c0_134 = arith.constant 0 : index
    %311 = vector.load %arg17[%c0_133, %c0_134] : memref<128x128xbf16, #tpu.memory_space<vmem>>, vector<128x128xbf16>
    %cst_135 = arith.constant dense<0.000000e+00> : vector<2x128xf32>
    %312 = tpu.matmul %310, %311, %cst_135 {dimension_numbers = #tpu.dot_dimension_numbers<[1], [0], [0], [1], [0, 0, 1, 1], [], []>} : vector<2x128xbf16>, vector<128x128xbf16>, vector<2x128xf32> -> vector<2x128xf32>
    %c0_136 = arith.constant 0 : index
    %c0_137 = arith.constant 0 : index
    %313 = vector.load %arg18[%c0_136, %c0_137] : memref<1x128xf32, #tpu.memory_space<vmem>>, vector<1x128xf32>
    %314 = vector.broadcast %313 : vector<1x128xf32> to vector<2x128xf32>
    %315 = arith.addf %312, %314 : vector<2x128xf32>
    %316 = math.tanh %315 : vector<2x128xf32>
    %317 = vector.shape_cast %316 : vector<2x128xf32> to vector<2x1x128xf32>
    %c0_138 = arith.constant 0 : index
    %c0_139 = arith.constant 0 : index
    %c0_140 = arith.constant 0 : index
    %318 = vector.load %arg20[%c0_138, %c0_139, %c0_140] : memref<2x1x128xf32, #tpu.memory_space<vmem>>, vector<2x1x128xf32>
    tpu.vector_store %arg20[%c0_138, %c0_139, %c0_140], %317 {strides = array<i32>} : memref<2x1x128xf32, #tpu.memory_space<vmem>>, vector<2x1x128xf32>,
    return
  }
  func.func @transform_0(%arg0: i32) -> (i32, i32, i32) {
    %c0_i32 = arith.constant 0 : i32
    %c0_i32_0 = arith.constant 0 : i32
    %c0_i32_1 = arith.constant 0 : i32
    return %arg0, %c0_i32, %c0_i32_0 : i32, i32, i32
  }
  func.func @transform_1(%arg0: i32) -> (i32, i32, i32) {
    %c0_i32 = arith.constant 0 : i32
    %c0_i32_0 = arith.constant 0 : i32
    %c0_i32_1 = arith.constant 0 : i32
    return %arg0, %c0_i32, %c0_i32_0 : i32, i32, i32
  }
  func.func @transform_2(%arg0: i32) -> (i32, i32) {
    %c0_i32 = arith.constant 0 : i32
    %c0_i32_0 = arith.constant 0 : i32
    %c0_i32_1 = arith.constant 0 : i32
    return %c0_i32, %c0_i32_0 : i32, i32
  }
  func.func @transform_3(%arg0: i32) -> (i32, i32) {
    %c0_i32 = arith.constant 0 : i32
    %c0_i32_0 = arith.constant 0 : i32
    %c0_i32_1 = arith.constant 0 : i32
    return %c0_i32, %c0_i32_0 : i32, i32
  }
  func.func @transform_4(%arg0: i32) -> (i32, i32, i32) {
    %c0_i32 = arith.constant 0 : i32
    %c0_i32_0 = arith.constant 0 : i32
    %c0_i32_1 = arith.constant 0 : i32
    %c0_i32_2 = arith.constant 0 : i32
    return %c0_i32, %c0_i32_0, %c0_i32_1 : i32, i32, i32
  }
  func.func @transform_5(%arg0: i32) -> (i32, i32, i32) {
    %c0_i32 = arith.constant 0 : i32
    %c0_i32_0 = arith.constant 0 : i32
    %c0_i32_1 = arith.constant 0 : i32
    %c0_i32_2 = arith.constant 0 : i32
    return %c0_i32, %c0_i32_0, %c0_i32_1 : i32, i32, i32
  }
  func.func @transform_6(%arg0: i32) -> (i32, i32, i32) {
    %c0_i32 = arith.constant 0 : i32
    %c0_i32_0 = arith.constant 0 : i32
    %c0_i32_1 = arith.constant 0 : i32
    %c0_i32_2 = arith.constant 0 : i32
    return %c0_i32, %c0_i32_0, %c0_i32_1 : i32, i32, i32
  }
  func.func @transform_7(%arg0: i32) -> (i32, i32, i32) {
    %c0_i32 = arith.constant 0 : i32
    %c0_i32_0 = arith.constant 0 : i32
    %c0_i32_1 = arith.constant 0 : i32
    %c0_i32_2 = arith.constant 0 : i32
    return %c0_i32, %c0_i32_0, %c0_i32_1 : i32, i32, i32
  }
  func.func @transform_8(%arg0: i32) -> (i32, i32, i32) {
    %c0_i32 = arith.constant 0 : i32
    %c0_i32_0 = arith.constant 0 : i32
    %c0_i32_1 = arith.constant 0 : i32
    %c0_i32_2 = arith.constant 0 : i32
    return %c0_i32, %c0_i32_0, %c0_i32_1 : i32, i32, i32
  }
  func.func @transform_9(%arg0: i32) -> (i32, i32, i32) {
    %c0_i32 = arith.constant 0 : i32
    %c0_i32_0 = arith.constant 0 : i32
    %c0_i32_1 = arith.constant 0 : i32
    %c0_i32_2 = arith.constant 0 : i32
    return %c0_i32, %c0_i32_0, %c0_i32_1 : i32, i32, i32
  }
  func.func @transform_10(%arg0: i32) -> (i32, i32, i32) {
    %c0_i32 = arith.constant 0 : i32
    %c0_i32_0 = arith.constant 0 : i32
    %c0_i32_1 = arith.constant 0 : i32
    %c0_i32_2 = arith.constant 0 : i32
    return %c0_i32, %c0_i32_0, %c0_i32_1 : i32, i32, i32
  }
  func.func @transform_11(%arg0: i32) -> (i32, i32, i32) {
    %c0_i32 = arith.constant 0 : i32
    %c0_i32_0 = arith.constant 0 : i32
    %c0_i32_1 = arith.constant 0 : i32
    %c0_i32_2 = arith.constant 0 : i32
    return %c0_i32, %c0_i32_0, %c0_i32_1 : i32, i32, i32
  }
  func.func @transform_12(%arg0: i32) -> (i32, i32, i32) {
    %c0_i32 = arith.constant 0 : i32
    %c0_i32_0 = arith.constant 0 : i32
    %c0_i32_1 = arith.constant 0 : i32
    %c0_i32_2 = arith.constant 0 : i32
    return %c0_i32, %c0_i32_0, %c0_i32_1 : i32, i32, i32
  }
  func.func @transform_13(%arg0: i32) -> (i32, i32, i32) {
    %c0_i32 = arith.constant 0 : i32
    %c0_i32_0 = arith.constant 0 : i32
    %c0_i32_1 = arith.constant 0 : i32
    %c0_i32_2 = arith.constant 0 : i32
    return %c0_i32, %c0_i32_0, %c0_i32_1 : i32, i32, i32
  }
  func.func @transform_14(%arg0: i32) -> (i32, i32, i32) {
    %c0_i32 = arith.constant 0 : i32
    %c0_i32_0 = arith.constant 0 : i32
    %c0_i32_1 = arith.constant 0 : i32
    %c0_i32_2 = arith.constant 0 : i32
    return %c0_i32, %c0_i32_0, %c0_i32_1 : i32, i32, i32
  }
  func.func @transform_15(%arg0: i32) -> (i32, i32, i32) {
    %c0_i32 = arith.constant 0 : i32
    %c0_i32_0 = arith.constant 0 : i32
    %c0_i32_1 = arith.constant 0 : i32
    %c0_i32_2 = arith.constant 0 : i32
    return %c0_i32, %c0_i32_0, %c0_i32_1 : i32, i32, i32
  }
  func.func @transform_16(%arg0: i32) -> (i32, i32) {
    %c0_i32 = arith.constant 0 : i32
    %c0_i32_0 = arith.constant 0 : i32
    %c0_i32_1 = arith.constant 0 : i32
    return %c0_i32, %c0_i32_0 : i32, i32
  }
  func.func @transform_17(%arg0: i32) -> (i32, i32) {
    %c0_i32 = arith.constant 0 : i32
    %c0_i32_0 = arith.constant 0 : i32
    %c0_i32_1 = arith.constant 0 : i32
    return %c0_i32, %c0_i32_0 : i32, i32
  }
  func.func @transform_18(%arg0: i32) -> (i32, i32, i32) {
    %c0_i32 = arith.constant 0 : i32
    %c0_i32_0 = arith.constant 0 : i32
    %c0_i32_1 = arith.constant 0 : i32
    return %arg0, %c0_i32, %c0_i32_0 : i32, i32, i32
  }
  func.func @transform_19(%arg0: i32) -> (i32, i32, i32) {
    %c0_i32 = arith.constant 0 : i32
    %c0_i32_0 = arith.constant 0 : i32
    %c0_i32_1 = arith.constant 0 : i32
    return %arg0, %c0_i32, %c0_i32_0 : i32, i32, i32
  }
}

</mosaic_0001>

<llo_original>
// kernel: _encode.1
$region0: #{_encode.1}
  #allocation0 [shape = 'u32[]', space=smem, size = 0x4, offset = 0x4, fixed_abs, tag = 'smem constant byte address 0x4 - core index']
  #allocation1 [shape = 'u32[144,128]{1,0:T(1,128)}', space=vmem, size = 0x12000, scoped, tag = 'internal scratch']
  %s0 = inlined_call_operand.vmem [shape: f32[2,16,128], index: 0, kind: input, shape index: {}]
  %s1 = inlined_call_operand.vmem [shape: f32[2,1,16], index: 1, kind: input, shape index: {}]
  %s2 = inlined_call_operand.vmem [shape: f32[1,128], index: 2, kind: input, shape index: {}]
  %s3 = inlined_call_operand.vmem [shape: f32[1,128], index: 3, kind: input, shape index: {}]
  %s4 = inlined_call_operand.vmem [shape: bf16[2,128,384], index: 4, kind: input, shape index: {}]
  %s5 = inlined_call_operand.vmem [shape: f32[2,1,384], index: 5, kind: input, shape index: {}]
  %s6 = inlined_call_operand.hbm [shape: bf16[2,128,128], index: 6, kind: input, shape index: {}]
  %s7 = inlined_call_operand.vmem [shape: f32[2,1,128], index: 7, kind: input, shape index: {}]
  %s8 = inlined_call_operand.vmem [shape: f32[2,1,128], index: 8, kind: input, shape index: {}]
  %s9 = inlined_call_operand.vmem [shape: f32[2,1,128], index: 9, kind: input, shape index: {}]
  %s10 = inlined_call_operand.vmem [shape: bf16[2,128,256], index: 10, kind: input, shape index: {}]
  %s11 = inlined_call_operand.vmem [shape: f32[2,1,256], index: 11, kind: input, shape index: {}]
  %s12 = inlined_call_operand.hbm [shape: bf16[2,256,128], index: 12, kind: input, shape index: {}]
  %s13 = inlined_call_operand.vmem [shape: f32[2,1,128], index: 13, kind: input, shape index: {}]
  %s14 = inlined_call_operand.vmem [shape: f32[2,1,128], index: 14, kind: input, shape index: {}]
  %s15 = inlined_call_operand.vmem [shape: f32[2,1,128], index: 15, kind: input, shape index: {}]
  %s16 = inlined_call_operand.vmem [shape: bf16[128,128], index: 16, kind: input, shape index: {}]
  %s17 = inlined_call_operand.hbm [shape: f32[1,128], index: 17, kind: input, shape index: {}]
  %s18 = inlined_call_operand.hbm [shape: f32[2,16,128], index: 18, kind: output, shape index: {0}]
  %s19 = inlined_call_operand.hbm [shape: f32[2,1,128], index: 19, kind: output, shape index: {1}]
  %20 = xla_tuple %s18, %s19
  %s21 = sld [smem:[#allocation0]]
  $region102: #{_encode.1} parent=0
    _
  %s23 = ssub.s32 1, %s21
  %s24 = scalar_select 0, %s23, %s21
  $region1: #{_encode.1} parent=0
    #allocation2 [shape = 'u8[65536]{0}', space=vmem, size = 0x10000, scoped, tag = 'input window, operand 6, single buffered']
    #allocation3 [shape = 's32[1]{0}', space=sflag, size = 0x4, scoped, tag = 'scoped memory for _encode.1']
    #allocation4 [shape = 's32[1]{0}', space=sflag, size = 0x4, scoped, tag = 'scoped memory for _encode.1']
    #allocation5 [shape = 'u8[131072]{0}', space=vmem, size = 0x20000, scoped, tag = 'input window, operand 12, single buffered']
    #allocation6 [shape = 's32[1]{0}', space=sflag, size = 0x4, scoped, tag = 'scoped memory for _encode.1']
    #allocation7 [shape = 'u8[512]{0}', space=vmem, size = 0x400, scoped, tag = 'input window, operand 17, single buffered']
    #allocation8 [shape = 'u8[16384]{0}', space=vmem, size = 0x4000, scoped, tag = 'output window, operand 0, single buffered']
    #allocation9 [shape = 'u8[1024]{0}', space=vmem, size = 0x400, scoped, tag = 'output window, operand 1, single buffered']
    #allocation10 [shape = 's32[1]{0}', space=sflag, size = 0x4, scoped, tag = 'scoped memory for _encode.1']
    %25 = vsyncpa [#allocation3], 0
    %26 = vsyncpa [#allocation6], 0
    %27 = vsyncpa [#allocation4], 0
    %28 = vsyncpa [#allocation10], 0
    // Predicated region
    $region2: #{_encode.1} parent=1 // pred_check
      _
    $region3: #{_encode.1} parent=1 // pred_check_branch
      %30 = sbr.rel (0) target = $region5
    $region4: #{_encode.1} parent=1 // pred_region
      _
    $region5: #{_encode.1} parent=1 // pred_fallthru
      _
    // Predicated region
    $region6: #{_encode.1} parent=1 // pred_check
      _
    $region7: #{_encode.1} parent=1 // pred_check_branch
      %32 = sbr.rel (0) target = $region9
    $region8: #{_encode.1} parent=1 // pred_region
      _
    $region9: #{_encode.1} parent=1 // pred_fallthru
      _
    // Predicated region
    $region10: #{_encode.1} parent=1 // pred_check
      _
    $region11: #{_encode.1} parent=1 // pred_check_branch
      %34 = sbr.rel (0) target = $region13
    $region12: #{_encode.1} parent=1 // pred_region
      _
    $region13: #{_encode.1} parent=1 // pred_fallthru
      _
    // Predicated region
    $region14: #{_encode.1} parent=1 // pred_check
      _
    $region15: #{_encode.1} parent=1 // pred_check_branch
      %36 = sbr.rel (0) target = $region17
    $region16: #{_encode.1} parent=1 // pred_region
      _
    $region17: #{_encode.1} parent=1 // pred_fallthru
      _
    // Predicated region
    $region18: #{_encode.1} parent=1 // pred_check
      _
    $region19: #{_encode.1} parent=1 // pred_check_branch
      %38 = sbr.rel (0) target = $region21
    $region20: #{_encode.1} parent=1 // pred_region
      _
    $region21: #{_encode.1} parent=1 // pred_fallthru
      _
    // Predicated region
    $region22: #{_encode.1} parent=1 // pred_check
      _
    $region23: #{_encode.1} parent=1 // pred_check_branch
      %40 = sbr.rel (0) target = $region25
    $region24: #{_encode.1} parent=1 // pred_region
      _
    $region25: #{_encode.1} parent=1 // pred_fallthru
      _
    // Predicated region
    $region26: #{_encode.1} parent=1 // pred_check
      _
    $region27: #{_encode.1} parent=1 // pred_check_branch
      %42 = sbr.rel (0) target = $region29
    $region28: #{_encode.1} parent=1 // pred_region
      %s44 = ssub.s32 2048, 2048
      %45 = vsyncadd [#allocation3], %s44
      %s46 = sshll.u32 [#allocation2], 4
      %s47 = int_to_ptr.vmem [resolvable:$true] %s46
      %52 = dma.hbm_to_vmem [thread:$0]  %s6, 2048, %s47, [#allocation3], 64, 64, 4
    $region29: #{_encode.1} parent=1 // pred_fallthru
      _
    // Predicated region
    $region30: #{_encode.1} parent=1 // pred_check
      _
    $region31: #{_encode.1} parent=1 // pred_check_branch
      %54 = sbr.rel (0) target = $region33
    $region32: #{_encode.1} parent=1 // pred_region
      _
    $region33: #{_encode.1} parent=1 // pred_fallthru
      _
    // Predicated region
    $region34: #{_encode.1} parent=1 // pred_check
      _
    $region35: #{_encode.1} parent=1 // pred_check_branch
      %56 = sbr.rel (0) target = $region37
    $region36: #{_encode.1} parent=1 // pred_region
      _
    $region37: #{_encode.1} parent=1 // pred_fallthru
      _
    // Predicated region
    $region38: #{_encode.1} parent=1 // pred_check
      _
    $region39: #{_encode.1} parent=1 // pred_check_branch
      %58 = sbr.rel (0) target = $region41
    $region40: #{_encode.1} parent=1 // pred_region
      _
    $region41: #{_encode.1} parent=1 // pred_fallthru
      _
    // Predicated region
    $region42: #{_encode.1} parent=1 // pred_check
      _
    $region43: #{_encode.1} parent=1 // pred_check_branch
      %60 = sbr.rel (0) target = $region45
    $region44: #{_encode.1} parent=1 // pred_region
      _
    $region45: #{_encode.1} parent=1 // pred_fallthru
      _
    // Predicated region
    $region46: #{_encode.1} parent=1 // pred_check
      _
    $region47: #{_encode.1} parent=1 // pred_check_branch
      %62 = sbr.rel (0) target = $region49
    $region48: #{_encode.1} parent=1 // pred_region
      _
    $region49: #{_encode.1} parent=1 // pred_fallthru
      _
    // Predicated region
    $region50: #{_encode.1} parent=1 // pred_check
      _
    $region51: #{_encode.1} parent=1 // pred_check_branch
      %64 = sbr.rel (0) target = $region53
    $region52: #{_encode.1} parent=1 // pred_region
      %s66 = ssub.s32 4096, 4096
      %67 = vsyncadd [#allocation6], %s66
      %s68 = sshll.u32 [#allocation5], 4
      %s69 = int_to_ptr.vmem [resolvable:$true] %s68
      %74 = dma.hbm_to_vmem [thread:$0]  %s12, 4096, %s69, [#allocation6], 64, 64, 4
    $region53: #{_encode.1} parent=1 // pred_fallthru
      _
    // Predicated region
    $region54: #{_encode.1} parent=1 // pred_check
      _
    $region55: #{_encode.1} parent=1 // pred_check_branch
      %76 = sbr.rel (0) target = $region57
    $region56: #{_encode.1} parent=1 // pred_region
      _
    $region57: #{_encode.1} parent=1 // pred_fallthru
      _
    // Predicated region
    $region58: #{_encode.1} parent=1 // pred_check
      _
    $region59: #{_encode.1} parent=1 // pred_check_branch
      %78 = sbr.rel (0) target = $region61
    $region60: #{_encode.1} parent=1 // pred_region
      _
    $region61: #{_encode.1} parent=1 // pred_fallthru
      _
    // Predicated region
    $region62: #{_encode.1} parent=1 // pred_check
      _
    $region63: #{_encode.1} parent=1 // pred_check_branch
      %80 = sbr.rel (0) target = $region65
    $region64: #{_encode.1} parent=1 // pred_region
      _
    $region65: #{_encode.1} parent=1 // pred_fallthru
      _
    // Predicated region
    $region66: #{_encode.1} parent=1 // pred_check
      _
    $region67: #{_encode.1} parent=1 // pred_check_branch
      %82 = sbr.rel (0) target = $region69
    $region68: #{_encode.1} parent=1 // pred_region
      _
    $region69: #{_encode.1} parent=1 // pred_fallthru
      _
    // Predicated region
    $region70: #{_encode.1} parent=1 // pred_check
      _
    $region71: #{_encode.1} parent=1 // pred_check_branch
      %84 = sbr.rel (0) target = $region73
    $region72: #{_encode.1} parent=1 // pred_region
      %s86 = ssub.s32 16, 16
      %87 = vsyncadd [#allocation6], %s86
      %s89 = sshll.u32 [#allocation7], 4
      %s90 = int_to_ptr.vmem [resolvable:$true] %s89
      %92 = dma.hbm_to_vmem [thread:$0]  %s17, 16, %s90, [#allocation6]
    $region73: #{_encode.1} parent=1 // pred_fallthru
      _
    // Predicated region
    $region74: #{_encode.1} parent=1 // pred_check
      _
    $region75: #{_encode.1} parent=1 // pred_check_branch
      %94 = sbr.rel (0) target = $region77
    $region76: #{_encode.1} parent=1 // pred_region
      %95 = dma.done [#allocation3], 2048
    $region77: #{_encode.1} parent=1 // pred_fallthru
      _
    // Predicated region
    $region78: #{_encode.1} parent=1 // pred_check
      _
    $region79: #{_encode.1} parent=1 // pred_check_branch
      %97 = sbr.rel (0) target = $region81
    $region80: #{_encode.1} parent=1 // pred_region
      %98 = dma.done [#allocation6], 4096
    $region81: #{_encode.1} parent=1 // pred_fallthru
      _
    // Predicated region
    $region82: #{_encode.1} parent=1 // pred_check
      _
    $region83: #{_encode.1} parent=1 // pred_check_branch
      %100 = sbr.rel (0) target = $region85
    $region84: #{_encode.1} parent=1 // pred_region
      %101 = dma.done [#allocation6], 16
    $region85: #{_encode.1} parent=1 // pred_fallthru
      _
    %v103 = vld [vmem:[%s0] sm:$0xff]
    %v104 = vld [vmem:[%s0 + $0x8] sm:$0xff]
    %v105 = vld [vmem:[%s0 + $0x10] sm:$0xff]
    %v106 = vld [vmem:[%s0 + $0x18] sm:$0xff]
    %v107 = vld [vmem:[%s2] sm:$0x1]
    %v108 = vld [vmem:[%s3] sm:$0x1]
    %109 = vadd.xlane.f32.xlu0 %v103
    %v110 = vpop.xlane.xlu0 %109
    %111 = vadd.xlane.f32.xlu0 %v104
    %v112 = vpop.xlane.xlu0 %111
    %113 = vadd.xlane.f32.xlu0 %v105
    %v114 = vpop.xlane.xlu0 %113
    %115 = vadd.xlane.f32.xlu0 %v106
    %v116 = vpop.xlane.xlu0 %115
    %v117 = vrcp.pop 128.0
    %v118 = vmul.f32 %v110, %v117
    %v119 = vmul.f32 %v112, %v117
    %v120 = vmul.f32 %v114, %v117
    %v121 = vmul.f32 %v116, %v117
    %v122 = vsub.f32 %v103, %v118
    %v123 = vsub.f32 %v104, %v119
    %v124 = vsub.f32 %v105, %v120
    %v125 = vsub.f32 %v106, %v121
    %v126 = vmul.f32 %v122, %v122
    %v127 = vmul.f32 %v123, %v123
    %v128 = vmul.f32 %v124, %v124
    %v129 = vmul.f32 %v125, %v125
    %130 = vadd.xlane.f32.xlu0 %v126
    %v131 = vpop.xlane.xlu0 %130
    %132 = vadd.xlane.f32.xlu0 %v127
    %v133 = vpop.xlane.xlu0 %132
    %134 = vadd.xlane.f32.xlu0 %v128
    %v135 = vpop.xlane.xlu0 %134
    %136 = vadd.xlane.f32.xlu0 %v129
    %v137 = vpop.xlane.xlu0 %136
    %v138 = vmul.f32 %v131, %v117
    %v139 = vmul.f32 %v133, %v117
    %v140 = vmul.f32 %v135, %v117
    %v141 = vmul.f32 %v137, %v117
    %v142 = vadd.f32 %v138, 1e-05
    %v143 = vadd.f32 %v139, 1e-05
    %v144 = vadd.f32 %v140, 1e-05
    %v145 = vadd.f32 %v141, 1e-05
    %v146 = vrsqrt.pop %v142
    %v147 = vrsqrt.pop %v143
    %v148 = vrsqrt.pop %v144
    %v149 = vrsqrt.pop %v145
    %v150 = vmul.f32 %v122, %v146
    %v151 = vmul.f32 %v123, %v147
    %v152 = vmul.f32 %v124, %v148
    %v153 = vmul.f32 %v125, %v149
    %v155 = vlaneseq
    %v156 = vshrl.u32 %v155, 7
    %v157 = vsub.s32 0, %v156
    %v158 = vrot.slane %v107, %v157
    %v160 = vmul.f32 %v150, %v158
    %v161 = vmul.f32 %v151, %v158
    %v162 = vmul.f32 %v152, %v158
    %v163 = vmul.f32 %v153, %v158
    %v165 = vlaneseq
    %v166 = vshrl.u32 %v165, 7
    %v167 = vsub.s32 0, %v166
    %v168 = vrot.slane %v108, %v167
    %v170 = vadd.f32 %v160, %v168
    %v171 = vadd.f32 %v161, %v168
    %v172 = vadd.f32 %v162, %v168
    %v173 = vadd.f32 %v163, %v168
    %v174 = vld [vmem:[%s1] sm:$0x1]
    %v175 = vld [vmem:[%s1 + $0x1] sm:$0x1]
    %v178 = vlaneseq
    %v179 = vshrl.u32 %v178, 7
    %v180 = vsub.s32 0, %v179
    %v181 = vrot.slane %v174, %v180
    %v182 = vlaneseq
    %v183 = vshrl.u32 %v182, 7
    %v184 = vsub.s32 0, %v183
    %v185 = vrot.slane %v175, %v184
    %v188 = vpack.c.bf16 %v171, %v170
    %v189 = vpack.c.bf16 %v173, %v172
    %v190 = vld [vmem:[%s4] sm:$0xff]
    %v191 = vld [vmem:[%s4 + $0x8] sm:$0xf]
    %v192 = vld [vmem:[%s4 + $0xc] sm:$0xff]
    %v193 = vld [vmem:[%s4 + $0x14] sm:$0xf]
    %v194 = vld [vmem:[%s4 + $0x18] sm:$0xff]
    %v195 = vld [vmem:[%s4 + $0x20] sm:$0xf]
    %v196 = vld [vmem:[%s4 + $0x24] sm:$0xff]
    %v197 = vld [vmem:[%s4 + $0x2c] sm:$0xf]
    %v198 = vld [vmem:[%s4 + $0x30] sm:$0xff]
    %v199 = vld [vmem:[%s4 + $0x38] sm:$0xf]
    %v200 = vld [vmem:[%s4 + $0x3c] sm:$0xff]
    %v201 = vld [vmem:[%s4 + $0x44] sm:$0xf]
    %v202 = vld [vmem:[%s4 + $0x48] sm:$0xff]
    %v203 = vld [vmem:[%s4 + $0x50] sm:$0xf]
    %v204 = vld [vmem:[%s4 + $0x54] sm:$0xff]
    %v205 = vld [vmem:[%s4 + $0x5c] sm:$0xf]
    %v206 = vld [vmem:[%s4 + $0x60] sm:$0xff]
    %v207 = vld [vmem:[%s4 + $0x68] sm:$0xf]
    %v208 = vld [vmem:[%s4 + $0x6c] sm:$0xff]
    %v209 = vld [vmem:[%s4 + $0x74] sm:$0xf]
    %v210 = vld [vmem:[%s4 + $0x78] sm:$0xff]
    %v211 = vld [vmem:[%s4 + $0x80] sm:$0xf]
    %v212 = vld [vmem:[%s4 + $0x84] sm:$0xff]
    %v213 = vld [vmem:[%s4 + $0x8c] sm:$0xf]
    %v214 = vld [vmem:[%s4 + $0x90] sm:$0xff]
    %v215 = vld [vmem:[%s4 + $0x98] sm:$0xf]
    %v216 = vld [vmem:[%s4 + $0x9c] sm:$0xff]
    %v217 = vld [vmem:[%s4 + $0xa4] sm:$0xf]
    %v218 = vld [vmem:[%s4 + $0xa8] sm:$0xff]
    %v219 = vld [vmem:[%s4 + $0xb0] sm:$0xf]
    %v220 = vld [vmem:[%s4 + $0xb4] sm:$0xff]
    %v221 = vld [vmem:[%s4 + $0xbc] sm:$0xf]
    %v222 = vld [vmem:[%s5] sm:$0x7]
    %v224 = vlaneseq
    %v225 = vshrl.u32 %v224, 7
    %v226 = vsub.s32 0, %v225
    %v227 = vrot.slane %v222, %v226
    %v228 = vlaneseq
    %v229 = vshrl.u32 %v228, 7
    %v230 = vsub.s32 1, %v229
    %v231 = vrot.slane %v222, %v230
    %v232 = vlaneseq
    %v233 = vshrl.u32 %v232, 7
    %v234 = vsub.s32 2, %v233
    %v235 = vrot.slane %v222, %v234
    %v271 = vunpack.c.l.b16 %v190
    %v272 = vunpack.c.h.b16 %v190
    %v273 = vunpack.c.l.b16 %v191
    %v274 = vunpack.c.l.b16 %v192
    %v275 = vunpack.c.h.b16 %v192
    %v276 = vunpack.c.l.b16 %v193
    %v277 = vunpack.c.l.b16 %v194
    %v278 = vunpack.c.h.b16 %v194
    %v279 = vunpack.c.l.b16 %v195
    %v280 = vunpack.c.l.b16 %v196
    %v281 = vunpack.c.h.b16 %v196
    %v282 = vunpack.c.l.b16 %v197
    %v283 = vunpack.c.l.b16 %v198
    %v284 = vunpack.c.h.b16 %v198
    %v285 = vunpack.c.l.b16 %v199
    %v286 = vunpack.c.l.b16 %v200
    %v287 = vunpack.c.h.b16 %v200
    %v288 = vunpack.c.l.b16 %v201
    %v289 = vunpack.c.l.b16 %v202
    %v290 = vunpack.c.h.b16 %v202
    %v291 = vunpack.c.l.b16 %v203
    %v292 = vunpack.c.l.b16 %v204
    %v293 = vunpack.c.h.b16 %v204
    %v294 = vunpack.c.l.b16 %v205
    %v295 = vunpack.c.l.b16 %v206
    %v296 = vunpack.c.h.b16 %v206
    %v297 = vunpack.c.l.b16 %v207
    %v298 = vunpack.c.l.b16 %v208
    %v299 = vunpack.c.h.b16 %v208
    %v300 = vunpack.c.l.b16 %v209
    %v301 = vunpack.c.l.b16 %v210
    %v302 = vunpack.c.h.b16 %v210
    %v303 = vunpack.c.l.b16 %v211
    %v304 = vunpack.c.l.b16 %v212
    %v305 = vunpack.c.h.b16 %v212
    %v306 = vunpack.c.l.b16 %v213
    %v307 = vunpack.c.l.b16 %v214
    %v308 = vunpack.c.h.b16 %v214
    %v309 = vunpack.c.l.b16 %v215
    %v310 = vunpack.c.l.b16 %v216
    %v311 = vunpack.c.h.b16 %v216
    %v312 = vunpack.c.l.b16 %v217
    %v313 = vunpack.c.l.b16 %v218
    %v314 = vunpack.c.h.b16 %v218
    %v315 = vunpack.c.l.b16 %v219
    %v316 = vunpack.c.l.b16 %v220
    %v317 = vunpack.c.h.b16 %v220
    %v318 = vunpack.c.l.b16 %v221
    %v319 = vpack.c.b16 %v274, %v271
    %v320 = vpack.c.b16 %v275, %v272
    %v321 = vpack.c.b16 %v276, %v273
    %v322 = vpack.c.b16 %v280, %v277
    %v323 = vpack.c.b16 %v281, %v278
    %v324 = vpack.c.b16 %v282, %v279
    %v325 = vpack.c.b16 %v286, %v283
    %v326 = vpack.c.b16 %v287, %v284
    %v327 = vpack.c.b16 %v288, %v285
    %v328 = vpack.c.b16 %v292, %v289
    %v329 = vpack.c.b16 %v293, %v290
    %v330 = vpack.c.b16 %v294, %v291
    %v331 = vpack.c.b16 %v298, %v295
    %v332 = vpack.c.b16 %v299, %v296
    %v333 = vpack.c.b16 %v300, %v297
    %v334 = vpack.c.b16 %v304, %v301
    %v335 = vpack.c.b16 %v305, %v302
    %v336 = vpack.c.b16 %v306, %v303
    %v337 = vpack.c.b16 %v310, %v307
    %v338 = vpack.c.b16 %v311, %v308
    %v339 = vpack.c.b16 %v312, %v309
    %v340 = vpack.c.b16 %v316, %v313
    %v341 = vpack.c.b16 %v317, %v314
    %v342 = vpack.c.b16 %v318, %v315
    %367 = vmatprep.subr.bf16.mxu0 %v341
    %368 = vmatpush1.bf16.msra.mxu0 %v340
    %369 = vmatprep.subr.bf16.mxu0 %v338
    %370 = vmatpush1.bf16.msra.mxu0 %v337
    %371 = vmatprep.subr.bf16.mxu0 %v335
    %372 = vmatpush1.bf16.msra.mxu0 %v334
    %373 = vmatprep.subr.bf16.mxu0 %v332
    %374 = vmatpush1.bf16.msra.mxu0 %v331
    %375 = vmatprep.subr.bf16.mxu0 %v329
    %376 = vmatpush1.bf16.msra.mxu0 %v328
    %377 = vmatprep.subr.bf16.mxu0 %v326
    %378 = vmatpush1.bf16.msra.mxu0 %v325
    %379 = vmatprep.subr.bf16.mxu0 %v323
    %380 = vmatpush1.bf16.msra.mxu0 %v322
    %381 = vmatprep.subr.bf16.mxu0 %v320
    %382 = vmatpush1.bf16.msra.mxu0 %v319
    %383 = vmatprep.subr.bf16.mxu0 0
    %384 = vmatpush2.bf16.msra.mxu0 0
    %385 = vmatprep.subr.bf16.mxu0 0
    %386 = vmatpush2.bf16.msra.mxu0 0
    %387 = vmatprep.subr.bf16.mxu0 0
    %388 = vmatpush2.bf16.msra.mxu0 0
    %389 = vmatprep.subr.bf16.mxu0 0
    %390 = vmatpush2.bf16.msra.mxu0 0
    %391 = vmatprep.subr.bf16.mxu0 0
    %392 = vmatpush2.bf16.msra.mxu0 0
    %393 = vmatprep.subr.bf16.mxu0 0
    %394 = vmatpush2.bf16.msra.mxu0 0
    %395 = vmatprep.subr.bf16.mxu0 0
    %396 = vmatpush2.bf16.msra.mxu0 0
    %397 = vmatprep.subr.bf16.mxu0 0
    %398 = vmatpush2.bf16.msra.mxu0 0
    %399 = vmatprep.mubr.bf16.mxu0 0
    %400 = vmatmul.mubr.bf16.gmra.mxu0 %v188
    %v401 = vpop.f32.mrf.mxu0
    %v402 = vadd.f32 %v227, %v401
    %v403 = vpop.f32.mrf.mxu0
    %v404 = vadd.f32 %v231, %v403
    %v405 = vpop.f32.mrf.mxu0
    %v406 = vadd.f32 %v227, %v405
    %v407 = vpop.f32.mrf.mxu0
    %v408 = vadd.f32 %v231, %v407
    %409 = vmatprep.mubr.bf16.mxu0 0
    %410 = vmatmul.mubr.bf16.gmra.mxu0 %v189
    %v411 = vpop.f32.mrf.mxu0
    %v412 = vadd.f32 %v227, %v411
    %v413 = vpop.f32.mrf.mxu0
    %v414 = vadd.f32 %v231, %v413
    %v415 = vpop.f32.mrf.mxu0
    %v416 = vadd.f32 %v227, %v415
    %v417 = vpop.f32.mrf.mxu0
    %v418 = vadd.f32 %v231, %v417
    %419 = vdwg.mxu0
    %420 = vmatprep.subr.bf16.mxu0 0
    %421 = vmatpush1.bf16.msra.mxu0 %v342
    %422 = vmatprep.subr.bf16.mxu0 0
    %423 = vmatpush1.bf16.msra.mxu0 %v339
    %424 = vmatprep.subr.bf16.mxu0 0
    %425 = vmatpush1.bf16.msra.mxu0 %v336
    %426 = vmatprep.subr.bf16.mxu0 0
    %427 = vmatpush1.bf16.msra.mxu0 %v333
    %428 = vmatprep.subr.bf16.mxu0 0
    %429 = vmatpush1.bf16.msra.mxu0 %v330
    %430 = vmatprep.subr.bf16.mxu0 0
    %431 = vmatpush1.bf16.msra.mxu0 %v327
    %432 = vmatprep.subr.bf16.mxu0 0
    %433 = vmatpush1.bf16.msra.mxu0 %v324
    %434 = vmatprep.subr.bf16.mxu0 0
    %435 = vmatpush1.bf16.msra.mxu0 %v321
    %436 = vmatprep.subr.bf16.mxu0 0
    %437 = vmatpush2.bf16.msra.mxu0 0
    %438 = vmatprep.subr.bf16.mxu0 0
    %439 = vmatpush2.bf16.msra.mxu0 0
    %440 = vmatprep.subr.bf16.mxu0 0
    %441 = vmatpush2.bf16.msra.mxu0 0
    %442 = vmatprep.subr.bf16.mxu0 0
    %443 = vmatpush2.bf16.msra.mxu0 0
    %444 = vmatprep.subr.bf16.mxu0 0
    %445 = vmatpush2.bf16.msra.mxu0 0
    %446 = vmatprep.subr.bf16.mxu0 0
    %447 = vmatpush2.bf16.msra.mxu0 0
    %448 = vmatprep.subr.bf16.mxu0 0
    %449 = vmatpush2.bf16.msra.mxu0 0
    %450 = vmatprep.subr.bf16.mxu0 0
    %451 = vmatpush2.bf16.msra.mxu0 0
    %452 = vmatprep.mubr.bf16.mxu0 0
    %453 = vmatmul.mubr.bf16.gmra.mxu0 %v188
    %v454 = vpop.f32.mrf.mxu0
    %v455 = vadd.f32 %v235, %v454
    %v456 = vpop.f32.mrf.mxu0
    %v457 = vpop.f32.mrf.mxu0
    %v458 = vadd.f32 %v235, %v457
    %v459 = vpop.f32.mrf.mxu0
    %460 = vmatprep.mubr.bf16.mxu0 0
    %461 = vmatmul.mubr.bf16.gmra.mxu0 %v189
    %v462 = vpop.f32.mrf.mxu0
    %v463 = vadd.f32 %v235, %v462
    %v464 = vpop.f32.mrf.mxu0
    %v465 = vpop.f32.mrf.mxu0
    %v466 = vadd.f32 %v235, %v465
    %v467 = vpop.f32.mrf.mxu0
    %468 = vdwg.mxu0
    %473 = vrot.lane.b32.xlu0 %v402, 64
    %v474 = vpop.permute.xlu0 %473
    %475 = vrot.lane.b32.xlu0 %v406, 64
    %v476 = vpop.permute.xlu0 %475
    %477 = vrot.lane.b32.xlu0 %v412, 64
    %v478 = vpop.permute.xlu0 %477
    %479 = vrot.lane.b32.xlu0 %v416, 64
    %v480 = vpop.permute.xlu0 %479
    %v485 = vpack.c.bf16 %v406, %v402
    %v486 = vpack.c.bf16 %v416, %v412
    %v487 = vpack.c.bf16 %v476, %v474
    %v488 = vpack.c.bf16 %v480, %v478
    %493 = vrot.lane.b32.xlu0 %v404, 64
    %v494 = vpop.permute.xlu0 %493
    %495 = vrot.lane.b32.xlu0 %v408, 64
    %v496 = vpop.permute.xlu0 %495
    %497 = vrot.lane.b32.xlu0 %v414, 64
    %v498 = vpop.permute.xlu0 %497
    %499 = vrot.lane.b32.xlu0 %v418, 64
    %v500 = vpop.permute.xlu0 %499
    %v505 = vpack.c.bf16 %v408, %v404
    %v506 = vpack.c.bf16 %v418, %v414
    %v507 = vpack.c.bf16 %v496, %v494
    %v508 = vpack.c.bf16 %v500, %v498
    %513 = vrot.lane.b32.xlu0 %v455, 64
    %v514 = vpop.permute.xlu0 %513
    %515 = vrot.lane.b32.xlu0 %v458, 64
    %v516 = vpop.permute.xlu0 %515
    %517 = vrot.lane.b32.xlu0 %v463, 64
    %v518 = vpop.permute.xlu0 %517
    %519 = vrot.lane.b32.xlu0 %v466, 64
    %v520 = vpop.permute.xlu0 %519
    %v525 = vpack.c.bf16 %v458, %v455
    %v526 = vpack.c.bf16 %v466, %v463
    %v527 = vpack.c.bf16 %v516, %v514
    %v528 = vpack.c.bf16 %v520, %v518
    %vm529 = vcmask 523264
    %v531 = vsel %vm529, %v485, 0
    %v534 = vsel %vm529, %v505, 0
    %536 = vmatprep.subr.bf16.mxu0 0
    %537 = vmatpush1.bf16.xpose.msra.mxu0 0
    %538 = vmatprep.subr.bf16.mxu0 0
    %539 = vmatpush1.bf16.xpose.msra.mxu0 0
    %540 = vmatprep.subr.bf16.mxu0 0
    %541 = vmatpush1.bf16.xpose.msra.mxu0 0
    %542 = vmatprep.subr.bf16.mxu0 0
    %543 = vmatpush1.bf16.xpose.msra.mxu0 0
    %544 = vmatprep.subr.bf16.mxu0 0
    %545 = vmatpush1.bf16.xpose.msra.mxu0 0
    %546 = vmatprep.subr.bf16.mxu0 0
    %547 = vmatpush1.bf16.xpose.msra.mxu0 0
    %548 = vmatprep.subr.bf16.mxu0 0
    %549 = vmatpush1.bf16.xpose.msra.mxu0 0
    %550 = vmatprep.subr.bf16.mxu0 0
    %551 = vmatpush1.bf16.xpose.msra.mxu0 %v534
    %552 = vmatprep.subr.bf16.mxu0 0
    %553 = vmatpush2.bf16.xpose.msra.mxu0 0
    %554 = vmatprep.subr.bf16.mxu0 0
    %555 = vmatpush2.bf16.xpose.msra.mxu0 0
    %556 = vmatprep.subr.bf16.mxu0 0
    %557 = vmatpush2.bf16.xpose.msra.mxu0 0
    %558 = vmatprep.subr.bf16.mxu0 0
    %559 = vmatpush2.bf16.xpose.msra.mxu0 0
    %560 = vmatprep.subr.bf16.mxu0 0
    %561 = vmatpush2.bf16.xpose.msra.mxu0 0
    %562 = vmatprep.subr.bf16.mxu0 0
    %563 = vmatpush2.bf16.xpose.msra.mxu0 0
    %564 = vmatprep.subr.bf16.mxu0 0
    %565 = vmatpush2.bf16.xpose.msra.mxu0 0
    %566 = vmatprep.subr.bf16.mxu0 0
    %567 = vmatpush2.bf16.xpose.msra.mxu0 0
    %568 = vmatprep.mubr.bf16.mxu0 0
    %569 = vmatmul.mubr.bf16.gmra.mxu0 %v531
    %v570 = vpop.f32.mrf.mxu0
    %v571 = vadd.f32 %v181, %v570
    %v572 = vpop.f32.mrf.mxu0
    %v573 = vpop.f32.mrf.mxu0
    %v574 = vadd.f32 %v181, %v573
    %v575 = vpop.f32.mrf.mxu0
    %576 = vdwg.mxu0
    %v578 = vsel %vm529, %v486, 0
    %v581 = vsel %vm529, %v506, 0
    %583 = vmatprep.subr.bf16.mxu0 0
    %584 = vmatpush1.bf16.xpose.msra.mxu0 0
    %585 = vmatprep.subr.bf16.mxu0 0
    %586 = vmatpush1.bf16.xpose.msra.mxu0 0
    %587 = vmatprep.subr.bf16.mxu0 0
    %588 = vmatpush1.bf16.xpose.msra.mxu0 0
    %589 = vmatprep.subr.bf16.mxu0 0
    %590 = vmatpush1.bf16.xpose.msra.mxu0 0
    %591 = vmatprep.subr.bf16.mxu0 0
    %592 = vmatpush1.bf16.xpose.msra.mxu0 0
    %593 = vmatprep.subr.bf16.mxu0 0
    %594 = vmatpush1.bf16.xpose.msra.mxu0 0
    %595 = vmatprep.subr.bf16.mxu0 0
    %596 = vmatpush1.bf16.xpose.msra.mxu0 0
    %597 = vmatprep.subr.bf16.mxu0 0
    %598 = vmatpush1.bf16.xpose.msra.mxu0 %v581
    %599 = vmatprep.subr.bf16.mxu0 0
    %600 = vmatpush2.bf16.xpose.msra.mxu0 0
    %601 = vmatprep.subr.bf16.mxu0 0
    %602 = vmatpush2.bf16.xpose.msra.mxu0 0
    %603 = vmatprep.subr.bf16.mxu0 0
    %604 = vmatpush2.bf16.xpose.msra.mxu0 0
    %605 = vmatprep.subr.bf16.mxu0 0
    %606 = vmatpush2.bf16.xpose.msra.mxu0 0
    %607 = vmatprep.subr.bf16.mxu0 0
    %608 = vmatpush2.bf16.xpose.msra.mxu0 0
    %609 = vmatprep.subr.bf16.mxu0 0
    %610 = vmatpush2.bf16.xpose.msra.mxu0 0
    %611 = vmatprep.subr.bf16.mxu0 0
    %612 = vmatpush2.bf16.xpose.msra.mxu0 0
    %613 = vmatprep.subr.bf16.mxu0 0
    %614 = vmatpush2.bf16.xpose.msra.mxu0 0
    %615 = vmatprep.mubr.bf16.mxu0 0
    %616 = vmatmul.mubr.bf16.gmra.mxu0 %v578
    %v617 = vpop.f32.mrf.mxu0
    %v618 = vadd.f32 %v185, %v617
    %v619 = vpop.f32.mrf.mxu0
    %v620 = vpop.f32.mrf.mxu0
    %v621 = vadd.f32 %v185, %v620
    %v622 = vpop.f32.mrf.mxu0
    %623 = vdwg.mxu0
    %v625 = vsel %vm529, %v487, 0
    %v628 = vsel %vm529, %v507, 0
    %630 = vmatprep.subr.bf16.mxu0 0
    %631 = vmatpush1.bf16.xpose.msra.mxu0 0
    %632 = vmatprep.subr.bf16.mxu0 0
    %633 = vmatpush1.bf16.xpose.msra.mxu0 0
    %634 = vmatprep.subr.bf16.mxu0 0
    %635 = vmatpush1.bf16.xpose.msra.mxu0 0
    %636 = vmatprep.subr.bf16.mxu0 0
    %637 = vmatpush1.bf16.xpose.msra.mxu0 0
    %638 = vmatprep.subr.bf16.mxu0 0
    %639 = vmatpush1.bf16.xpose.msra.mxu0 0
    %640 = vmatprep.subr.bf16.mxu0 0
    %641 = vmatpush1.bf16.xpose.msra.mxu0 0
    %642 = vmatprep.subr.bf16.mxu0 0
    %643 = vmatpush1.bf16.xpose.msra.mxu0 0
    %644 = vmatprep.subr.bf16.mxu0 0
    %645 = vmatpush1.bf16.xpose.msra.mxu0 %v628
    %646 = vmatprep.subr.bf16.mxu0 0
    %647 = vmatpush2.bf16.xpose.msra.mxu0 0
    %648 = vmatprep.subr.bf16.mxu0 0
    %649 = vmatpush2.bf16.xpose.msra.mxu0 0
    %650 = vmatprep.subr.bf16.mxu0 0
    %651 = vmatpush2.bf16.xpose.msra.mxu0 0
    %652 = vmatprep.subr.bf16.mxu0 0
    %653 = vmatpush2.bf16.xpose.msra.mxu0 0
    %654 = vmatprep.subr.bf16.mxu0 0
    %655 = vmatpush2.bf16.xpose.msra.mxu0 0
    %656 = vmatprep.subr.bf16.mxu0 0
    %657 = vmatpush2.bf16.xpose.msra.mxu0 0
    %658 = vmatprep.subr.bf16.mxu0 0
    %659 = vmatpush2.bf16.xpose.msra.mxu0 0
    %660 = vmatprep.subr.bf16.mxu0 0
    %661 = vmatpush2.bf16.xpose.msra.mxu0 0
    %662 = vmatprep.mubr.bf16.mxu0 0
    %663 = vmatmul.mubr.bf16.gmra.mxu0 %v625
    %v664 = vpop.f32.mrf.mxu0
    %v665 = vadd.f32 %v181, %v664
    %v666 = vpop.f32.mrf.mxu0
    %v667 = vpop.f32.mrf.mxu0
    %v668 = vadd.f32 %v181, %v667
    %v669 = vpop.f32.mrf.mxu0
    %670 = vdwg.mxu0
    %v672 = vsel %vm529, %v488, 0
    %v675 = vsel %vm529, %v508, 0
    %677 = vmatprep.subr.bf16.mxu0 0
    %678 = vmatpush1.bf16.xpose.msra.mxu0 0
    %679 = vmatprep.subr.bf16.mxu0 0
    %680 = vmatpush1.bf16.xpose.msra.mxu0 0
    %681 = vmatprep.subr.bf16.mxu0 0
    %682 = vmatpush1.bf16.xpose.msra.mxu0 0
    %683 = vmatprep.subr.bf16.mxu0 0
    %684 = vmatpush1.bf16.xpose.msra.mxu0 0
    %685 = vmatprep.subr.bf16.mxu0 0
    %686 = vmatpush1.bf16.xpose.msra.mxu0 0
    %687 = vmatprep.subr.bf16.mxu0 0
    %688 = vmatpush1.bf16.xpose.msra.mxu0 0
    %689 = vmatprep.subr.bf16.mxu0 0
    %690 = vmatpush1.bf16.xpose.msra.mxu0 0
    %691 = vmatprep.subr.bf16.mxu0 0
    %692 = vmatpush1.bf16.xpose.msra.mxu0 %v675
    %693 = vmatprep.subr.bf16.mxu0 0
    %694 = vmatpush2.bf16.xpose.msra.mxu0 0
    %695 = vmatprep.subr.bf16.mxu0 0
    %696 = vmatpush2.bf16.xpose.msra.mxu0 0
    %697 = vmatprep.subr.bf16.mxu0 0
    %698 = vmatpush2.bf16.xpose.msra.mxu0 0
    %699 = vmatprep.subr.bf16.mxu0 0
    %700 = vmatpush2.bf16.xpose.msra.mxu0 0
    %701 = vmatprep.subr.bf16.mxu0 0
    %702 = vmatpush2.bf16.xpose.msra.mxu0 0
    %703 = vmatprep.subr.bf16.mxu0 0
    %704 = vmatpush2.bf16.xpose.msra.mxu0 0
    %705 = vmatprep.subr.bf16.mxu0 0
    %706 = vmatpush2.bf16.xpose.msra.mxu0 0
    %707 = vmatprep.subr.bf16.mxu0 0
    %708 = vmatpush2.bf16.xpose.msra.mxu0 0
    %709 = vmatprep.mubr.bf16.mxu0 0
    %710 = vmatmul.mubr.bf16.gmra.mxu0 %v672
    %v711 = vpop.f32.mrf.mxu0
    %v712 = vadd.f32 %v185, %v711
    %v713 = vpop.f32.mrf.mxu0
    %v714 = vpop.f32.mrf.mxu0
    %v715 = vadd.f32 %v185, %v714
    %v716 = vpop.f32.mrf.mxu0
    %717 = vdwg.mxu0
    %vm718 = vcmask 130048
    %v719 = vsel %vm718, %v571, -inf
    %720 = vmax.xlane.f32.xlu0 %v719
    %v721 = vpop.xlane.xlu0 %720
    %v722 = vsel %vm718, %v574, -inf
    %723 = vmax.xlane.f32.xlu0 %v722
    %v724 = vpop.xlane.xlu0 %723
    %v725 = vsel %vm718, %v618, -inf
    %726 = vmax.xlane.f32.xlu0 %v725
    %v727 = vpop.xlane.xlu0 %726
    %v728 = vsel %vm718, %v621, -inf
    %729 = vmax.xlane.f32.xlu0 %v728
    %v730 = vpop.xlane.xlu0 %729
    %v731 = vsel %vm718, %v665, -inf
    %732 = vmax.xlane.f32.xlu0 %v731
    %v733 = vpop.xlane.xlu0 %732
    %v734 = vsel %vm718, %v668, -inf
    %735 = vmax.xlane.f32.xlu0 %v734
    %v736 = vpop.xlane.xlu0 %735
    %v737 = vsel %vm718, %v712, -inf
    %738 = vmax.xlane.f32.xlu0 %v737
    %v739 = vpop.xlane.xlu0 %738
    %v740 = vsel %vm718, %v715, -inf
    %741 = vmax.xlane.f32.xlu0 %v740
    %v742 = vpop.xlane.xlu0 %741
    %v743 = vsub.f32 %v571, %v721
    %v744 = vsub.f32 %v574, %v724
    %v745 = vsub.f32 %v618, %v727
    %v746 = vsub.f32 %v621, %v730
    %v747 = vsub.f32 %v665, %v733
    %v748 = vsub.f32 %v668, %v736
    %v749 = vsub.f32 %v712, %v739
    %v750 = vsub.f32 %v715, %v742
    %v751 = vmul.f32 %v743, 1.442695
    %v752 = vpow.pop %v751
    %v753 = vmul.f32 %v744, 1.442695
    %v754 = vpow.pop %v753
    %v755 = vmul.f32 %v745, 1.442695
    %v756 = vpow.pop %v755
    %v757 = vmul.f32 %v746, 1.442695
    %v758 = vpow.pop %v757
    %v759 = vmul.f32 %v747, 1.442695
    %v760 = vpow.pop %v759
    %v761 = vmul.f32 %v748, 1.442695
    %v762 = vpow.pop %v761
    %v763 = vmul.f32 %v749, 1.442695
    %v764 = vpow.pop %v763
    %v765 = vmul.f32 %v750, 1.442695
    %v766 = vpow.pop %v765
    %v767 = vsel %vm718, %v752, 0.0
    %768 = vadd.xlane.f32.xlu0 %v767
    %v769 = vpop.xlane.xlu0 %768
    %v770 = vsel %vm718, %v754, 0.0
    %771 = vadd.xlane.f32.xlu0 %v770
    %v772 = vpop.xlane.xlu0 %771
    %v773 = vsel %vm718, %v756, 0.0
    %774 = vadd.xlane.f32.xlu0 %v773
    %v775 = vpop.xlane.xlu0 %774
    %v776 = vsel %vm718, %v758, 0.0
    %777 = vadd.xlane.f32.xlu0 %v776
    %v778 = vpop.xlane.xlu0 %777
    %v779 = vsel %vm718, %v760, 0.0
    %780 = vadd.xlane.f32.xlu0 %v779
    %v781 = vpop.xlane.xlu0 %780
    %v782 = vsel %vm718, %v762, 0.0
    %783 = vadd.xlane.f32.xlu0 %v782
    %v784 = vpop.xlane.xlu0 %783
    %v785 = vsel %vm718, %v764, 0.0
    %786 = vadd.xlane.f32.xlu0 %v785
    %v787 = vpop.xlane.xlu0 %786
    %v788 = vsel %vm718, %v766, 0.0
    %789 = vadd.xlane.f32.xlu0 %v788
    %v790 = vpop.xlane.xlu0 %789
    %v791 = vrcp.pop %v769
    %v792 = vrcp.pop %v772
    %v793 = vrcp.pop %v775
    %v794 = vrcp.pop %v778
    %v795 = vrcp.pop %v781
    %v796 = vrcp.pop %v784
    %v797 = vrcp.pop %v787
    %v798 = vrcp.pop %v790
    %v799 = vmul.f32 %v752, %v791
    %v800 = vmul.f32 %v754, %v792
    %v801 = vmul.f32 %v756, %v793
    %v802 = vmul.f32 %v758, %v794
    %v803 = vmul.f32 %v760, %v795
    %v804 = vmul.f32 %v762, %v796
    %v805 = vmul.f32 %v764, %v797
    %v806 = vmul.f32 %v766, %v798
    %v807 = vpack.c.bf16 %v800, %v799
    %v808 = vpack.c.bf16 %v802, %v801
    %v809 = vpack.c.bf16 %v804, %v803
    %v810 = vpack.c.bf16 %v806, %v805
    %v812 = vsel %vm718, %v807, 0
    %814 = vmatprep.subr.bf16.mxu0 0
    %815 = vmatpush1.bf16.msra.mxu0 0
    %816 = vmatprep.subr.bf16.mxu0 0
    %817 = vmatpush1.bf16.msra.mxu0 0
    %818 = vmatprep.subr.bf16.mxu0 0
    %819 = vmatpush1.bf16.msra.mxu0 0
    %820 = vmatprep.subr.bf16.mxu0 0
    %821 = vmatpush1.bf16.msra.mxu0 0
    %822 = vmatprep.subr.bf16.mxu0 0
    %823 = vmatpush1.bf16.msra.mxu0 0
    %824 = vmatprep.subr.bf16.mxu0 0
    %825 = vmatpush1.bf16.msra.mxu0 0
    %826 = vmatprep.subr.bf16.mxu0 0
    %827 = vmatpush1.bf16.msra.mxu0 0
    %828 = vmatprep.subr.bf16.mxu0 0
    %829 = vmatpush1.bf16.msra.mxu0 %v525
    %830 = vmatprep.subr.bf16.mxu0 0
    %831 = vmatpush2.bf16.msra.mxu0 0
    %832 = vmatprep.subr.bf16.mxu0 0
    %833 = vmatpush2.bf16.msra.mxu0 0
    %834 = vmatprep.subr.bf16.mxu0 0
    %835 = vmatpush2.bf16.msra.mxu0 0
    %836 = vmatprep.subr.bf16.mxu0 0
    %837 = vmatpush2.bf16.msra.mxu0 0
    %838 = vmatprep.subr.bf16.mxu0 0
    %839 = vmatpush2.bf16.msra.mxu0 0
    %840 = vmatprep.subr.bf16.mxu0 0
    %841 = vmatpush2.bf16.msra.mxu0 0
    %842 = vmatprep.subr.bf16.mxu0 0
    %843 = vmatpush2.bf16.msra.mxu0 0
    %844 = vmatprep.subr.bf16.mxu0 0
    %845 = vmatpush2.bf16.msra.mxu0 0
    %846 = vmatprep.mubr.bf16.mxu0 0
    %847 = vmatmul.mubr.bf16.gmra.mxu0 %v812
    %v848 = vpop.f32.mrf.mxu0
    %v849 = vadd.f32 0.0, %v848
    %v850 = vpop.f32.mrf.mxu0
    %v851 = vpop.f32.mrf.mxu0
    %v852 = vadd.f32 0.0, %v851
    %v853 = vpop.f32.mrf.mxu0
    %854 = vdwg.mxu0
    %v856 = vsel %vm718, %v808, 0
    %858 = vmatprep.subr.bf16.mxu0 0
    %859 = vmatpush1.bf16.msra.mxu0 0
    %860 = vmatprep.subr.bf16.mxu0 0
    %861 = vmatpush1.bf16.msra.mxu0 0
    %862 = vmatprep.subr.bf16.mxu0 0
    %863 = vmatpush1.bf16.msra.mxu0 0
    %864 = vmatprep.subr.bf16.mxu0 0
    %865 = vmatpush1.bf16.msra.mxu0 0
    %866 = vmatprep.subr.bf16.mxu0 0
    %867 = vmatpush1.bf16.msra.mxu0 0
    %868 = vmatprep.subr.bf16.mxu0 0
    %869 = vmatpush1.bf16.msra.mxu0 0
    %870 = vmatprep.subr.bf16.mxu0 0
    %871 = vmatpush1.bf16.msra.mxu0 0
    %872 = vmatprep.subr.bf16.mxu0 0
    %873 = vmatpush1.bf16.msra.mxu0 %v526
    %874 = vmatprep.subr.bf16.mxu0 0
    %875 = vmatpush2.bf16.msra.mxu0 0
    %876 = vmatprep.subr.bf16.mxu0 0
    %877 = vmatpush2.bf16.msra.mxu0 0
    %878 = vmatprep.subr.bf16.mxu0 0
    %879 = vmatpush2.bf16.msra.mxu0 0
    %880 = vmatprep.subr.bf16.mxu0 0
    %881 = vmatpush2.bf16.msra.mxu0 0
    %882 = vmatprep.subr.bf16.mxu0 0
    %883 = vmatpush2.bf16.msra.mxu0 0
    %884 = vmatprep.subr.bf16.mxu0 0
    %885 = vmatpush2.bf16.msra.mxu0 0
    %886 = vmatprep.subr.bf16.mxu0 0
    %887 = vmatpush2.bf16.msra.mxu0 0
    %888 = vmatprep.subr.bf16.mxu0 0
    %889 = vmatpush2.bf16.msra.mxu0 0
    %890 = vmatprep.mubr.bf16.mxu0 0
    %891 = vmatmul.mubr.bf16.gmra.mxu0 %v856
    %v892 = vpop.f32.mrf.mxu0
    %v893 = vadd.f32 0.0, %v892
    %v894 = vpop.f32.mrf.mxu0
    %v895 = vpop.f32.mrf.mxu0
    %v896 = vadd.f32 0.0, %v895
    %v897 = vpop.f32.mrf.mxu0
    %898 = vdwg.mxu0
    %v900 = vsel %vm718, %v809, 0
    %902 = vmatprep.subr.bf16.mxu0 0
    %903 = vmatpush1.bf16.msra.mxu0 0
    %904 = vmatprep.subr.bf16.mxu0 0
    %905 = vmatpush1.bf16.msra.mxu0 0
    %906 = vmatprep.subr.bf16.mxu0 0
    %907 = vmatpush1.bf16.msra.mxu0 0
    %908 = vmatprep.subr.bf16.mxu0 0
    %909 = vmatpush1.bf16.msra.mxu0 0
    %910 = vmatprep.subr.bf16.mxu0 0
    %911 = vmatpush1.bf16.msra.mxu0 0
    %912 = vmatprep.subr.bf16.mxu0 0
    %913 = vmatpush1.bf16.msra.mxu0 0
    %914 = vmatprep.subr.bf16.mxu0 0
    %915 = vmatpush1.bf16.msra.mxu0 0
    %916 = vmatprep.subr.bf16.mxu0 0
    %917 = vmatpush1.bf16.msra.mxu0 %v527
    %918 = vmatprep.subr.bf16.mxu0 0
    %919 = vmatpush2.bf16.msra.mxu0 0
    %920 = vmatprep.subr.bf16.mxu0 0
    %921 = vmatpush2.bf16.msra.mxu0 0
    %922 = vmatprep.subr.bf16.mxu0 0
    %923 = vmatpush2.bf16.msra.mxu0 0
    %924 = vmatprep.subr.bf16.mxu0 0
    %925 = vmatpush2.bf16.msra.mxu0 0
    %926 = vmatprep.subr.bf16.mxu0 0
    %927 = vmatpush2.bf16.msra.mxu0 0
    %928 = vmatprep.subr.bf16.mxu0 0
    %929 = vmatpush2.bf16.msra.mxu0 0
    %930 = vmatprep.subr.bf16.mxu0 0
    %931 = vmatpush2.bf16.msra.mxu0 0
    %932 = vmatprep.subr.bf16.mxu0 0
    %933 = vmatpush2.bf16.msra.mxu0 0
    %934 = vmatprep.mubr.bf16.mxu0 0
    %935 = vmatmul.mubr.bf16.gmra.mxu0 %v900
    %v936 = vpop.f32.mrf.mxu0
    %v937 = vadd.f32 0.0, %v936
    %v938 = vpop.f32.mrf.mxu0
    %v939 = vpop.f32.mrf.mxu0
    %v940 = vadd.f32 0.0, %v939
    %v941 = vpop.f32.mrf.mxu0
    %942 = vdwg.mxu0
    %v944 = vsel %vm718, %v810, 0
    %946 = vmatprep.subr.bf16.mxu0 0
    %947 = vmatpush1.bf16.msra.mxu0 0
    %948 = vmatprep.subr.bf16.mxu0 0
    %949 = vmatpush1.bf16.msra.mxu0 0
    %950 = vmatprep.subr.bf16.mxu0 0
    %951 = vmatpush1.bf16.msra.mxu0 0
    %952 = vmatprep.subr.bf16.mxu0 0
    %953 = vmatpush1.bf16.msra.mxu0 0
    %954 = vmatprep.subr.bf16.mxu0 0
    %955 = vmatpush1.bf16.msra.mxu0 0
    %956 = vmatprep.subr.bf16.mxu0 0
    %957 = vmatpush1.bf16.msra.mxu0 0
    %958 = vmatprep.subr.bf16.mxu0 0
    %959 = vmatpush1.bf16.msra.mxu0 0
    %960 = vmatprep.subr.bf16.mxu0 0
    %961 = vmatpush1.bf16.msra.mxu0 %v528
    %962 = vmatprep.subr.bf16.mxu0 0
    %963 = vmatpush2.bf16.msra.mxu0 0
    %964 = vmatprep.subr.bf16.mxu0 0
    %965 = vmatpush2.bf16.msra.mxu0 0
    %966 = vmatprep.subr.bf16.mxu0 0
    %967 = vmatpush2.bf16.msra.mxu0 0
    %968 = vmatprep.subr.bf16.mxu0 0
    %969 = vmatpush2.bf16.msra.mxu0 0
    %970 = vmatprep.subr.bf16.mxu0 0
    %971 = vmatpush2.bf16.msra.mxu0 0
    %972 = vmatprep.subr.bf16.mxu0 0
    %973 = vmatpush2.bf16.msra.mxu0 0
    %974 = vmatprep.subr.bf16.mxu0 0
    %975 = vmatpush2.bf16.msra.mxu0 0
    %976 = vmatprep.subr.bf16.mxu0 0
    %977 = vmatpush2.bf16.msra.mxu0 0
    %978 = vmatprep.mubr.bf16.mxu0 0
    %979 = vmatmul.mubr.bf16.gmra.mxu0 %v944
    %v980 = vpop.f32.mrf.mxu0
    %v981 = vadd.f32 0.0, %v980
    %v982 = vpop.f32.mrf.mxu0
    %v983 = vpop.f32.mrf.mxu0
    %v984 = vadd.f32 0.0, %v983
    %v985 = vpop.f32.mrf.mxu0
    %986 = vdwg.mxu0
    %v987 = vld [vmem:[#allocation2] sm:$0xf]
    %v988 = vld [vmem:[#allocation2 + $0x4] sm:$0xf]
    %v989 = vld [vmem:[#allocation2 + $0x8] sm:$0xf]
    %v990 = vld [vmem:[#allocation2 + $0xc] sm:$0xf]
    %v991 = vld [vmem:[#allocation2 + $0x10] sm:$0xf]
    %v992 = vld [vmem:[#allocation2 + $0x14] sm:$0xf]
    %v993 = vld [vmem:[#allocation2 + $0x18] sm:$0xf]
    %v994 = vld [vmem:[#allocation2 + $0x1c] sm:$0xf]
    %v995 = vld [vmem:[#allocation2 + $0x20] sm:$0xf]
    %v996 = vld [vmem:[#allocation2 + $0x24] sm:$0xf]
    %v997 = vld [vmem:[#allocation2 + $0x28] sm:$0xf]
    %v998 = vld [vmem:[#allocation2 + $0x2c] sm:$0xf]
    %v999 = vld [vmem:[#allocation2 + $0x30] sm:$0xf]
    %v1000 = vld [vmem:[#allocation2 + $0x34] sm:$0xf]
    %v1001 = vld [vmem:[#allocation2 + $0x38] sm:$0xf]
    %v1002 = vld [vmem:[#allocation2 + $0x3c] sm:$0xf]
    %v1003 = vpack.c.bf16 %v852, %v849
    %v1004 = vpack.c.bf16 %v896, %v893
    %v1005 = vpack.c.bf16 %v940, %v937
    %v1006 = vpack.c.bf16 %v984, %v981
    %v1015 = vunpack.c.l.b16 %v995
    %v1016 = vunpack.c.l.b16 %v996
    %v1017 = vunpack.c.l.b16 %v997
    %v1018 = vunpack.c.l.b16 %v998
    %v1019 = vunpack.c.l.b16 %v999
    %v1020 = vunpack.c.l.b16 %v1000
    %v1021 = vunpack.c.l.b16 %v1001
    %v1022 = vunpack.c.l.b16 %v1002
    %v1023 = vpack.c.b16 %v1016, %v1015
    %v1024 = vpack.c.b16 %v1018, %v1017
    %v1025 = vpack.c.b16 %v1020, %v1019
    %v1026 = vpack.c.b16 %v1022, %v1021
    %v1032 = vsel %vm529, %v1005, 0
    %v1035 = vsel %vm529, %v1006, 0
    %1037 = vmatprep.subr.bf16.mxu0 0
    %1038 = vmatpush1.bf16.msra.mxu0 0
    %1039 = vmatprep.subr.bf16.mxu0 0
    %1040 = vmatpush1.bf16.msra.mxu0 0
    %1041 = vmatprep.subr.bf16.mxu0 0
    %1042 = vmatpush1.bf16.msra.mxu0 0
    %1043 = vmatprep.subr.bf16.mxu0 0
    %1044 = vmatpush1.bf16.msra.mxu0 0
    %1045 = vmatprep.subr.bf16.mxu0 0
    %1046 = vmatpush1.bf16.msra.mxu0 %v1026
    %1047 = vmatprep.subr.bf16.mxu0 0
    %1048 = vmatpush1.bf16.msra.mxu0 %v1025
    %1049 = vmatprep.subr.bf16.mxu0 0
    %1050 = vmatpush1.bf16.msra.mxu0 %v1024
    %1051 = vmatprep.subr.bf16.mxu0 0
    %1052 = vmatpush1.bf16.msra.mxu0 %v1023
    %1053 = vmatprep.subr.bf16.mxu0 0
    %1054 = vmatpush2.bf16.msra.mxu0 0
    %1055 = vmatprep.subr.bf16.mxu0 0
    %1056 = vmatpush2.bf16.msra.mxu0 0
    %1057 = vmatprep.subr.bf16.mxu0 0
    %1058 = vmatpush2.bf16.msra.mxu0 0
    %1059 = vmatprep.subr.bf16.mxu0 0
    %1060 = vmatpush2.bf16.msra.mxu0 0
    %1061 = vmatprep.subr.bf16.mxu0 0
    %1062 = vmatpush2.bf16.msra.mxu0 0
    %1063 = vmatprep.subr.bf16.mxu0 0
    %1064 = vmatpush2.bf16.msra.mxu0 0
    %1065 = vmatprep.subr.bf16.mxu0 0
    %1066 = vmatpush2.bf16.msra.mxu0 0
    %1067 = vmatprep.subr.bf16.mxu0 0
    %1068 = vmatpush2.bf16.msra.mxu0 0
    %1069 = vmatprep.mubr.bf16.mxu0 0
    %1070 = vmatmul.mubr.bf16.gmra.mxu0 %v1032
    %v1071 = vpop.f32.mrf.mxu0
    %v1072 = vadd.f32 0.0, %v1071
    %v1073 = vpop.f32.mrf.mxu0
    %v1074 = vpop.f32.mrf.mxu0
    %v1075 = vadd.f32 0.0, %v1074
    %v1076 = vpop.f32.mrf.mxu0
    %1077 = vmatprep.mubr.bf16.mxu0 0
    %1078 = vmatmul.mubr.bf16.gmra.mxu0 %v1035
    %v1079 = vpop.f32.mrf.mxu0
    %v1080 = vadd.f32 0.0, %v1079
    %v1081 = vpop.f32.mrf.mxu0
    %v1082 = vpop.f32.mrf.mxu0
    %v1083 = vadd.f32 0.0, %v1082
    %v1084 = vpop.f32.mrf.mxu0
    %1085 = vdwg.mxu0
    %v1094 = vunpack.c.l.b16 %v987
    %v1095 = vunpack.c.l.b16 %v988
    %v1096 = vunpack.c.l.b16 %v989
    %v1097 = vunpack.c.l.b16 %v990
    %v1098 = vunpack.c.l.b16 %v991
    %v1099 = vunpack.c.l.b16 %v992
    %v1100 = vunpack.c.l.b16 %v993
    %v1101 = vunpack.c.l.b16 %v994
    %v1102 = vpack.c.b16 %v1095, %v1094
    %v1103 = vpack.c.b16 %v1097, %v1096
    %v1104 = vpack.c.b16 %v1099, %v1098
    %v1105 = vpack.c.b16 %v1101, %v1100
    %v1111 = vsel %vm529, %v1003, 0
    %v1114 = vsel %vm529, %v1004, 0
    %1116 = vmatprep.subr.bf16.mxu0 0
    %1117 = vmatpush1.bf16.msra.mxu0 0
    %1118 = vmatprep.subr.bf16.mxu0 0
    %1119 = vmatpush1.bf16.msra.mxu0 0
    %1120 = vmatprep.subr.bf16.mxu0 0
    %1121 = vmatpush1.bf16.msra.mxu0 0
    %1122 = vmatprep.subr.bf16.mxu0 0
    %1123 = vmatpush1.bf16.msra.mxu0 0
    %1124 = vmatprep.subr.bf16.mxu0 0
    %1125 = vmatpush1.bf16.msra.mxu0 %v1105
    %1126 = vmatprep.subr.bf16.mxu0 0
    %1127 = vmatpush1.bf16.msra.mxu0 %v1104
    %1128 = vmatprep.subr.bf16.mxu0 0
    %1129 = vmatpush1.bf16.msra.mxu0 %v1103
    %1130 = vmatprep.subr.bf16.mxu0 0
    %1131 = vmatpush1.bf16.msra.mxu0 %v1102
    %1132 = vmatprep.subr.bf16.mxu0 0
    %1133 = vmatpush2.bf16.msra.mxu0 0
    %1134 = vmatprep.subr.bf16.mxu0 0
    %1135 = vmatpush2.bf16.msra.mxu0 0
    %1136 = vmatprep.subr.bf16.mxu0 0
    %1137 = vmatpush2.bf16.msra.mxu0 0
    %1138 = vmatprep.subr.bf16.mxu0 0
    %1139 = vmatpush2.bf16.msra.mxu0 0
    %1140 = vmatprep.subr.bf16.mxu0 0
    %1141 = vmatpush2.bf16.msra.mxu0 0
    %1142 = vmatprep.subr.bf16.mxu0 0
    %1143 = vmatpush2.bf16.msra.mxu0 0
    %1144 = vmatprep.subr.bf16.mxu0 0
    %1145 = vmatpush2.bf16.msra.mxu0 0
    %1146 = vmatprep.subr.bf16.mxu0 0
    %1147 = vmatpush2.bf16.msra.mxu0 0
    %1148 = vmatprep.mubr.bf16.mxu0 0
    %1149 = vmatmul.mubr.bf16.gmra.mxu0 %v1111
    %v1150 = vpop.f32.mrf.mxu0
    %v1151 = vadd.f32 %v1072, %v1150
    %v1152 = vpop.f32.mrf.mxu0
    %v1153 = vpop.f32.mrf.mxu0
    %v1154 = vadd.f32 %v1075, %v1153
    %v1155 = vpop.f32.mrf.mxu0
    %1156 = vmatprep.mubr.bf16.mxu0 0
    %1157 = vmatmul.mubr.bf16.gmra.mxu0 %v1114
    %v1158 = vpop.f32.mrf.mxu0
    %v1159 = vadd.f32 %v1080, %v1158
    %v1160 = vpop.f32.mrf.mxu0
    %v1161 = vpop.f32.mrf.mxu0
    %v1162 = vadd.f32 %v1083, %v1161
    %v1163 = vpop.f32.mrf.mxu0
    %1164 = vdwg.mxu0
    %v1165 = vld [vmem:[%s7] sm:$0x1]
    %v1167 = vlaneseq
    %v1168 = vshrl.u32 %v1167, 7
    %v1169 = vsub.s32 0, %v1168
    %v1170 = vrot.slane %v1165, %v1169
    %v1172 = vadd.f32 %v1151, %v1170
    %v1173 = vadd.f32 %v1154, %v1170
    %v1174 = vadd.f32 %v1159, %v1170
    %v1175 = vadd.f32 %v1162, %v1170
    %v1176 = vadd.f32 %v170, %v1172
    %v1177 = vadd.f32 %v171, %v1173
    %v1178 = vadd.f32 %v172, %v1174
    %v1179 = vadd.f32 %v173, %v1175
    %v1180 = vld [vmem:[%s8] sm:$0x1]
    %v1181 = vld [vmem:[%s9] sm:$0x1]
    %1182 = vadd.xlane.f32.xlu0 %v1176
    %v1183 = vpop.xlane.xlu0 %1182
    %1184 = vadd.xlane.f32.xlu0 %v1177
    %v1185 = vpop.xlane.xlu0 %1184
    %1186 = vadd.xlane.f32.xlu0 %v1178
    %v1187 = vpop.xlane.xlu0 %1186
    %1188 = vadd.xlane.f32.xlu0 %v1179
    %v1189 = vpop.xlane.xlu0 %1188
    %v1190 = vmul.f32 %v1183, %v117
    %v1191 = vmul.f32 %v1185, %v117
    %v1192 = vmul.f32 %v1187, %v117
    %v1193 = vmul.f32 %v1189, %v117
    %v1194 = vsub.f32 %v1176, %v1190
    %v1195 = vsub.f32 %v1177, %v1191
    %v1196 = vsub.f32 %v1178, %v1192
    %v1197 = vsub.f32 %v1179, %v1193
    %v1198 = vmul.f32 %v1194, %v1194
    %v1199 = vmul.f32 %v1195, %v1195
    %v1200 = vmul.f32 %v1196, %v1196
    %v1201 = vmul.f32 %v1197, %v1197
    %1202 = vadd.xlane.f32.xlu0 %v1198
    %v1203 = vpop.xlane.xlu0 %1202
    %1204 = vadd.xlane.f32.xlu0 %v1199
    %v1205 = vpop.xlane.xlu0 %1204
    %1206 = vadd.xlane.f32.xlu0 %v1200
    %v1207 = vpop.xlane.xlu0 %1206
    %1208 = vadd.xlane.f32.xlu0 %v1201
    %v1209 = vpop.xlane.xlu0 %1208
    %v1210 = vmul.f32 %v1203, %v117
    %v1211 = vmul.f32 %v1205, %v117
    %v1212 = vmul.f32 %v1207, %v117
    %v1213 = vmul.f32 %v1209, %v117
    %v1214 = vadd.f32 %v1210, 1e-05
    %v1215 = vadd.f32 %v1211, 1e-05
    %v1216 = vadd.f32 %v1212, 1e-05
    %v1217 = vadd.f32 %v1213, 1e-05
    %v1218 = vrsqrt.pop %v1214
    %v1219 = vrsqrt.pop %v1215
    %v1220 = vrsqrt.pop %v1216
    %v1221 = vrsqrt.pop %v1217
    %v1222 = vmul.f32 %v1194, %v1218
    %v1223 = vmul.f32 %v1195, %v1219
    %v1224 = vmul.f32 %v1196, %v1220
    %v1225 = vmul.f32 %v1197, %v1221
    %v1227 = vlaneseq
    %v1228 = vshrl.u32 %v1227, 7
    %v1229 = vsub.s32 0, %v1228
    %v1230 = vrot.slane %v1180, %v1229
    %v1232 = vmul.f32 %v1222, %v1230
    %v1233 = vmul.f32 %v1223, %v1230
    %v1234 = vmul.f32 %v1224, %v1230
    %v1235 = vmul.f32 %v1225, %v1230
    %v1237 = vlaneseq
    %v1238 = vshrl.u32 %v1237, 7
    %v1239 = vsub.s32 0, %v1238
    %v1240 = vrot.slane %v1181, %v1239
    %v1242 = vadd.f32 %v1232, %v1240
    %v1243 = vadd.f32 %v1233, %v1240
    %v1244 = vadd.f32 %v1234, %v1240
    %v1245 = vadd.f32 %v1235, %v1240
    %v1246 = vpack.c.bf16 %v1243, %v1242
    %v1247 = vpack.c.bf16 %v1245, %v1244
    %v1248 = vld [vmem:[%s10] sm:$0xff]
    %v1249 = vld [vmem:[%s10 + $0x8] sm:$0xff]
    %v1250 = vld [vmem:[%s10 + $0x10] sm:$0xff]
    %v1251 = vld [vmem:[%s10 + $0x18] sm:$0xff]
    %v1252 = vld [vmem:[%s10 + $0x20] sm:$0xff]
    %v1253 = vld [vmem:[%s10 + $0x28] sm:$0xff]
    %v1254 = vld [vmem:[%s10 + $0x30] sm:$0xff]
    %v1255 = vld [vmem:[%s10 + $0x38] sm:$0xff]
    %v1256 = vld [vmem:[%s10 + $0x40] sm:$0xff]
    %v1257 = vld [vmem:[%s10 + $0x48] sm:$0xff]
    %v1258 = vld [vmem:[%s10 + $0x50] sm:$0xff]
    %v1259 = vld [vmem:[%s10 + $0x58] sm:$0xff]
    %v1260 = vld [vmem:[%s10 + $0x60] sm:$0xff]
    %v1261 = vld [vmem:[%s10 + $0x68] sm:$0xff]
    %v1262 = vld [vmem:[%s10 + $0x70] sm:$0xff]
    %v1263 = vld [vmem:[%s10 + $0x78] sm:$0xff]
    %v1264 = vld [vmem:[%s11] sm:$0x3]
    %v1266 = vlaneseq
    %v1267 = vshrl.u32 %v1266, 7
    %v1268 = vsub.s32 0, %v1267
    %v1269 = vrot.slane %v1264, %v1268
    %v1270 = vlaneseq
    %v1271 = vshrl.u32 %v1270, 7
    %v1272 = vsub.s32 1, %v1271
    %v1273 = vrot.slane %v1264, %v1272
    %v1292 = vunpack.c.l.b16 %v1248
    %v1293 = vunpack.c.h.b16 %v1248
    %v1294 = vunpack.c.l.b16 %v1249
    %v1295 = vunpack.c.h.b16 %v1249
    %v1296 = vunpack.c.l.b16 %v1250
    %v1297 = vunpack.c.h.b16 %v1250
    %v1298 = vunpack.c.l.b16 %v1251
    %v1299 = vunpack.c.h.b16 %v1251
    %v1300 = vunpack.c.l.b16 %v1252
    %v1301 = vunpack.c.h.b16 %v1252
    %v1302 = vunpack.c.l.b16 %v1253
    %v1303 = vunpack.c.h.b16 %v1253
    %v1304 = vunpack.c.l.b16 %v1254
    %v1305 = vunpack.c.h.b16 %v1254
    %v1306 = vunpack.c.l.b16 %v1255
    %v1307 = vunpack.c.h.b16 %v1255
    %v1308 = vunpack.c.l.b16 %v1256
    %v1309 = vunpack.c.h.b16 %v1256
    %v1310 = vunpack.c.l.b16 %v1257
    %v1311 = vunpack.c.h.b16 %v1257
    %v1312 = vunpack.c.l.b16 %v1258
    %v1313 = vunpack.c.h.b16 %v1258
    %v1314 = vunpack.c.l.b16 %v1259
    %v1315 = vunpack.c.h.b16 %v1259
    %v1316 = vunpack.c.l.b16 %v1260
    %v1317 = vunpack.c.h.b16 %v1260
    %v1318 = vunpack.c.l.b16 %v1261
    %v1319 = vunpack.c.h.b16 %v1261
    %v1320 = vunpack.c.l.b16 %v1262
    %v1321 = vunpack.c.h.b16 %v1262
    %v1322 = vunpack.c.l.b16 %v1263
    %v1323 = vunpack.c.h.b16 %v1263
    %v1324 = vpack.c.b16 %v1294, %v1292
    %v1325 = vpack.c.b16 %v1295, %v1293
    %v1326 = vpack.c.b16 %v1298, %v1296
    %v1327 = vpack.c.b16 %v1299, %v1297
    %v1328 = vpack.c.b16 %v1302, %v1300
    %v1329 = vpack.c.b16 %v1303, %v1301
    %v1330 = vpack.c.b16 %v1306, %v1304
    %v1331 = vpack.c.b16 %v1307, %v1305
    %v1332 = vpack.c.b16 %v1310, %v1308
    %v1333 = vpack.c.b16 %v1311, %v1309
    %v1334 = vpack.c.b16 %v1314, %v1312
    %v1335 = vpack.c.b16 %v1315, %v1313
    %v1336 = vpack.c.b16 %v1318, %v1316
    %v1337 = vpack.c.b16 %v1319, %v1317
    %v1338 = vpack.c.b16 %v1322, %v1320
    %v1339 = vpack.c.b16 %v1323, %v1321
    %1356 = vmatprep.subr.bf16.mxu0 %v1339
    %1357 = vmatpush1.bf16.msra.mxu0 %v1338
    %1358 = vmatprep.subr.bf16.mxu0 %v1337
    %1359 = vmatpush1.bf16.msra.mxu0 %v1336
    %1360 = vmatprep.subr.bf16.mxu0 %v1335
    %1361 = vmatpush1.bf16.msra.mxu0 %v1334
    %1362 = vmatprep.subr.bf16.mxu0 %v1333
    %1363 = vmatpush1.bf16.msra.mxu0 %v1332
    %1364 = vmatprep.subr.bf16.mxu0 %v1331
    %1365 = vmatpush1.bf16.msra.mxu0 %v1330
    %1366 = vmatprep.subr.bf16.mxu0 %v1329
    %1367 = vmatpush1.bf16.msra.mxu0 %v1328
    %1368 = vmatprep.subr.bf16.mxu0 %v1327
    %1369 = vmatpush1.bf16.msra.mxu0 %v1326
    %1370 = vmatprep.subr.bf16.mxu0 %v1325
    %1371 = vmatpush1.bf16.msra.mxu0 %v1324
    %1372 = vmatprep.subr.bf16.mxu0 0
    %1373 = vmatpush2.bf16.msra.mxu0 0
    %1374 = vmatprep.subr.bf16.mxu0 0
    %1375 = vmatpush2.bf16.msra.mxu0 0
    %1376 = vmatprep.subr.bf16.mxu0 0
    %1377 = vmatpush2.bf16.msra.mxu0 0
    %1378 = vmatprep.subr.bf16.mxu0 0
    %1379 = vmatpush2.bf16.msra.mxu0 0
    %1380 = vmatprep.subr.bf16.mxu0 0
    %1381 = vmatpush2.bf16.msra.mxu0 0
    %1382 = vmatprep.subr.bf16.mxu0 0
    %1383 = vmatpush2.bf16.msra.mxu0 0
    %1384 = vmatprep.subr.bf16.mxu0 0
    %1385 = vmatpush2.bf16.msra.mxu0 0
    %1386 = vmatprep.subr.bf16.mxu0 0
    %1387 = vmatpush2.bf16.msra.mxu0 0
    %1388 = vmatprep.mubr.bf16.mxu0 0
    %1389 = vmatmul.mubr.bf16.gmra.mxu0 %v1246
    %v1390 = vpop.f32.mrf.mxu0
    %v1391 = vadd.f32 %v1269, %v1390
    %v1392 = vpop.f32.mrf.mxu0
    %v1393 = vadd.f32 %v1273, %v1392
    %v1394 = vpop.f32.mrf.mxu0
    %v1395 = vadd.f32 %v1269, %v1394
    %v1396 = vpop.f32.mrf.mxu0
    %v1397 = vadd.f32 %v1273, %v1396
    %1398 = vmatprep.mubr.bf16.mxu0 0
    %1399 = vmatmul.mubr.bf16.gmra.mxu0 %v1247
    %v1400 = vpop.f32.mrf.mxu0
    %v1401 = vadd.f32 %v1269, %v1400
    %v1402 = vpop.f32.mrf.mxu0
    %v1403 = vadd.f32 %v1273, %v1402
    %v1404 = vpop.f32.mrf.mxu0
    %v1405 = vadd.f32 %v1269, %v1404
    %v1406 = vpop.f32.mrf.mxu0
    %v1407 = vadd.f32 %v1273, %v1406
    %1408 = vdwg.mxu0
    %v1409 = vmul.f32 %v1391, 0.5
    %v1410 = vmul.f32 %v1393, 0.5
    %v1411 = vmul.f32 %v1395, 0.5
    %v1412 = vmul.f32 %v1397, 0.5
    %v1413 = vmul.f32 %v1401, 0.5
    %v1414 = vmul.f32 %v1403, 0.5
    %v1415 = vmul.f32 %v1405, 0.5
    %v1416 = vmul.f32 %v1407, 0.5
    %v1417 = vmul.f32 %v1391, 0.044715
    %v1418 = vmul.f32 %v1393, 0.044715
    %v1419 = vmul.f32 %v1395, 0.044715
    %v1420 = vmul.f32 %v1397, 0.044715
    %v1421 = vmul.f32 %v1401, 0.044715
    %v1422 = vmul.f32 %v1403, 0.044715
    %v1423 = vmul.f32 %v1405, 0.044715
    %v1424 = vmul.f32 %v1407, 0.044715
    %v1425 = vmul.f32 %v1417, %v1391
    %v1426 = vmul.f32 %v1418, %v1393
    %v1427 = vmul.f32 %v1419, %v1395
    %v1428 = vmul.f32 %v1420, %v1397
    %v1429 = vmul.f32 %v1421, %v1401
    %v1430 = vmul.f32 %v1422, %v1403
    %v1431 = vmul.f32 %v1423, %v1405
    %v1432 = vmul.f32 %v1424, %v1407
    %v1433 = vmul.f32 %v1425, %v1391
    %v1434 = vmul.f32 %v1426, %v1393
    %v1435 = vmul.f32 %v1427, %v1395
    %v1436 = vmul.f32 %v1428, %v1397
    %v1437 = vmul.f32 %v1429, %v1401
    %v1438 = vmul.f32 %v1430, %v1403
    %v1439 = vmul.f32 %v1431, %v1405
    %v1440 = vmul.f32 %v1432, %v1407
    %v1441 = vadd.f32 %v1391, %v1433
    %v1442 = vadd.f32 %v1393, %v1434
    %v1443 = vadd.f32 %v1395, %v1435
    %v1444 = vadd.f32 %v1397, %v1436
    %v1445 = vadd.f32 %v1401, %v1437
    %v1446 = vadd.f32 %v1403, %v1438
    %v1447 = vadd.f32 %v1405, %v1439
    %v1448 = vadd.f32 %v1407, %v1440
    %v1449 = vmul.f32 %v1441, 0.7978846
    %v1450 = vmul.f32 %v1442, 0.7978846
    %v1451 = vmul.f32 %v1443, 0.7978846
    %v1452 = vmul.f32 %v1444, 0.7978846
    %v1453 = vmul.f32 %v1445, 0.7978846
    %v1454 = vmul.f32 %v1446, 0.7978846
    %v1455 = vmul.f32 %v1447, 0.7978846
    %v1456 = vmul.f32 %v1448, 0.7978846
    %v1457 = vtanh.pop %v1449
    %v1458 = vtanh.pop %v1450
    %v1459 = vtanh.pop %v1451
    %v1460 = vtanh.pop %v1452
    %v1461 = vtanh.pop %v1453
    %v1462 = vtanh.pop %v1454
    %v1463 = vtanh.pop %v1455
    %v1464 = vtanh.pop %v1456
    %v1465 = vadd.f32 %v1457, 1.0
    %v1466 = vadd.f32 %v1458, 1.0
    %v1467 = vadd.f32 %v1459, 1.0
    %v1468 = vadd.f32 %v1460, 1.0
    %v1469 = vadd.f32 %v1461, 1.0
    %v1470 = vadd.f32 %v1462, 1.0
    %v1471 = vadd.f32 %v1463, 1.0
    %v1472 = vadd.f32 %v1464, 1.0
    %v1473 = vmul.f32 %v1409, %v1465
    %v1474 = vmul.f32 %v1410, %v1466
    %v1475 = vmul.f32 %v1411, %v1467
    %v1476 = vmul.f32 %v1412, %v1468
    %v1477 = vmul.f32 %v1413, %v1469
    %v1478 = vmul.f32 %v1414, %v1470
    %v1479 = vmul.f32 %v1415, %v1471
    %v1480 = vmul.f32 %v1416, %v1472
    %v1481 = vpack.c.bf16 %v1475, %v1473
    %v1482 = vpack.c.bf16 %v1476, %v1474
    %v1483 = vpack.c.bf16 %v1479, %v1477
    %v1484 = vpack.c.bf16 %v1480, %v1478
    %v1485 = vld [vmem:[#allocation5] sm:$0xf]
    %v1486 = vld [vmem:[#allocation5 + $0x4] sm:$0xf]
    %v1487 = vld [vmem:[#allocation5 + $0x8] sm:$0xf]
    %v1488 = vld [vmem:[#allocation5 + $0xc] sm:$0xf]
    %v1489 = vld [vmem:[#allocation5 + $0x10] sm:$0xf]
    %v1490 = vld [vmem:[#allocation5 + $0x14] sm:$0xf]
    %v1491 = vld [vmem:[#allocation5 + $0x18] sm:$0xf]
    %v1492 = vld [vmem:[#allocation5 + $0x1c] sm:$0xf]
    %v1493 = vld [vmem:[#allocation5 + $0x20] sm:$0xf]
    %v1494 = vld [vmem:[#allocation5 + $0x24] sm:$0xf]
    %v1495 = vld [vmem:[#allocation5 + $0x28] sm:$0xf]
    %v1496 = vld [vmem:[#allocation5 + $0x2c] sm:$0xf]
    %v1497 = vld [vmem:[#allocation5 + $0x30] sm:$0xf]
    %v1498 = vld [vmem:[#allocation5 + $0x34] sm:$0xf]
    %v1499 = vld [vmem:[#allocation5 + $0x38] sm:$0xf]
    %v1500 = vld [vmem:[#allocation5 + $0x3c] sm:$0xf]
    %v1501 = vld [vmem:[#allocation5 + $0x40] sm:$0xf]
    %v1502 = vld [vmem:[#allocation5 + $0x44] sm:$0xf]
    %v1503 = vld [vmem:[#allocation5 + $0x48] sm:$0xf]
    %v1504 = vld [vmem:[#allocation5 + $0x4c] sm:$0xf]
    %v1505 = vld [vmem:[#allocation5 + $0x50] sm:$0xf]
    %v1506 = vld [vmem:[#allocation5 + $0x54] sm:$0xf]
    %v1507 = vld [vmem:[#allocation5 + $0x58] sm:$0xf]
    %v1508 = vld [vmem:[#allocation5 + $0x5c] sm:$0xf]
    %v1509 = vld [vmem:[#allocation5 + $0x60] sm:$0xf]
    %v1510 = vld [vmem:[#allocation5 + $0x64] sm:$0xf]
    %v1511 = vld [vmem:[#allocation5 + $0x68] sm:$0xf]
    %v1512 = vld [vmem:[#allocation5 + $0x6c] sm:$0xf]
    %v1513 = vld [vmem:[#allocation5 + $0x70] sm:$0xf]
    %v1514 = vld [vmem:[#allocation5 + $0x74] sm:$0xf]
    %v1515 = vld [vmem:[#allocation5 + $0x78] sm:$0xf]
    %v1516 = vld [vmem:[#allocation5 + $0x7c] sm:$0xf]
    %v1517 = vld [vmem:[%s13] sm:$0x1]
    %v1519 = vlaneseq
    %v1520 = vshrl.u32 %v1519, 7
    %v1521 = vsub.s32 0, %v1520
    %v1522 = vrot.slane %v1517, %v1521
    %v1556 = vunpack.c.l.b16 %v1485
    %v1557 = vunpack.c.l.b16 %v1486
    %v1558 = vunpack.c.l.b16 %v1487
    %v1559 = vunpack.c.l.b16 %v1488
    %v1560 = vunpack.c.l.b16 %v1489
    %v1561 = vunpack.c.l.b16 %v1490
    %v1562 = vunpack.c.l.b16 %v1491
    %v1563 = vunpack.c.l.b16 %v1492
    %v1564 = vunpack.c.l.b16 %v1493
    %v1565 = vunpack.c.l.b16 %v1494
    %v1566 = vunpack.c.l.b16 %v1495
    %v1567 = vunpack.c.l.b16 %v1496
    %v1568 = vunpack.c.l.b16 %v1497
    %v1569 = vunpack.c.l.b16 %v1498
    %v1570 = vunpack.c.l.b16 %v1499
    %v1571 = vunpack.c.l.b16 %v1500
    %v1572 = vunpack.c.l.b16 %v1501
    %v1573 = vunpack.c.l.b16 %v1502
    %v1574 = vunpack.c.l.b16 %v1503
    %v1575 = vunpack.c.l.b16 %v1504
    %v1576 = vunpack.c.l.b16 %v1505
    %v1577 = vunpack.c.l.b16 %v1506
    %v1578 = vunpack.c.l.b16 %v1507
    %v1579 = vunpack.c.l.b16 %v1508
    %v1580 = vunpack.c.l.b16 %v1509
    %v1581 = vunpack.c.l.b16 %v1510
    %v1582 = vunpack.c.l.b16 %v1511
    %v1583 = vunpack.c.l.b16 %v1512
    %v1584 = vunpack.c.l.b16 %v1513
    %v1585 = vunpack.c.l.b16 %v1514
    %v1586 = vunpack.c.l.b16 %v1515
    %v1587 = vunpack.c.l.b16 %v1516
    %v1588 = vpack.c.b16 %v1557, %v1556
    %v1589 = vpack.c.b16 %v1559, %v1558
    %v1590 = vpack.c.b16 %v1561, %v1560
    %v1591 = vpack.c.b16 %v1563, %v1562
    %v1592 = vpack.c.b16 %v1565, %v1564
    %v1593 = vpack.c.b16 %v1567, %v1566
    %v1594 = vpack.c.b16 %v1569, %v1568
    %v1595 = vpack.c.b16 %v1571, %v1570
    %v1596 = vpack.c.b16 %v1573, %v1572
    %v1597 = vpack.c.b16 %v1575, %v1574
    %v1598 = vpack.c.b16 %v1577, %v1576
    %v1599 = vpack.c.b16 %v1579, %v1578
    %v1600 = vpack.c.b16 %v1581, %v1580
    %v1601 = vpack.c.b16 %v1583, %v1582
    %v1602 = vpack.c.b16 %v1585, %v1584
    %v1603 = vpack.c.b16 %v1587, %v1586
    %1620 = vmatprep.subr.bf16.mxu0 0
    %1621 = vmatpush1.bf16.msra.mxu0 %v1595
    %1622 = vmatprep.subr.bf16.mxu0 0
    %1623 = vmatpush1.bf16.msra.mxu0 %v1594
    %1624 = vmatprep.subr.bf16.mxu0 0
    %1625 = vmatpush1.bf16.msra.mxu0 %v1593
    %1626 = vmatprep.subr.bf16.mxu0 0
    %1627 = vmatpush1.bf16.msra.mxu0 %v1592
    %1628 = vmatprep.subr.bf16.mxu0 0
    %1629 = vmatpush1.bf16.msra.mxu0 %v1591
    %1630 = vmatprep.subr.bf16.mxu0 0
    %1631 = vmatpush1.bf16.msra.mxu0 %v1590
    %1632 = vmatprep.subr.bf16.mxu0 0
    %1633 = vmatpush1.bf16.msra.mxu0 %v1589
    %1634 = vmatprep.subr.bf16.mxu0 0
    %1635 = vmatpush1.bf16.msra.mxu0 %v1588
    %1636 = vmatprep.subr.bf16.mxu0 0
    %1637 = vmatpush2.bf16.msra.mxu0 %v1603
    %1638 = vmatprep.subr.bf16.mxu0 0
    %1639 = vmatpush2.bf16.msra.mxu0 %v1602
    %1640 = vmatprep.subr.bf16.mxu0 0
    %1641 = vmatpush2.bf16.msra.mxu0 %v1601
    %1642 = vmatprep.subr.bf16.mxu0 0
    %1643 = vmatpush2.bf16.msra.mxu0 %v1600
    %1644 = vmatprep.subr.bf16.mxu0 0
    %1645 = vmatpush2.bf16.msra.mxu0 %v1599
    %1646 = vmatprep.subr.bf16.mxu0 0
    %1647 = vmatpush2.bf16.msra.mxu0 %v1598
    %1648 = vmatprep.subr.bf16.mxu0 0
    %1649 = vmatpush2.bf16.msra.mxu0 %v1597
    %1650 = vmatprep.subr.bf16.mxu0 0
    %1651 = vmatpush2.bf16.msra.mxu0 %v1596
    %1652 = vmatprep.mubr.bf16.mxu0 %v1482
    %1653 = vmatmul.mubr.bf16.gmra.mxu0 %v1481
    %v1654 = vpop.f32.mrf.mxu0
    %v1655 = vadd.f32 %v1522, %v1654
    %v1656 = vpop.f32.mrf.mxu0
    %v1657 = vpop.f32.mrf.mxu0
    %v1658 = vadd.f32 %v1522, %v1657
    %v1659 = vpop.f32.mrf.mxu0
    %1660 = vmatprep.mubr.bf16.mxu0 %v1484
    %1661 = vmatmul.mubr.bf16.gmra.mxu0 %v1483
    %v1662 = vpop.f32.mrf.mxu0
    %v1663 = vadd.f32 %v1522, %v1662
    %v1664 = vpop.f32.mrf.mxu0
    %v1665 = vpop.f32.mrf.mxu0
    %v1666 = vadd.f32 %v1522, %v1665
    %v1667 = vpop.f32.mrf.mxu0
    %1668 = vdwg.mxu0
    %v1669 = vadd.f32 %v1242, %v1655
    %v1670 = vadd.f32 %v1243, %v1658
    %v1671 = vadd.f32 %v1244, %v1663
    %v1672 = vadd.f32 %v1245, %v1666
    %v1673 = vld [vmem:[%s14] sm:$0x1]
    %v1674 = vld [vmem:[%s15] sm:$0x1]
    %1675 = vadd.xlane.f32.xlu0 %v1669
    %v1676 = vpop.xlane.xlu0 %1675
    %1677 = vadd.xlane.f32.xlu0 %v1670
    %v1678 = vpop.xlane.xlu0 %1677
    %1679 = vadd.xlane.f32.xlu0 %v1671
    %v1680 = vpop.xlane.xlu0 %1679
    %1681 = vadd.xlane.f32.xlu0 %v1672
    %v1682 = vpop.xlane.xlu0 %1681
    %v1683 = vmul.f32 %v1676, %v117
    %v1684 = vmul.f32 %v1678, %v117
    %v1685 = vmul.f32 %v1680, %v117
    %v1686 = vmul.f32 %v1682, %v117
    %v1687 = vsub.f32 %v1669, %v1683
    %v1688 = vsub.f32 %v1670, %v1684
    %v1689 = vsub.f32 %v1671, %v1685
    %v1690 = vsub.f32 %v1672, %v1686
    %v1691 = vmul.f32 %v1687, %v1687
    %v1692 = vmul.f32 %v1688, %v1688
    %v1693 = vmul.f32 %v1689, %v1689
    %v1694 = vmul.f32 %v1690, %v1690
    %1695 = vadd.xlane.f32.xlu0 %v1691
    %v1696 = vpop.xlane.xlu0 %1695
    %1697 = vadd.xlane.f32.xlu0 %v1692
    %v1698 = vpop.xlane.xlu0 %1697
    %1699 = vadd.xlane.f32.xlu0 %v1693
    %v1700 = vpop.xlane.xlu0 %1699
    %1701 = vadd.xlane.f32.xlu0 %v1694
    %v1702 = vpop.xlane.xlu0 %1701
    %v1703 = vmul.f32 %v1696, %v117
    %v1704 = vmul.f32 %v1698, %v117
    %v1705 = vmul.f32 %v1700, %v117
    %v1706 = vmul.f32 %v1702, %v117
    %v1707 = vadd.f32 %v1703, 1e-05
    %v1708 = vadd.f32 %v1704, 1e-05
    %v1709 = vadd.f32 %v1705, 1e-05
    %v1710 = vadd.f32 %v1706, 1e-05
    %v1711 = vrsqrt.pop %v1707
    %v1712 = vrsqrt.pop %v1708
    %v1713 = vrsqrt.pop %v1709
    %v1714 = vrsqrt.pop %v1710
    %v1715 = vmul.f32 %v1687, %v1711
    %v1716 = vmul.f32 %v1688, %v1712
    %v1717 = vmul.f32 %v1689, %v1713
    %v1718 = vmul.f32 %v1690, %v1714
    %v1720 = vlaneseq
    %v1721 = vshrl.u32 %v1720, 7
    %v1722 = vsub.s32 0, %v1721
    %v1723 = vrot.slane %v1673, %v1722
    %v1725 = vmul.f32 %v1715, %v1723
    %v1726 = vmul.f32 %v1716, %v1723
    %v1727 = vmul.f32 %v1717, %v1723
    %v1728 = vmul.f32 %v1718, %v1723
    %v1730 = vlaneseq
    %v1731 = vshrl.u32 %v1730, 7
    %v1732 = vsub.s32 0, %v1731
    %v1733 = vrot.slane %v1674, %v1732
    %v1735 = vadd.f32 %v1725, %v1733
    %v1736 = vadd.f32 %v1726, %v1733
    %v1737 = vadd.f32 %v1727, %v1733
    %v1738 = vadd.f32 %v1728, %v1733
    %v1739 = vpack.c.bf16 %v1736, %v1735
    %v1740 = vpack.c.bf16 %v1738, %v1737
    %s1741 = scalar_lea.vmem %s4, 192
    %v1742 = vld [vmem:[%s1741] sm:$0xff]
    %v1743 = vld [vmem:[%s1741 + $0x8] sm:$0xf]
    %v1744 = vld [vmem:[%s1741 + $0xc] sm:$0xff]
    %v1745 = vld [vmem:[%s1741 + $0x14] sm:$0xf]
    %v1746 = vld [vmem:[%s1741 + $0x18] sm:$0xff]
    %v1747 = vld [vmem:[%s1741 + $0x20] sm:$0xf]
    %v1748 = vld [vmem:[%s1741 + $0x24] sm:$0xff]
    %v1749 = vld [vmem:[%s1741 + $0x2c] sm:$0xf]
    %v1750 = vld [vmem:[%s1741 + $0x30] sm:$0xff]
    %v1751 = vld [vmem:[%s1741 + $0x38] sm:$0xf]
    %v1752 = vld [vmem:[%s1741 + $0x3c] sm:$0xff]
    %v1753 = vld [vmem:[%s1741 + $0x44] sm:$0xf]
    %v1754 = vld [vmem:[%s1741 + $0x48] sm:$0xff]
    %v1755 = vld [vmem:[%s1741 + $0x50] sm:$0xf]
    %v1756 = vld [vmem:[%s1741 + $0x54] sm:$0xff]
    %v1757 = vld [vmem:[%s1741 + $0x5c] sm:$0xf]
    %v1758 = vld [vmem:[%s1741 + $0x60] sm:$0xff]
    %v1759 = vld [vmem:[%s1741 + $0x68] sm:$0xf]
    %v1760 = vld [vmem:[%s1741 + $0x6c] sm:$0xff]
    %v1761 = vld [vmem:[%s1741 + $0x74] sm:$0xf]
    %v1762 = vld [vmem:[%s1741 + $0x78] sm:$0xff]
    %v1763 = vld [vmem:[%s1741 + $0x80] sm:$0xf]
    %v1764 = vld [vmem:[%s1741 + $0x84] sm:$0xff]
    %v1765 = vld [vmem:[%s1741 + $0x8c] sm:$0xf]
    %v1766 = vld [vmem:[%s1741 + $0x90] sm:$0xff]
    %v1767 = vld [vmem:[%s1741 + $0x98] sm:$0xf]
    %v1768 = vld [vmem:[%s1741 + $0x9c] sm:$0xff]
    %v1769 = vld [vmem:[%s1741 + $0xa4] sm:$0xf]
    %v1770 = vld [vmem:[%s1741 + $0xa8] sm:$0xff]
    %v1771 = vld [vmem:[%s1741 + $0xb0] sm:$0xf]
    %v1772 = vld [vmem:[%s1741 + $0xb4] sm:$0xff]
    %v1773 = vld [vmem:[%s1741 + $0xbc] sm:$0xf]
    %s1774 = scalar_lea.vmem %s5, 3
    %v1775 = vld [vmem:[%s1774] sm:$0x7]
    %v1777 = vlaneseq
    %v1778 = vshrl.u32 %v1777, 7
    %v1779 = vsub.s32 0, %v1778
    %v1780 = vrot.slane %v1775, %v1779
    %v1781 = vlaneseq
    %v1782 = vshrl.u32 %v1781, 7
    %v1783 = vsub.s32 1, %v1782
    %v1784 = vrot.slane %v1775, %v1783
    %v1785 = vlaneseq
    %v1786 = vshrl.u32 %v1785, 7
    %v1787 = vsub.s32 2, %v1786
    %v1788 = vrot.slane %v1775, %v1787
    %v1824 = vunpack.c.l.b16 %v1742
    %v1825 = vunpack.c.h.b16 %v1742
    %v1826 = vunpack.c.l.b16 %v1743
    %v1827 = vunpack.c.l.b16 %v1744
    %v1828 = vunpack.c.h.b16 %v1744
    %v1829 = vunpack.c.l.b16 %v1745
    %v1830 = vunpack.c.l.b16 %v1746
    %v1831 = vunpack.c.h.b16 %v1746
    %v1832 = vunpack.c.l.b16 %v1747
    %v1833 = vunpack.c.l.b16 %v1748
    %v1834 = vunpack.c.h.b16 %v1748
    %v1835 = vunpack.c.l.b16 %v1749
    %v1836 = vunpack.c.l.b16 %v1750
    %v1837 = vunpack.c.h.b16 %v1750
    %v1838 = vunpack.c.l.b16 %v1751
    %v1839 = vunpack.c.l.b16 %v1752
    %v1840 = vunpack.c.h.b16 %v1752
    %v1841 = vunpack.c.l.b16 %v1753
    %v1842 = vunpack.c.l.b16 %v1754
    %v1843 = vunpack.c.h.b16 %v1754
    %v1844 = vunpack.c.l.b16 %v1755
    %v1845 = vunpack.c.l.b16 %v1756
    %v1846 = vunpack.c.h.b16 %v1756
    %v1847 = vunpack.c.l.b16 %v1757
    %v1848 = vunpack.c.l.b16 %v1758
    %v1849 = vunpack.c.h.b16 %v1758
    %v1850 = vunpack.c.l.b16 %v1759
    %v1851 = vunpack.c.l.b16 %v1760
    %v1852 = vunpack.c.h.b16 %v1760
    %v1853 = vunpack.c.l.b16 %v1761
    %v1854 = vunpack.c.l.b16 %v1762
    %v1855 = vunpack.c.h.b16 %v1762
    %v1856 = vunpack.c.l.b16 %v1763
    %v1857 = vunpack.c.l.b16 %v1764
    %v1858 = vunpack.c.h.b16 %v1764
    %v1859 = vunpack.c.l.b16 %v1765
    %v1860 = vunpack.c.l.b16 %v1766
    %v1861 = vunpack.c.h.b16 %v1766
    %v1862 = vunpack.c.l.b16 %v1767
    %v1863 = vunpack.c.l.b16 %v1768
    %v1864 = vunpack.c.h.b16 %v1768
    %v1865 = vunpack.c.l.b16 %v1769
    %v1866 = vunpack.c.l.b16 %v1770
    %v1867 = vunpack.c.h.b16 %v1770
    %v1868 = vunpack.c.l.b16 %v1771
    %v1869 = vunpack.c.l.b16 %v1772
    %v1870 = vunpack.c.h.b16 %v1772
    %v1871 = vunpack.c.l.b16 %v1773
    %v1872 = vpack.c.b16 %v1827, %v1824
    %v1873 = vpack.c.b16 %v1828, %v1825
    %v1874 = vpack.c.b16 %v1829, %v1826
    %v1875 = vpack.c.b16 %v1833, %v1830
    %v1876 = vpack.c.b16 %v1834, %v1831
    %v1877 = vpack.c.b16 %v1835, %v1832
    %v1878 = vpack.c.b16 %v1839, %v1836
    %v1879 = vpack.c.b16 %v1840, %v1837
    %v1880 = vpack.c.b16 %v1841, %v1838
    %v1881 = vpack.c.b16 %v1845, %v1842
    %v1882 = vpack.c.b16 %v1846, %v1843
    %v1883 = vpack.c.b16 %v1847, %v1844
    %v1884 = vpack.c.b16 %v1851, %v1848
    %v1885 = vpack.c.b16 %v1852, %v1849
    %v1886 = vpack.c.b16 %v1853, %v1850
    %v1887 = vpack.c.b16 %v1857, %v1854
    %v1888 = vpack.c.b16 %v1858, %v1855
    %v1889 = vpack.c.b16 %v1859, %v1856
    %v1890 = vpack.c.b16 %v1863, %v1860
    %v1891 = vpack.c.b16 %v1864, %v1861
    %v1892 = vpack.c.b16 %v1865, %v1862
    %v1893 = vpack.c.b16 %v1869, %v1866
    %v1894 = vpack.c.b16 %v1870, %v1867
    %v1895 = vpack.c.b16 %v1871, %v1868
    %1920 = vmatprep.subr.bf16.mxu0 %v1894
    %1921 = vmatpush1.bf16.msra.mxu0 %v1893
    %1922 = vmatprep.subr.bf16.mxu0 %v1891
    %1923 = vmatpush1.bf16.msra.mxu0 %v1890
    %1924 = vmatprep.subr.bf16.mxu0 %v1888
    %1925 = vmatpush1.bf16.msra.mxu0 %v1887
    %1926 = vmatprep.subr.bf16.mxu0 %v1885
    %1927 = vmatpush1.bf16.msra.mxu0 %v1884
    %1928 = vmatprep.subr.bf16.mxu0 %v1882
    %1929 = vmatpush1.bf16.msra.mxu0 %v1881
    %1930 = vmatprep.subr.bf16.mxu0 %v1879
    %1931 = vmatpush1.bf16.msra.mxu0 %v1878
    %1932 = vmatprep.subr.bf16.mxu0 %v1876
    %1933 = vmatpush1.bf16.msra.mxu0 %v1875
    %1934 = vmatprep.subr.bf16.mxu0 %v1873
    %1935 = vmatpush1.bf16.msra.mxu0 %v1872
    %1936 = vmatprep.subr.bf16.mxu0 0
    %1937 = vmatpush2.bf16.msra.mxu0 0
    %1938 = vmatprep.subr.bf16.mxu0 0
    %1939 = vmatpush2.bf16.msra.mxu0 0
    %1940 = vmatprep.subr.bf16.mxu0 0
    %1941 = vmatpush2.bf16.msra.mxu0 0
    %1942 = vmatprep.subr.bf16.mxu0 0
    %1943 = vmatpush2.bf16.msra.mxu0 0
    %1944 = vmatprep.subr.bf16.mxu0 0
    %1945 = vmatpush2.bf16.msra.mxu0 0
    %1946 = vmatprep.subr.bf16.mxu0 0
    %1947 = vmatpush2.bf16.msra.mxu0 0
    %1948 = vmatprep.subr.bf16.mxu0 0
    %1949 = vmatpush2.bf16.msra.mxu0 0
    %1950 = vmatprep.subr.bf16.mxu0 0
    %1951 = vmatpush2.bf16.msra.mxu0 0
    %1952 = vmatprep.mubr.bf16.mxu0 0
    %1953 = vmatmul.mubr.bf16.gmra.mxu0 %v1739
    %v1954 = vpop.f32.mrf.mxu0
    %v1955 = vadd.f32 %v1780, %v1954
    %v1956 = vpop.f32.mrf.mxu0
    %v1957 = vadd.f32 %v1784, %v1956
    %v1958 = vpop.f32.mrf.mxu0
    %v1959 = vadd.f32 %v1780, %v1958
    %v1960 = vpop.f32.mrf.mxu0
    %v1961 = vadd.f32 %v1784, %v1960
    %1962 = vmatprep.mubr.bf16.mxu0 0
    %1963 = vmatmul.mubr.bf16.gmra.mxu0 %v1740
    %v1964 = vpop.f32.mrf.mxu0
    %v1965 = vadd.f32 %v1780, %v1964
    %v1966 = vpop.f32.mrf.mxu0
    %v1967 = vadd.f32 %v1784, %v1966
    %v1968 = vpop.f32.mrf.mxu0
    %v1969 = vadd.f32 %v1780, %v1968
    %v1970 = vpop.f32.mrf.mxu0
    %v1971 = vadd.f32 %v1784, %v1970
    %1972 = vdwg.mxu0
    %1973 = vmatprep.subr.bf16.mxu0 0
    %1974 = vmatpush1.bf16.msra.mxu0 %v1895
    %1975 = vmatprep.subr.bf16.mxu0 0
    %1976 = vmatpush1.bf16.msra.mxu0 %v1892
    %1977 = vmatprep.subr.bf16.mxu0 0
    %1978 = vmatpush1.bf16.msra.mxu0 %v1889
    %1979 = vmatprep.subr.bf16.mxu0 0
    %1980 = vmatpush1.bf16.msra.mxu0 %v1886
    %1981 = vmatprep.subr.bf16.mxu0 0
    %1982 = vmatpush1.bf16.msra.mxu0 %v1883
    %1983 = vmatprep.subr.bf16.mxu0 0
    %1984 = vmatpush1.bf16.msra.mxu0 %v1880
    %1985 = vmatprep.subr.bf16.mxu0 0
    %1986 = vmatpush1.bf16.msra.mxu0 %v1877
    %1987 = vmatprep.subr.bf16.mxu0 0
    %1988 = vmatpush1.bf16.msra.mxu0 %v1874
    %1989 = vmatprep.subr.bf16.mxu0 0
    %1990 = vmatpush2.bf16.msra.mxu0 0
    %1991 = vmatprep.subr.bf16.mxu0 0
    %1992 = vmatpush2.bf16.msra.mxu0 0
    %1993 = vmatprep.subr.bf16.mxu0 0
    %1994 = vmatpush2.bf16.msra.mxu0 0
    %1995 = vmatprep.subr.bf16.mxu0 0
    %1996 = vmatpush2.bf16.msra.mxu0 0
    %1997 = vmatprep.subr.bf16.mxu0 0
    %1998 = vmatpush2.bf16.msra.mxu0 0
    %1999 = vmatprep.subr.bf16.mxu0 0
    %2000 = vmatpush2.bf16.msra.mxu0 0
    %2001 = vmatprep.subr.bf16.mxu0 0
    %2002 = vmatpush2.bf16.msra.mxu0 0
    %2003 = vmatprep.subr.bf16.mxu0 0
    %2004 = vmatpush2.bf16.msra.mxu0 0
    %2005 = vmatprep.mubr.bf16.mxu0 0
    %2006 = vmatmul.mubr.bf16.gmra.mxu0 %v1739
    %v2007 = vpop.f32.mrf.mxu0
    %v2008 = vadd.f32 %v1788, %v2007
    %v2009 = vpop.f32.mrf.mxu0
    %v2010 = vpop.f32.mrf.mxu0
    %v2011 = vadd.f32 %v1788, %v2010
    %v2012 = vpop.f32.mrf.mxu0
    %2013 = vmatprep.mubr.bf16.mxu0 0
    %2014 = vmatmul.mubr.bf16.gmra.mxu0 %v1740
    %v2015 = vpop.f32.mrf.mxu0
    %v2016 = vadd.f32 %v1788, %v2015
    %v2017 = vpop.f32.mrf.mxu0
    %v2018 = vpop.f32.mrf.mxu0
    %v2019 = vadd.f32 %v1788, %v2018
    %v2020 = vpop.f32.mrf.mxu0
    %2021 = vdwg.mxu0
    %2026 = vrot.lane.b32.xlu0 %v1955, 64
    %v2027 = vpop.permute.xlu0 %2026
    %2028 = vrot.lane.b32.xlu0 %v1959, 64
    %v2029 = vpop.permute.xlu0 %2028
    %2030 = vrot.lane.b32.xlu0 %v1965, 64
    %v2031 = vpop.permute.xlu0 %2030
    %2032 = vrot.lane.b32.xlu0 %v1969, 64
    %v2033 = vpop.permute.xlu0 %2032
    %v2038 = vpack.c.bf16 %v1959, %v1955
    %v2039 = vpack.c.bf16 %v1969, %v1965
    %v2040 = vpack.c.bf16 %v2029, %v2027
    %v2041 = vpack.c.bf16 %v2033, %v2031
    %2046 = vrot.lane.b32.xlu0 %v1957, 64
    %v2047 = vpop.permute.xlu0 %2046
    %2048 = vrot.lane.b32.xlu0 %v1961, 64
    %v2049 = vpop.permute.xlu0 %2048
    %2050 = vrot.lane.b32.xlu0 %v1967, 64
    %v2051 = vpop.permute.xlu0 %2050
    %2052 = vrot.lane.b32.xlu0 %v1971, 64
    %v2053 = vpop.permute.xlu0 %2052
    %v2058 = vpack.c.bf16 %v1961, %v1957
    %v2059 = vpack.c.bf16 %v1971, %v1967
    %v2060 = vpack.c.bf16 %v2049, %v2047
    %v2061 = vpack.c.bf16 %v2053, %v2051
    %2066 = vrot.lane.b32.xlu0 %v2008, 64
    %v2067 = vpop.permute.xlu0 %2066
    %2068 = vrot.lane.b32.xlu0 %v2011, 64
    %v2069 = vpop.permute.xlu0 %2068
    %2070 = vrot.lane.b32.xlu0 %v2016, 64
    %v2071 = vpop.permute.xlu0 %2070
    %2072 = vrot.lane.b32.xlu0 %v2019, 64
    %v2073 = vpop.permute.xlu0 %2072
    %v2078 = vpack.c.bf16 %v2011, %v2008
    %v2079 = vpack.c.bf16 %v2019, %v2016
    %v2080 = vpack.c.bf16 %v2069, %v2067
    %v2081 = vpack.c.bf16 %v2073, %v2071
    %v2083 = vsel %vm529, %v2038, 0
    %v2086 = vsel %vm529, %v2058, 0
    %2088 = vmatprep.subr.bf16.mxu0 0
    %2089 = vmatpush1.bf16.xpose.msra.mxu0 0
    %2090 = vmatprep.subr.bf16.mxu0 0
    %2091 = vmatpush1.bf16.xpose.msra.mxu0 0
    %2092 = vmatprep.subr.bf16.mxu0 0
    %2093 = vmatpush1.bf16.xpose.msra.mxu0 0
    %2094 = vmatprep.subr.bf16.mxu0 0
    %2095 = vmatpush1.bf16.xpose.msra.mxu0 0
    %2096 = vmatprep.subr.bf16.mxu0 0
    %2097 = vmatpush1.bf16.xpose.msra.mxu0 0
    %2098 = vmatprep.subr.bf16.mxu0 0
    %2099 = vmatpush1.bf16.xpose.msra.mxu0 0
    %2100 = vmatprep.subr.bf16.mxu0 0
    %2101 = vmatpush1.bf16.xpose.msra.mxu0 0
    %2102 = vmatprep.subr.bf16.mxu0 0
    %2103 = vmatpush1.bf16.xpose.msra.mxu0 %v2086
    %2104 = vmatprep.subr.bf16.mxu0 0
    %2105 = vmatpush2.bf16.xpose.msra.mxu0 0
    %2106 = vmatprep.subr.bf16.mxu0 0
    %2107 = vmatpush2.bf16.xpose.msra.mxu0 0
    %2108 = vmatprep.subr.bf16.mxu0 0
    %2109 = vmatpush2.bf16.xpose.msra.mxu0 0
    %2110 = vmatprep.subr.bf16.mxu0 0
    %2111 = vmatpush2.bf16.xpose.msra.mxu0 0
    %2112 = vmatprep.subr.bf16.mxu0 0
    %2113 = vmatpush2.bf16.xpose.msra.mxu0 0
    %2114 = vmatprep.subr.bf16.mxu0 0
    %2115 = vmatpush2.bf16.xpose.msra.mxu0 0
    %2116 = vmatprep.subr.bf16.mxu0 0
    %2117 = vmatpush2.bf16.xpose.msra.mxu0 0
    %2118 = vmatprep.subr.bf16.mxu0 0
    %2119 = vmatpush2.bf16.xpose.msra.mxu0 0
    %2120 = vmatprep.mubr.bf16.mxu0 0
    %2121 = vmatmul.mubr.bf16.gmra.mxu0 %v2083
    %v2122 = vpop.f32.mrf.mxu0
    %v2123 = vadd.f32 %v181, %v2122
    %v2124 = vpop.f32.mrf.mxu0
    %v2125 = vpop.f32.mrf.mxu0
    %v2126 = vadd.f32 %v181, %v2125
    %v2127 = vpop.f32.mrf.mxu0
    %2128 = vdwg.mxu0
    %v2130 = vsel %vm529, %v2039, 0
    %v2133 = vsel %vm529, %v2059, 0
    %2135 = vmatprep.subr.bf16.mxu0 0
    %2136 = vmatpush1.bf16.xpose.msra.mxu0 0
    %2137 = vmatprep.subr.bf16.mxu0 0
    %2138 = vmatpush1.bf16.xpose.msra.mxu0 0
    %2139 = vmatprep.subr.bf16.mxu0 0
    %2140 = vmatpush1.bf16.xpose.msra.mxu0 0
    %2141 = vmatprep.subr.bf16.mxu0 0
    %2142 = vmatpush1.bf16.xpose.msra.mxu0 0
    %2143 = vmatprep.subr.bf16.mxu0 0
    %2144 = vmatpush1.bf16.xpose.msra.mxu0 0
    %2145 = vmatprep.subr.bf16.mxu0 0
    %2146 = vmatpush1.bf16.xpose.msra.mxu0 0
    %2147 = vmatprep.subr.bf16.mxu0 0
    %2148 = vmatpush1.bf16.xpose.msra.mxu0 0
    %2149 = vmatprep.subr.bf16.mxu0 0
    %2150 = vmatpush1.bf16.xpose.msra.mxu0 %v2133
    %2151 = vmatprep.subr.bf16.mxu0 0
    %2152 = vmatpush2.bf16.xpose.msra.mxu0 0
    %2153 = vmatprep.subr.bf16.mxu0 0
    %2154 = vmatpush2.bf16.xpose.msra.mxu0 0
    %2155 = vmatprep.subr.bf16.mxu0 0
    %2156 = vmatpush2.bf16.xpose.msra.mxu0 0
    %2157 = vmatprep.subr.bf16.mxu0 0
    %2158 = vmatpush2.bf16.xpose.msra.mxu0 0
    %2159 = vmatprep.subr.bf16.mxu0 0
    %2160 = vmatpush2.bf16.xpose.msra.mxu0 0
    %2161 = vmatprep.subr.bf16.mxu0 0
    %2162 = vmatpush2.bf16.xpose.msra.mxu0 0
    %2163 = vmatprep.subr.bf16.mxu0 0
    %2164 = vmatpush2.bf16.xpose.msra.mxu0 0
    %2165 = vmatprep.subr.bf16.mxu0 0
    %2166 = vmatpush2.bf16.xpose.msra.mxu0 0
    %2167 = vmatprep.mubr.bf16.mxu0 0
    %2168 = vmatmul.mubr.bf16.gmra.mxu0 %v2130
    %v2169 = vpop.f32.mrf.mxu0
    %v2170 = vadd.f32 %v185, %v2169
    %v2171 = vpop.f32.mrf.mxu0
    %v2172 = vpop.f32.mrf.mxu0
    %v2173 = vadd.f32 %v185, %v2172
    %v2174 = vpop.f32.mrf.mxu0
    %2175 = vdwg.mxu0
    %v2177 = vsel %vm529, %v2040, 0
    %v2180 = vsel %vm529, %v2060, 0
    %2182 = vmatprep.subr.bf16.mxu0 0
    %2183 = vmatpush1.bf16.xpose.msra.mxu0 0
    %2184 = vmatprep.subr.bf16.mxu0 0
    %2185 = vmatpush1.bf16.xpose.msra.mxu0 0
    %2186 = vmatprep.subr.bf16.mxu0 0
    %2187 = vmatpush1.bf16.xpose.msra.mxu0 0
    %2188 = vmatprep.subr.bf16.mxu0 0
    %2189 = vmatpush1.bf16.xpose.msra.mxu0 0
    %2190 = vmatprep.subr.bf16.mxu0 0
    %2191 = vmatpush1.bf16.xpose.msra.mxu0 0
    %2192 = vmatprep.subr.bf16.mxu0 0
    %2193 = vmatpush1.bf16.xpose.msra.mxu0 0
    %2194 = vmatprep.subr.bf16.mxu0 0
    %2195 = vmatpush1.bf16.xpose.msra.mxu0 0
    %2196 = vmatprep.subr.bf16.mxu0 0
    %2197 = vmatpush1.bf16.xpose.msra.mxu0 %v2180
    %2198 = vmatprep.subr.bf16.mxu0 0
    %2199 = vmatpush2.bf16.xpose.msra.mxu0 0
    %2200 = vmatprep.subr.bf16.mxu0 0
    %2201 = vmatpush2.bf16.xpose.msra.mxu0 0
    %2202 = vmatprep.subr.bf16.mxu0 0
    %2203 = vmatpush2.bf16.xpose.msra.mxu0 0
    %2204 = vmatprep.subr.bf16.mxu0 0
    %2205 = vmatpush2.bf16.xpose.msra.mxu0 0
    %2206 = vmatprep.subr.bf16.mxu0 0
    %2207 = vmatpush2.bf16.xpose.msra.mxu0 0
    %2208 = vmatprep.subr.bf16.mxu0 0
    %2209 = vmatpush2.bf16.xpose.msra.mxu0 0
    %2210 = vmatprep.subr.bf16.mxu0 0
    %2211 = vmatpush2.bf16.xpose.msra.mxu0 0
    %2212 = vmatprep.subr.bf16.mxu0 0
    %2213 = vmatpush2.bf16.xpose.msra.mxu0 0
    %2214 = vmatprep.mubr.bf16.mxu0 0
    %2215 = vmatmul.mubr.bf16.gmra.mxu0 %v2177
    %v2216 = vpop.f32.mrf.mxu0
    %v2217 = vadd.f32 %v181, %v2216
    %v2218 = vpop.f32.mrf.mxu0
    %v2219 = vpop.f32.mrf.mxu0
    %v2220 = vadd.f32 %v181, %v2219
    %v2221 = vpop.f32.mrf.mxu0
    %2222 = vdwg.mxu0
    %v2224 = vsel %vm529, %v2041, 0
    %v2227 = vsel %vm529, %v2061, 0
    %2229 = vmatprep.subr.bf16.mxu0 0
    %2230 = vmatpush1.bf16.xpose.msra.mxu0 0
    %2231 = vmatprep.subr.bf16.mxu0 0
    %2232 = vmatpush1.bf16.xpose.msra.mxu0 0
    %2233 = vmatprep.subr.bf16.mxu0 0
    %2234 = vmatpush1.bf16.xpose.msra.mxu0 0
    %2235 = vmatprep.subr.bf16.mxu0 0
    %2236 = vmatpush1.bf16.xpose.msra.mxu0 0
    %2237 = vmatprep.subr.bf16.mxu0 0
    %2238 = vmatpush1.bf16.xpose.msra.mxu0 0
    %2239 = vmatprep.subr.bf16.mxu0 0
    %2240 = vmatpush1.bf16.xpose.msra.mxu0 0
    %2241 = vmatprep.subr.bf16.mxu0 0
    %2242 = vmatpush1.bf16.xpose.msra.mxu0 0
    %2243 = vmatprep.subr.bf16.mxu0 0
    %2244 = vmatpush1.bf16.xpose.msra.mxu0 %v2227
    %2245 = vmatprep.subr.bf16.mxu0 0
    %2246 = vmatpush2.bf16.xpose.msra.mxu0 0
    %2247 = vmatprep.subr.bf16.mxu0 0
    %2248 = vmatpush2.bf16.xpose.msra.mxu0 0
    %2249 = vmatprep.subr.bf16.mxu0 0
    %2250 = vmatpush2.bf16.xpose.msra.mxu0 0
    %2251 = vmatprep.subr.bf16.mxu0 0
    %2252 = vmatpush2.bf16.xpose.msra.mxu0 0
    %2253 = vmatprep.subr.bf16.mxu0 0
    %2254 = vmatpush2.bf16.xpose.msra.mxu0 0
    %2255 = vmatprep.subr.bf16.mxu0 0
    %2256 = vmatpush2.bf16.xpose.msra.mxu0 0
    %2257 = vmatprep.subr.bf16.mxu0 0
    %2258 = vmatpush2.bf16.xpose.msra.mxu0 0
    %2259 = vmatprep.subr.bf16.mxu0 0
    %2260 = vmatpush2.bf16.xpose.msra.mxu0 0
    %2261 = vmatprep.mubr.bf16.mxu0 0
    %2262 = vmatmul.mubr.bf16.gmra.mxu0 %v2224
    %v2263 = vpop.f32.mrf.mxu0
    %v2264 = vadd.f32 %v185, %v2263
    %v2265 = vpop.f32.mrf.mxu0
    %v2266 = vpop.f32.mrf.mxu0
    %v2267 = vadd.f32 %v185, %v2266
    %v2268 = vpop.f32.mrf.mxu0
    %2269 = vdwg.mxu0
    %v2270 = vsel %vm718, %v2123, -inf
    %2271 = vmax.xlane.f32.xlu0 %v2270
    %v2272 = vpop.xlane.xlu0 %2271
    %v2273 = vsel %vm718, %v2126, -inf
    %2274 = vmax.xlane.f32.xlu0 %v2273
    %v2275 = vpop.xlane.xlu0 %2274
    %v2276 = vsel %vm718, %v2170, -inf
    %2277 = vmax.xlane.f32.xlu0 %v2276
    %v2278 = vpop.xlane.xlu0 %2277
    %v2279 = vsel %vm718, %v2173, -inf
    %2280 = vmax.xlane.f32.xlu0 %v2279
    %v2281 = vpop.xlane.xlu0 %2280
    %v2282 = vsel %vm718, %v2217, -inf
    %2283 = vmax.xlane.f32.xlu0 %v2282
    %v2284 = vpop.xlane.xlu0 %2283
    %v2285 = vsel %vm718, %v2220, -inf
    %2286 = vmax.xlane.f32.xlu0 %v2285
    %v2287 = vpop.xlane.xlu0 %2286
    %v2288 = vsel %vm718, %v2264, -inf
    %2289 = vmax.xlane.f32.xlu0 %v2288
    %v2290 = vpop.xlane.xlu0 %2289
    %v2291 = vsel %vm718, %v2267, -inf
    %2292 = vmax.xlane.f32.xlu0 %v2291
    %v2293 = vpop.xlane.xlu0 %2292
    %v2294 = vsub.f32 %v2123, %v2272
    %v2295 = vsub.f32 %v2126, %v2275
    %v2296 = vsub.f32 %v2170, %v2278
    %v2297 = vsub.f32 %v2173, %v2281
    %v2298 = vsub.f32 %v2217, %v2284
    %v2299 = vsub.f32 %v2220, %v2287
    %v2300 = vsub.f32 %v2264, %v2290
    %v2301 = vsub.f32 %v2267, %v2293
    %v2302 = vmul.f32 %v2294, 1.442695
    %v2303 = vpow.pop %v2302
    %v2304 = vmul.f32 %v2295, 1.442695
    %v2305 = vpow.pop %v2304
    %v2306 = vmul.f32 %v2296, 1.442695
    %v2307 = vpow.pop %v2306
    %v2308 = vmul.f32 %v2297, 1.442695
    %v2309 = vpow.pop %v2308
    %v2310 = vmul.f32 %v2298, 1.442695
    %v2311 = vpow.pop %v2310
    %v2312 = vmul.f32 %v2299, 1.442695
    %v2313 = vpow.pop %v2312
    %v2314 = vmul.f32 %v2300, 1.442695
    %v2315 = vpow.pop %v2314
    %v2316 = vmul.f32 %v2301, 1.442695
    %v2317 = vpow.pop %v2316
    %v2318 = vsel %vm718, %v2303, 0.0
    %2319 = vadd.xlane.f32.xlu0 %v2318
    %v2320 = vpop.xlane.xlu0 %2319
    %v2321 = vsel %vm718, %v2305, 0.0
    %2322 = vadd.xlane.f32.xlu0 %v2321
    %v2323 = vpop.xlane.xlu0 %2322
    %v2324 = vsel %vm718, %v2307, 0.0
    %2325 = vadd.xlane.f32.xlu0 %v2324
    %v2326 = vpop.xlane.xlu0 %2325
    %v2327 = vsel %vm718, %v2309, 0.0
    %2328 = vadd.xlane.f32.xlu0 %v2327
    %v2329 = vpop.xlane.xlu0 %2328
    %v2330 = vsel %vm718, %v2311, 0.0
    %2331 = vadd.xlane.f32.xlu0 %v2330
    %v2332 = vpop.xlane.xlu0 %2331
    %v2333 = vsel %vm718, %v2313, 0.0
    %2334 = vadd.xlane.f32.xlu0 %v2333
    %v2335 = vpop.xlane.xlu0 %2334
    %v2336 = vsel %vm718, %v2315, 0.0
    %2337 = vadd.xlane.f32.xlu0 %v2336
    %v2338 = vpop.xlane.xlu0 %2337
    %v2339 = vsel %vm718, %v2317, 0.0
    %2340 = vadd.xlane.f32.xlu0 %v2339
    %v2341 = vpop.xlane.xlu0 %2340
    %v2342 = vrcp.pop %v2320
    %v2343 = vrcp.pop %v2323
    %v2344 = vrcp.pop %v2326
    %v2345 = vrcp.pop %v2329
    %v2346 = vrcp.pop %v2332
    %v2347 = vrcp.pop %v2335
    %v2348 = vrcp.pop %v2338
    %v2349 = vrcp.pop %v2341
    %v2350 = vmul.f32 %v2303, %v2342
    %v2351 = vmul.f32 %v2305, %v2343
    %v2352 = vmul.f32 %v2307, %v2344
    %v2353 = vmul.f32 %v2309, %v2345
    %v2354 = vmul.f32 %v2311, %v2346
    %v2355 = vmul.f32 %v2313, %v2347
    %v2356 = vmul.f32 %v2315, %v2348
    %v2357 = vmul.f32 %v2317, %v2349
    %v2358 = vpack.c.bf16 %v2351, %v2350
    %v2359 = vpack.c.bf16 %v2353, %v2352
    %v2360 = vpack.c.bf16 %v2355, %v2354
    %v2361 = vpack.c.bf16 %v2357, %v2356
    %v2363 = vsel %vm718, %v2358, 0
    %2365 = vmatprep.subr.bf16.mxu0 0
    %2366 = vmatpush1.bf16.msra.mxu0 0
    %2367 = vmatprep.subr.bf16.mxu0 0
    %2368 = vmatpush1.bf16.msra.mxu0 0
    %2369 = vmatprep.subr.bf16.mxu0 0
    %2370 = vmatpush1.bf16.msra.mxu0 0
    %2371 = vmatprep.subr.bf16.mxu0 0
    %2372 = vmatpush1.bf16.msra.mxu0 0
    %2373 = vmatprep.subr.bf16.mxu0 0
    %2374 = vmatpush1.bf16.msra.mxu0 0
    %2375 = vmatprep.subr.bf16.mxu0 0
    %2376 = vmatpush1.bf16.msra.mxu0 0
    %2377 = vmatprep.subr.bf16.mxu0 0
    %2378 = vmatpush1.bf16.msra.mxu0 0
    %2379 = vmatprep.subr.bf16.mxu0 0
    %2380 = vmatpush1.bf16.msra.mxu0 %v2078
    %2381 = vmatprep.subr.bf16.mxu0 0
    %2382 = vmatpush2.bf16.msra.mxu0 0
    %2383 = vmatprep.subr.bf16.mxu0 0
    %2384 = vmatpush2.bf16.msra.mxu0 0
    %2385 = vmatprep.subr.bf16.mxu0 0
    %2386 = vmatpush2.bf16.msra.mxu0 0
    %2387 = vmatprep.subr.bf16.mxu0 0
    %2388 = vmatpush2.bf16.msra.mxu0 0
    %2389 = vmatprep.subr.bf16.mxu0 0
    %2390 = vmatpush2.bf16.msra.mxu0 0
    %2391 = vmatprep.subr.bf16.mxu0 0
    %2392 = vmatpush2.bf16.msra.mxu0 0
    %2393 = vmatprep.subr.bf16.mxu0 0
    %2394 = vmatpush2.bf16.msra.mxu0 0
    %2395 = vmatprep.subr.bf16.mxu0 0
    %2396 = vmatpush2.bf16.msra.mxu0 0
    %2397 = vmatprep.mubr.bf16.mxu0 0
    %2398 = vmatmul.mubr.bf16.gmra.mxu0 %v2363
    %v2399 = vpop.f32.mrf.mxu0
    %v2400 = vadd.f32 0.0, %v2399
    %v2401 = vpop.f32.mrf.mxu0
    %v2402 = vpop.f32.mrf.mxu0
    %v2403 = vadd.f32 0.0, %v2402
    %v2404 = vpop.f32.mrf.mxu0
    %2405 = vdwg.mxu0
    %v2407 = vsel %vm718, %v2359, 0
    %2409 = vmatprep.subr.bf16.mxu0 0
    %2410 = vmatpush1.bf16.msra.mxu0 0
    %2411 = vmatprep.subr.bf16.mxu0 0
    %2412 = vmatpush1.bf16.msra.mxu0 0
    %2413 = vmatprep.subr.bf16.mxu0 0
    %2414 = vmatpush1.bf16.msra.mxu0 0
    %2415 = vmatprep.subr.bf16.mxu0 0
    %2416 = vmatpush1.bf16.msra.mxu0 0
    %2417 = vmatprep.subr.bf16.mxu0 0
    %2418 = vmatpush1.bf16.msra.mxu0 0
    %2419 = vmatprep.subr.bf16.mxu0 0
    %2420 = vmatpush1.bf16.msra.mxu0 0
    %2421 = vmatprep.subr.bf16.mxu0 0
    %2422 = vmatpush1.bf16.msra.mxu0 0
    %2423 = vmatprep.subr.bf16.mxu0 0
    %2424 = vmatpush1.bf16.msra.mxu0 %v2079
    %2425 = vmatprep.subr.bf16.mxu0 0
    %2426 = vmatpush2.bf16.msra.mxu0 0
    %2427 = vmatprep.subr.bf16.mxu0 0
    %2428 = vmatpush2.bf16.msra.mxu0 0
    %2429 = vmatprep.subr.bf16.mxu0 0
    %2430 = vmatpush2.bf16.msra.mxu0 0
    %2431 = vmatprep.subr.bf16.mxu0 0
    %2432 = vmatpush2.bf16.msra.mxu0 0
    %2433 = vmatprep.subr.bf16.mxu0 0
    %2434 = vmatpush2.bf16.msra.mxu0 0
    %2435 = vmatprep.subr.bf16.mxu0 0
    %2436 = vmatpush2.bf16.msra.mxu0 0
    %2437 = vmatprep.subr.bf16.mxu0 0
    %2438 = vmatpush2.bf16.msra.mxu0 0
    %2439 = vmatprep.subr.bf16.mxu0 0
    %2440 = vmatpush2.bf16.msra.mxu0 0
    %2441 = vmatprep.mubr.bf16.mxu0 0
    %2442 = vmatmul.mubr.bf16.gmra.mxu0 %v2407
    %v2443 = vpop.f32.mrf.mxu0
    %v2444 = vadd.f32 0.0, %v2443
    %v2445 = vpop.f32.mrf.mxu0
    %v2446 = vpop.f32.mrf.mxu0
    %v2447 = vadd.f32 0.0, %v2446
    %v2448 = vpop.f32.mrf.mxu0
    %2449 = vdwg.mxu0
    %v2451 = vsel %vm718, %v2360, 0
    %2453 = vmatprep.subr.bf16.mxu0 0
    %2454 = vmatpush1.bf16.msra.mxu0 0
    %2455 = vmatprep.subr.bf16.mxu0 0
    %2456 = vmatpush1.bf16.msra.mxu0 0
    %2457 = vmatprep.subr.bf16.mxu0 0
    %2458 = vmatpush1.bf16.msra.mxu0 0
    %2459 = vmatprep.subr.bf16.mxu0 0
    %2460 = vmatpush1.bf16.msra.mxu0 0
    %2461 = vmatprep.subr.bf16.mxu0 0
    %2462 = vmatpush1.bf16.msra.mxu0 0
    %2463 = vmatprep.subr.bf16.mxu0 0
    %2464 = vmatpush1.bf16.msra.mxu0 0
    %2465 = vmatprep.subr.bf16.mxu0 0
    %2466 = vmatpush1.bf16.msra.mxu0 0
    %2467 = vmatprep.subr.bf16.mxu0 0
    %2468 = vmatpush1.bf16.msra.mxu0 %v2080
    %2469 = vmatprep.subr.bf16.mxu0 0
    %2470 = vmatpush2.bf16.msra.mxu0 0
    %2471 = vmatprep.subr.bf16.mxu0 0
    %2472 = vmatpush2.bf16.msra.mxu0 0
    %2473 = vmatprep.subr.bf16.mxu0 0
    %2474 = vmatpush2.bf16.msra.mxu0 0
    %2475 = vmatprep.subr.bf16.mxu0 0
    %2476 = vmatpush2.bf16.msra.mxu0 0
    %2477 = vmatprep.subr.bf16.mxu0 0
    %2478 = vmatpush2.bf16.msra.mxu0 0
    %2479 = vmatprep.subr.bf16.mxu0 0
    %2480 = vmatpush2.bf16.msra.mxu0 0
    %2481 = vmatprep.subr.bf16.mxu0 0
    %2482 = vmatpush2.bf16.msra.mxu0 0
    %2483 = vmatprep.subr.bf16.mxu0 0
    %2484 = vmatpush2.bf16.msra.mxu0 0
    %2485 = vmatprep.mubr.bf16.mxu0 0
    %2486 = vmatmul.mubr.bf16.gmra.mxu0 %v2451
    %v2487 = vpop.f32.mrf.mxu0
    %v2488 = vadd.f32 0.0, %v2487
    %v2489 = vpop.f32.mrf.mxu0
    %v2490 = vpop.f32.mrf.mxu0
    %v2491 = vadd.f32 0.0, %v2490
    %v2492 = vpop.f32.mrf.mxu0
    %2493 = vdwg.mxu0
    %v2495 = vsel %vm718, %v2361, 0
    %2497 = vmatprep.subr.bf16.mxu0 0
    %2498 = vmatpush1.bf16.msra.mxu0 0
    %2499 = vmatprep.subr.bf16.mxu0 0
    %2500 = vmatpush1.bf16.msra.mxu0 0
    %2501 = vmatprep.subr.bf16.mxu0 0
    %2502 = vmatpush1.bf16.msra.mxu0 0
    %2503 = vmatprep.subr.bf16.mxu0 0
    %2504 = vmatpush1.bf16.msra.mxu0 0
    %2505 = vmatprep.subr.bf16.mxu0 0
    %2506 = vmatpush1.bf16.msra.mxu0 0
    %2507 = vmatprep.subr.bf16.mxu0 0
    %2508 = vmatpush1.bf16.msra.mxu0 0
    %2509 = vmatprep.subr.bf16.mxu0 0
    %2510 = vmatpush1.bf16.msra.mxu0 0
    %2511 = vmatprep.subr.bf16.mxu0 0
    %2512 = vmatpush1.bf16.msra.mxu0 %v2081
    %2513 = vmatprep.subr.bf16.mxu0 0
    %2514 = vmatpush2.bf16.msra.mxu0 0
    %2515 = vmatprep.subr.bf16.mxu0 0
    %2516 = vmatpush2.bf16.msra.mxu0 0
    %2517 = vmatprep.subr.bf16.mxu0 0
    %2518 = vmatpush2.bf16.msra.mxu0 0
    %2519 = vmatprep.subr.bf16.mxu0 0
    %2520 = vmatpush2.bf16.msra.mxu0 0
    %2521 = vmatprep.subr.bf16.mxu0 0
    %2522 = vmatpush2.bf16.msra.mxu0 0
    %2523 = vmatprep.subr.bf16.mxu0 0
    %2524 = vmatpush2.bf16.msra.mxu0 0
    %2525 = vmatprep.subr.bf16.mxu0 0
    %2526 = vmatpush2.bf16.msra.mxu0 0
    %2527 = vmatprep.subr.bf16.mxu0 0
    %2528 = vmatpush2.bf16.msra.mxu0 0
    %2529 = vmatprep.mubr.bf16.mxu0 0
    %2530 = vmatmul.mubr.bf16.gmra.mxu0 %v2495
    %v2531 = vpop.f32.mrf.mxu0
    %v2532 = vadd.f32 0.0, %v2531
    %v2533 = vpop.f32.mrf.mxu0
    %v2534 = vpop.f32.mrf.mxu0
    %v2535 = vadd.f32 0.0, %v2534
    %v2536 = vpop.f32.mrf.mxu0
    %2537 = vdwg.mxu0
    %s2538 = scalar_lea.vmem [#allocation2], 64
    %v2539 = vld [vmem:[%s2538] sm:$0xf]
    %v2540 = vld [vmem:[%s2538 + $0x4] sm:$0xf]
    %v2541 = vld [vmem:[%s2538 + $0x8] sm:$0xf]
    %v2542 = vld [vmem:[%s2538 + $0xc] sm:$0xf]
    %v2543 = vld [vmem:[%s2538 + $0x10] sm:$0xf]
    %v2544 = vld [vmem:[%s2538 + $0x14] sm:$0xf]
    %v2545 = vld [vmem:[%s2538 + $0x18] sm:$0xf]
    %v2546 = vld [vmem:[%s2538 + $0x1c] sm:$0xf]
    %v2547 = vld [vmem:[%s2538 + $0x20] sm:$0xf]
    %v2548 = vld [vmem:[%s2538 + $0x24] sm:$0xf]
    %v2549 = vld [vmem:[%s2538 + $0x28] sm:$0xf]
    %v2550 = vld [vmem:[%s2538 + $0x2c] sm:$0xf]
    %v2551 = vld [vmem:[%s2538 + $0x30] sm:$0xf]
    %v2552 = vld [vmem:[%s2538 + $0x34] sm:$0xf]
    %v2553 = vld [vmem:[%s2538 + $0x38] sm:$0xf]
    %v2554 = vld [vmem:[%s2538 + $0x3c] sm:$0xf]
    %v2555 = vpack.c.bf16 %v2403, %v2400
    %v2556 = vpack.c.bf16 %v2447, %v2444
    %v2557 = vpack.c.bf16 %v2491, %v2488
    %v2558 = vpack.c.bf16 %v2535, %v2532
    %v2567 = vunpack.c.l.b16 %v2547
    %v2568 = vunpack.c.l.b16 %v2548
    %v2569 = vunpack.c.l.b16 %v2549
    %v2570 = vunpack.c.l.b16 %v2550
    %v2571 = vunpack.c.l.b16 %v2551
    %v2572 = vunpack.c.l.b16 %v2552
    %v2573 = vunpack.c.l.b16 %v2553
    %v2574 = vunpack.c.l.b16 %v2554
    %v2575 = vpack.c.b16 %v2568, %v2567
    %v2576 = vpack.c.b16 %v2570, %v2569
    %v2577 = vpack.c.b16 %v2572, %v2571
    %v2578 = vpack.c.b16 %v2574, %v2573
    %v2584 = vsel %vm529, %v2557, 0
    %v2587 = vsel %vm529, %v2558, 0
    %2589 = vmatprep.subr.bf16.mxu0 0
    %2590 = vmatpush1.bf16.msra.mxu0 0
    %2591 = vmatprep.subr.bf16.mxu0 0
    %2592 = vmatpush1.bf16.msra.mxu0 0
    %2593 = vmatprep.subr.bf16.mxu0 0
    %2594 = vmatpush1.bf16.msra.mxu0 0
    %2595 = vmatprep.subr.bf16.mxu0 0
    %2596 = vmatpush1.bf16.msra.mxu0 0
    %2597 = vmatprep.subr.bf16.mxu0 0
    %2598 = vmatpush1.bf16.msra.mxu0 %v2578
    %2599 = vmatprep.subr.bf16.mxu0 0
    %2600 = vmatpush1.bf16.msra.mxu0 %v2577
    %2601 = vmatprep.subr.bf16.mxu0 0
    %2602 = vmatpush1.bf16.msra.mxu0 %v2576
    %2603 = vmatprep.subr.bf16.mxu0 0
    %2604 = vmatpush1.bf16.msra.mxu0 %v2575
    %2605 = vmatprep.subr.bf16.mxu0 0
    %2606 = vmatpush2.bf16.msra.mxu0 0
    %2607 = vmatprep.subr.bf16.mxu0 0
    %2608 = vmatpush2.bf16.msra.mxu0 0
    %2609 = vmatprep.subr.bf16.mxu0 0
    %2610 = vmatpush2.bf16.msra.mxu0 0
    %2611 = vmatprep.subr.bf16.mxu0 0
    %2612 = vmatpush2.bf16.msra.mxu0 0
    %2613 = vmatprep.subr.bf16.mxu0 0
    %2614 = vmatpush2.bf16.msra.mxu0 0
    %2615 = vmatprep.subr.bf16.mxu0 0
    %2616 = vmatpush2.bf16.msra.mxu0 0
    %2617 = vmatprep.subr.bf16.mxu0 0
    %2618 = vmatpush2.bf16.msra.mxu0 0
    %2619 = vmatprep.subr.bf16.mxu0 0
    %2620 = vmatpush2.bf16.msra.mxu0 0
    %2621 = vmatprep.mubr.bf16.mxu0 0
    %2622 = vmatmul.mubr.bf16.gmra.mxu0 %v2584
    %v2623 = vpop.f32.mrf.mxu0
    %v2624 = vadd.f32 0.0, %v2623
    %v2625 = vpop.f32.mrf.mxu0
    %v2626 = vpop.f32.mrf.mxu0
    %v2627 = vadd.f32 0.0, %v2626
    %v2628 = vpop.f32.mrf.mxu0
    %2629 = vmatprep.mubr.bf16.mxu0 0
    %2630 = vmatmul.mubr.bf16.gmra.mxu0 %v2587
    %v2631 = vpop.f32.mrf.mxu0
    %v2632 = vadd.f32 0.0, %v2631
    %v2633 = vpop.f32.mrf.mxu0
    %v2634 = vpop.f32.mrf.mxu0
    %v2635 = vadd.f32 0.0, %v2634
    %v2636 = vpop.f32.mrf.mxu0
    %2637 = vdwg.mxu0
    %v2646 = vunpack.c.l.b16 %v2539
    %v2647 = vunpack.c.l.b16 %v2540
    %v2648 = vunpack.c.l.b16 %v2541
    %v2649 = vunpack.c.l.b16 %v2542
    %v2650 = vunpack.c.l.b16 %v2543
    %v2651 = vunpack.c.l.b16 %v2544
    %v2652 = vunpack.c.l.b16 %v2545
    %v2653 = vunpack.c.l.b16 %v2546
    %v2654 = vpack.c.b16 %v2647, %v2646
    %v2655 = vpack.c.b16 %v2649, %v2648
    %v2656 = vpack.c.b16 %v2651, %v2650
    %v2657 = vpack.c.b16 %v2653, %v2652
    %v2663 = vsel %vm529, %v2555, 0
    %v2666 = vsel %vm529, %v2556, 0
    %2668 = vmatprep.subr.bf16.mxu0 0
    %2669 = vmatpush1.bf16.msra.mxu0 0
    %2670 = vmatprep.subr.bf16.mxu0 0
    %2671 = vmatpush1.bf16.msra.mxu0 0
    %2672 = vmatprep.subr.bf16.mxu0 0
    %2673 = vmatpush1.bf16.msra.mxu0 0
    %2674 = vmatprep.subr.bf16.mxu0 0
    %2675 = vmatpush1.bf16.msra.mxu0 0
    %2676 = vmatprep.subr.bf16.mxu0 0
    %2677 = vmatpush1.bf16.msra.mxu0 %v2657
    %2678 = vmatprep.subr.bf16.mxu0 0
    %2679 = vmatpush1.bf16.msra.mxu0 %v2656
    %2680 = vmatprep.subr.bf16.mxu0 0
    %2681 = vmatpush1.bf16.msra.mxu0 %v2655
    %2682 = vmatprep.subr.bf16.mxu0 0
    %2683 = vmatpush1.bf16.msra.mxu0 %v2654
    %2684 = vmatprep.subr.bf16.mxu0 0
    %2685 = vmatpush2.bf16.msra.mxu0 0
    %2686 = vmatprep.subr.bf16.mxu0 0
    %2687 = vmatpush2.bf16.msra.mxu0 0
    %2688 = vmatprep.subr.bf16.mxu0 0
    %2689 = vmatpush2.bf16.msra.mxu0 0
    %2690 = vmatprep.subr.bf16.mxu0 0
    %2691 = vmatpush2.bf16.msra.mxu0 0
    %2692 = vmatprep.subr.bf16.mxu0 0
    %2693 = vmatpush2.bf16.msra.mxu0 0
    %2694 = vmatprep.subr.bf16.mxu0 0
    %2695 = vmatpush2.bf16.msra.mxu0 0
    %2696 = vmatprep.subr.bf16.mxu0 0
    %2697 = vmatpush2.bf16.msra.mxu0 0
    %2698 = vmatprep.subr.bf16.mxu0 0
    %2699 = vmatpush2.bf16.msra.mxu0 0
    %2700 = vmatprep.mubr.bf16.mxu0 0
    %2701 = vmatmul.mubr.bf16.gmra.mxu0 %v2663
    %v2702 = vpop.f32.mrf.mxu0
    %v2703 = vadd.f32 %v2624, %v2702
    %v2704 = vpop.f32.mrf.mxu0
    %v2705 = vpop.f32.mrf.mxu0
    %v2706 = vadd.f32 %v2627, %v2705
    %v2707 = vpop.f32.mrf.mxu0
    %2708 = vmatprep.mubr.bf16.mxu0 0
    %2709 = vmatmul.mubr.bf16.gmra.mxu0 %v2666
    %v2710 = vpop.f32.mrf.mxu0
    %v2711 = vadd.f32 %v2632, %v2710
    %v2712 = vpop.f32.mrf.mxu0
    %v2713 = vpop.f32.mrf.mxu0
    %v2714 = vadd.f32 %v2635, %v2713
    %v2715 = vpop.f32.mrf.mxu0
    %2716 = vdwg.mxu0
    %s2717 = scalar_lea.vmem %s7, 1
    %v2718 = vld [vmem:[%s2717] sm:$0x1]
    %v2720 = vlaneseq
    %v2721 = vshrl.u32 %v2720, 7
    %v2722 = vsub.s32 0, %v2721
    %v2723 = vrot.slane %v2718, %v2722
    %v2725 = vadd.f32 %v2703, %v2723
    %v2726 = vadd.f32 %v2706, %v2723
    %v2727 = vadd.f32 %v2711, %v2723
    %v2728 = vadd.f32 %v2714, %v2723
    %v2729 = vadd.f32 %v1735, %v2725
    %v2730 = vadd.f32 %v1736, %v2726
    %v2731 = vadd.f32 %v1737, %v2727
    %v2732 = vadd.f32 %v1738, %v2728
    %s2733 = scalar_lea.vmem %s8, 1
    %v2734 = vld [vmem:[%s2733] sm:$0x1]
    %s2735 = scalar_lea.vmem %s9, 1
    %v2736 = vld [vmem:[%s2735] sm:$0x1]
    %2737 = vadd.xlane.f32.xlu0 %v2729
    %v2738 = vpop.xlane.xlu0 %2737
    %2739 = vadd.xlane.f32.xlu0 %v2730
    %v2740 = vpop.xlane.xlu0 %2739
    %2741 = vadd.xlane.f32.xlu0 %v2731
    %v2742 = vpop.xlane.xlu0 %2741
    %2743 = vadd.xlane.f32.xlu0 %v2732
    %v2744 = vpop.xlane.xlu0 %2743
    %v2745 = vmul.f32 %v2738, %v117
    %v2746 = vmul.f32 %v2740, %v117
    %v2747 = vmul.f32 %v2742, %v117
    %v2748 = vmul.f32 %v2744, %v117
    %v2749 = vsub.f32 %v2729, %v2745
    %v2750 = vsub.f32 %v2730, %v2746
    %v2751 = vsub.f32 %v2731, %v2747
    %v2752 = vsub.f32 %v2732, %v2748
    %v2753 = vmul.f32 %v2749, %v2749
    %v2754 = vmul.f32 %v2750, %v2750
    %v2755 = vmul.f32 %v2751, %v2751
    %v2756 = vmul.f32 %v2752, %v2752
    %2757 = vadd.xlane.f32.xlu0 %v2753
    %v2758 = vpop.xlane.xlu0 %2757
    %2759 = vadd.xlane.f32.xlu0 %v2754
    %v2760 = vpop.xlane.xlu0 %2759
    %2761 = vadd.xlane.f32.xlu0 %v2755
    %v2762 = vpop.xlane.xlu0 %2761
    %2763 = vadd.xlane.f32.xlu0 %v2756
    %v2764 = vpop.xlane.xlu0 %2763
    %v2765 = vmul.f32 %v2758, %v117
    %v2766 = vmul.f32 %v2760, %v117
    %v2767 = vmul.f32 %v2762, %v117
    %v2768 = vmul.f32 %v2764, %v117
    %v2769 = vadd.f32 %v2765, 1e-05
    %v2770 = vadd.f32 %v2766, 1e-05
    %v2771 = vadd.f32 %v2767, 1e-05
    %v2772 = vadd.f32 %v2768, 1e-05
    %v2773 = vrsqrt.pop %v2769
    %v2774 = vrsqrt.pop %v2770
    %v2775 = vrsqrt.pop %v2771
    %v2776 = vrsqrt.pop %v2772
    %v2777 = vmul.f32 %v2749, %v2773
    %v2778 = vmul.f32 %v2750, %v2774
    %v2779 = vmul.f32 %v2751, %v2775
    %v2780 = vmul.f32 %v2752, %v2776
    %v2782 = vlaneseq
    %v2783 = vshrl.u32 %v2782, 7
    %v2784 = vsub.s32 0, %v2783
    %v2785 = vrot.slane %v2734, %v2784
    %v2787 = vmul.f32 %v2777, %v2785
    %v2788 = vmul.f32 %v2778, %v2785
    %v2789 = vmul.f32 %v2779, %v2785
    %v2790 = vmul.f32 %v2780, %v2785
    %v2792 = vlaneseq
    %v2793 = vshrl.u32 %v2792, 7
    %v2794 = vsub.s32 0, %v2793
    %v2795 = vrot.slane %v2736, %v2794
    %v2797 = vadd.f32 %v2787, %v2795
    %v2798 = vadd.f32 %v2788, %v2795
    %v2799 = vadd.f32 %v2789, %v2795
    %v2800 = vadd.f32 %v2790, %v2795
    %v2801 = vpack.c.bf16 %v2798, %v2797
    %v2802 = vpack.c.bf16 %v2800, %v2799
    %s2803 = scalar_lea.vmem %s10, 128
    %v2804 = vld [vmem:[%s2803] sm:$0xff]
    %v2805 = vld [vmem:[%s2803 + $0x8] sm:$0xff]
    %v2806 = vld [vmem:[%s2803 + $0x10] sm:$0xff]
    %v2807 = vld [vmem:[%s2803 + $0x18] sm:$0xff]
    %v2808 = vld [vmem:[%s2803 + $0x20] sm:$0xff]
    %v2809 = vld [vmem:[%s2803 + $0x28] sm:$0xff]
    %v2810 = vld [vmem:[%s2803 + $0x30] sm:$0xff]
    %v2811 = vld [vmem:[%s2803 + $0x38] sm:$0xff]
    %v2812 = vld [vmem:[%s2803 + $0x40] sm:$0xff]
    %v2813 = vld [vmem:[%s2803 + $0x48] sm:$0xff]
    %v2814 = vld [vmem:[%s2803 + $0x50] sm:$0xff]
    %v2815 = vld [vmem:[%s2803 + $0x58] sm:$0xff]
    %v2816 = vld [vmem:[%s2803 + $0x60] sm:$0xff]
    %v2817 = vld [vmem:[%s2803 + $0x68] sm:$0xff]
    %v2818 = vld [vmem:[%s2803 + $0x70] sm:$0xff]
    %v2819 = vld [vmem:[%s2803 + $0x78] sm:$0xff]
    %s2820 = scalar_lea.vmem %s11, 2
    %v2821 = vld [vmem:[%s2820] sm:$0x3]
    %v2823 = vlaneseq
    %v2824 = vshrl.u32 %v2823, 7
    %v2825 = vsub.s32 0, %v2824
    %v2826 = vrot.slane %v2821, %v2825
    %v2827 = vlaneseq
    %v2828 = vshrl.u32 %v2827, 7
    %v2829 = vsub.s32 1, %v2828
    %v2830 = vrot.slane %v2821, %v2829
    %v2849 = vunpack.c.l.b16 %v2804
    %v2850 = vunpack.c.h.b16 %v2804
    %v2851 = vunpack.c.l.b16 %v2805
    %v2852 = vunpack.c.h.b16 %v2805
    %v2853 = vunpack.c.l.b16 %v2806
    %v2854 = vunpack.c.h.b16 %v2806
    %v2855 = vunpack.c.l.b16 %v2807
    %v2856 = vunpack.c.h.b16 %v2807
    %v2857 = vunpack.c.l.b16 %v2808
    %v2858 = vunpack.c.h.b16 %v2808
    %v2859 = vunpack.c.l.b16 %v2809
    %v2860 = vunpack.c.h.b16 %v2809
    %v2861 = vunpack.c.l.b16 %v2810
    %v2862 = vunpack.c.h.b16 %v2810
    %v2863 = vunpack.c.l.b16 %v2811
    %v2864 = vunpack.c.h.b16 %v2811
    %v2865 = vunpack.c.l.b16 %v2812
    %v2866 = vunpack.c.h.b16 %v2812
    %v2867 = vunpack.c.l.b16 %v2813
    %v2868 = vunpack.c.h.b16 %v2813
    %v2869 = vunpack.c.l.b16 %v2814
    %v2870 = vunpack.c.h.b16 %v2814
    %v2871 = vunpack.c.l.b16 %v2815
    %v2872 = vunpack.c.h.b16 %v2815
    %v2873 = vunpack.c.l.b16 %v2816
    %v2874 = vunpack.c.h.b16 %v2816
    %v2875 = vunpack.c.l.b16 %v2817
    %v2876 = vunpack.c.h.b16 %v2817
    %v2877 = vunpack.c.l.b16 %v2818
    %v2878 = vunpack.c.h.b16 %v2818
    %v2879 = vunpack.c.l.b16 %v2819
    %v2880 = vunpack.c.h.b16 %v2819
    %v2881 = vpack.c.b16 %v2851, %v2849
    %v2882 = vpack.c.b16 %v2852, %v2850
    %v2883 = vpack.c.b16 %v2855, %v2853
    %v2884 = vpack.c.b16 %v2856, %v2854
    %v2885 = vpack.c.b16 %v2859, %v2857
    %v2886 = vpack.c.b16 %v2860, %v2858
    %v2887 = vpack.c.b16 %v2863, %v2861
    %v2888 = vpack.c.b16 %v2864, %v2862
    %v2889 = vpack.c.b16 %v2867, %v2865
    %v2890 = vpack.c.b16 %v2868, %v2866
    %v2891 = vpack.c.b16 %v2871, %v2869
    %v2892 = vpack.c.b16 %v2872, %v2870
    %v2893 = vpack.c.b16 %v2875, %v2873
    %v2894 = vpack.c.b16 %v2876, %v2874
    %v2895 = vpack.c.b16 %v2879, %v2877
    %v2896 = vpack.c.b16 %v2880, %v2878
    %2913 = vmatprep.subr.bf16.mxu0 %v2896
    %2914 = vmatpush1.bf16.msra.mxu0 %v2895
    %2915 = vmatprep.subr.bf16.mxu0 %v2894
    %2916 = vmatpush1.bf16.msra.mxu0 %v2893
    %2917 = vmatprep.subr.bf16.mxu0 %v2892
    %2918 = vmatpush1.bf16.msra.mxu0 %v2891
    %2919 = vmatprep.subr.bf16.mxu0 %v2890
    %2920 = vmatpush1.bf16.msra.mxu0 %v2889
    %2921 = vmatprep.subr.bf16.mxu0 %v2888
    %2922 = vmatpush1.bf16.msra.mxu0 %v2887
    %2923 = vmatprep.subr.bf16.mxu0 %v2886
    %2924 = vmatpush1.bf16.msra.mxu0 %v2885
    %2925 = vmatprep.subr.bf16.mxu0 %v2884
    %2926 = vmatpush1.bf16.msra.mxu0 %v2883
    %2927 = vmatprep.subr.bf16.mxu0 %v2882
    %2928 = vmatpush1.bf16.msra.mxu0 %v2881
    %2929 = vmatprep.subr.bf16.mxu0 0
    %2930 = vmatpush2.bf16.msra.mxu0 0
    %2931 = vmatprep.subr.bf16.mxu0 0
    %2932 = vmatpush2.bf16.msra.mxu0 0
    %2933 = vmatprep.subr.bf16.mxu0 0
    %2934 = vmatpush2.bf16.msra.mxu0 0
    %2935 = vmatprep.subr.bf16.mxu0 0
    %2936 = vmatpush2.bf16.msra.mxu0 0
    %2937 = vmatprep.subr.bf16.mxu0 0
    %2938 = vmatpush2.bf16.msra.mxu0 0
    %2939 = vmatprep.subr.bf16.mxu0 0
    %2940 = vmatpush2.bf16.msra.mxu0 0
    %2941 = vmatprep.subr.bf16.mxu0 0
    %2942 = vmatpush2.bf16.msra.mxu0 0
    %2943 = vmatprep.subr.bf16.mxu0 0
    %2944 = vmatpush2.bf16.msra.mxu0 0
    %2945 = vmatprep.mubr.bf16.mxu0 0
    %2946 = vmatmul.mubr.bf16.gmra.mxu0 %v2801
    %v2947 = vpop.f32.mrf.mxu0
    %v2948 = vadd.f32 %v2826, %v2947
    %v2949 = vpop.f32.mrf.mxu0
    %v2950 = vadd.f32 %v2830, %v2949
    %v2951 = vpop.f32.mrf.mxu0
    %v2952 = vadd.f32 %v2826, %v2951
    %v2953 = vpop.f32.mrf.mxu0
    %v2954 = vadd.f32 %v2830, %v2953
    %2955 = vmatprep.mubr.bf16.mxu0 0
    %2956 = vmatmul.mubr.bf16.gmra.mxu0 %v2802
    %v2957 = vpop.f32.mrf.mxu0
    %v2958 = vadd.f32 %v2826, %v2957
    %v2959 = vpop.f32.mrf.mxu0
    %v2960 = vadd.f32 %v2830, %v2959
    %v2961 = vpop.f32.mrf.mxu0
    %v2962 = vadd.f32 %v2826, %v2961
    %v2963 = vpop.f32.mrf.mxu0
    %v2964 = vadd.f32 %v2830, %v2963
    %2965 = vdwg.mxu0
    %v2966 = vmul.f32 %v2948, 0.5
    %v2967 = vmul.f32 %v2950, 0.5
    %v2968 = vmul.f32 %v2952, 0.5
    %v2969 = vmul.f32 %v2954, 0.5
    %v2970 = vmul.f32 %v2958, 0.5
    %v2971 = vmul.f32 %v2960, 0.5
    %v2972 = vmul.f32 %v2962, 0.5
    %v2973 = vmul.f32 %v2964, 0.5
    %v2974 = vmul.f32 %v2948, 0.044715
    %v2975 = vmul.f32 %v2950, 0.044715
    %v2976 = vmul.f32 %v2952, 0.044715
    %v2977 = vmul.f32 %v2954, 0.044715
    %v2978 = vmul.f32 %v2958, 0.044715
    %v2979 = vmul.f32 %v2960, 0.044715
    %v2980 = vmul.f32 %v2962, 0.044715
    %v2981 = vmul.f32 %v2964, 0.044715
    %v2982 = vmul.f32 %v2974, %v2948
    %v2983 = vmul.f32 %v2975, %v2950
    %v2984 = vmul.f32 %v2976, %v2952
    %v2985 = vmul.f32 %v2977, %v2954
    %v2986 = vmul.f32 %v2978, %v2958
    %v2987 = vmul.f32 %v2979, %v2960
    %v2988 = vmul.f32 %v2980, %v2962
    %v2989 = vmul.f32 %v2981, %v2964
    %v2990 = vmul.f32 %v2982, %v2948
    %v2991 = vmul.f32 %v2983, %v2950
    %v2992 = vmul.f32 %v2984, %v2952
    %v2993 = vmul.f32 %v2985, %v2954
    %v2994 = vmul.f32 %v2986, %v2958
    %v2995 = vmul.f32 %v2987, %v2960
    %v2996 = vmul.f32 %v2988, %v2962
    %v2997 = vmul.f32 %v2989, %v2964
    %v2998 = vadd.f32 %v2948, %v2990
    %v2999 = vadd.f32 %v2950, %v2991
    %v3000 = vadd.f32 %v2952, %v2992
    %v3001 = vadd.f32 %v2954, %v2993
    %v3002 = vadd.f32 %v2958, %v2994
    %v3003 = vadd.f32 %v2960, %v2995
    %v3004 = vadd.f32 %v2962, %v2996
    %v3005 = vadd.f32 %v2964, %v2997
    %v3006 = vmul.f32 %v2998, 0.7978846
    %v3007 = vmul.f32 %v2999, 0.7978846
    %v3008 = vmul.f32 %v3000, 0.7978846
    %v3009 = vmul.f32 %v3001, 0.7978846
    %v3010 = vmul.f32 %v3002, 0.7978846
    %v3011 = vmul.f32 %v3003, 0.7978846
    %v3012 = vmul.f32 %v3004, 0.7978846
    %v3013 = vmul.f32 %v3005, 0.7978846
    %v3014 = vtanh.pop %v3006
    %v3015 = vtanh.pop %v3007
    %v3016 = vtanh.pop %v3008
    %v3017 = vtanh.pop %v3009
    %v3018 = vtanh.pop %v3010
    %v3019 = vtanh.pop %v3011
    %v3020 = vtanh.pop %v3012
    %v3021 = vtanh.pop %v3013
    %v3022 = vadd.f32 %v3014, 1.0
    %v3023 = vadd.f32 %v3015, 1.0
    %v3024 = vadd.f32 %v3016, 1.0
    %v3025 = vadd.f32 %v3017, 1.0
    %v3026 = vadd.f32 %v3018, 1.0
    %v3027 = vadd.f32 %v3019, 1.0
    %v3028 = vadd.f32 %v3020, 1.0
    %v3029 = vadd.f32 %v3021, 1.0
    %v3030 = vmul.f32 %v2966, %v3022
    %v3031 = vmul.f32 %v2967, %v3023
    %v3032 = vmul.f32 %v2968, %v3024
    %v3033 = vmul.f32 %v2969, %v3025
    %v3034 = vmul.f32 %v2970, %v3026
    %v3035 = vmul.f32 %v2971, %v3027
    %v3036 = vmul.f32 %v2972, %v3028
    %v3037 = vmul.f32 %v2973, %v3029
    %v3038 = vpack.c.bf16 %v3032, %v3030
    %v3039 = vpack.c.bf16 %v3033, %v3031
    %v3040 = vpack.c.bf16 %v3036, %v3034
    %v3041 = vpack.c.bf16 %v3037, %v3035
    %s3042 = scalar_lea.vmem [#allocation5], 128
    %v3043 = vld [vmem:[%s3042] sm:$0xf]
    %v3044 = vld [vmem:[%s3042 + $0x4] sm:$0xf]
    %v3045 = vld [vmem:[%s3042 + $0x8] sm:$0xf]
    %v3046 = vld [vmem:[%s3042 + $0xc] sm:$0xf]
    %v3047 = vld [vmem:[%s3042 + $0x10] sm:$0xf]
    %v3048 = vld [vmem:[%s3042 + $0x14] sm:$0xf]
    %v3049 = vld [vmem:[%s3042 + $0x18] sm:$0xf]
    %v3050 = vld [vmem:[%s3042 + $0x1c] sm:$0xf]
    %v3051 = vld [vmem:[%s3042 + $0x20] sm:$0xf]
    %v3052 = vld [vmem:[%s3042 + $0x24] sm:$0xf]
    %v3053 = vld [vmem:[%s3042 + $0x28] sm:$0xf]
    %v3054 = vld [vmem:[%s3042 + $0x2c] sm:$0xf]
    %v3055 = vld [vmem:[%s3042 + $0x30] sm:$0xf]
    %v3056 = vld [vmem:[%s3042 + $0x34] sm:$0xf]
    %v3057 = vld [vmem:[%s3042 + $0x38] sm:$0xf]
    %v3058 = vld [vmem:[%s3042 + $0x3c] sm:$0xf]
    %v3059 = vld [vmem:[%s3042 + $0x40] sm:$0xf]
    %v3060 = vld [vmem:[%s3042 + $0x44] sm:$0xf]
    %v3061 = vld [vmem:[%s3042 + $0x48] sm:$0xf]
    %v3062 = vld [vmem:[%s3042 + $0x4c] sm:$0xf]
    %v3063 = vld [vmem:[%s3042 + $0x50] sm:$0xf]
    %v3064 = vld [vmem:[%s3042 + $0x54] sm:$0xf]
    %v3065 = vld [vmem:[%s3042 + $0x58] sm:$0xf]
    %v3066 = vld [vmem:[%s3042 + $0x5c] sm:$0xf]
    %v3067 = vld [vmem:[%s3042 + $0x60] sm:$0xf]
    %v3068 = vld [vmem:[%s3042 + $0x64] sm:$0xf]
    %v3069 = vld [vmem:[%s3042 + $0x68] sm:$0xf]
    %v3070 = vld [vmem:[%s3042 + $0x6c] sm:$0xf]
    %v3071 = vld [vmem:[%s3042 + $0x70] sm:$0xf]
    %v3072 = vld [vmem:[%s3042 + $0x74] sm:$0xf]
    %v3073 = vld [vmem:[%s3042 + $0x78] sm:$0xf]
    %v3074 = vld [vmem:[%s3042 + $0x7c] sm:$0xf]
    %s3075 = scalar_lea.vmem %s13, 1
    %v3076 = vld [vmem:[%s3075] sm:$0x1]
    %v3078 = vlaneseq
    %v3079 = vshrl.u32 %v3078, 7
    %v3080 = vsub.s32 0, %v3079
    %v3081 = vrot.slane %v3076, %v3080
    %v3115 = vunpack.c.l.b16 %v3043
    %v3116 = vunpack.c.l.b16 %v3044
    %v3117 = vunpack.c.l.b16 %v3045
    %v3118 = vunpack.c.l.b16 %v3046
    %v3119 = vunpack.c.l.b16 %v3047
    %v3120 = vunpack.c.l.b16 %v3048
    %v3121 = vunpack.c.l.b16 %v3049
    %v3122 = vunpack.c.l.b16 %v3050
    %v3123 = vunpack.c.l.b16 %v3051
    %v3124 = vunpack.c.l.b16 %v3052
    %v3125 = vunpack.c.l.b16 %v3053
    %v3126 = vunpack.c.l.b16 %v3054
    %v3127 = vunpack.c.l.b16 %v3055
    %v3128 = vunpack.c.l.b16 %v3056
    %v3129 = vunpack.c.l.b16 %v3057
    %v3130 = vunpack.c.l.b16 %v3058
    %v3131 = vunpack.c.l.b16 %v3059
    %v3132 = vunpack.c.l.b16 %v3060
    %v3133 = vunpack.c.l.b16 %v3061
    %v3134 = vunpack.c.l.b16 %v3062
    %v3135 = vunpack.c.l.b16 %v3063
    %v3136 = vunpack.c.l.b16 %v3064
    %v3137 = vunpack.c.l.b16 %v3065
    %v3138 = vunpack.c.l.b16 %v3066
    %v3139 = vunpack.c.l.b16 %v3067
    %v3140 = vunpack.c.l.b16 %v3068
    %v3141 = vunpack.c.l.b16 %v3069
    %v3142 = vunpack.c.l.b16 %v3070
    %v3143 = vunpack.c.l.b16 %v3071
    %v3144 = vunpack.c.l.b16 %v3072
    %v3145 = vunpack.c.l.b16 %v3073
    %v3146 = vunpack.c.l.b16 %v3074
    %v3147 = vpack.c.b16 %v3116, %v3115
    %v3148 = vpack.c.b16 %v3118, %v3117
    %v3149 = vpack.c.b16 %v3120, %v3119
    %v3150 = vpack.c.b16 %v3122, %v3121
    %v3151 = vpack.c.b16 %v3124, %v3123
    %v3152 = vpack.c.b16 %v3126, %v3125
    %v3153 = vpack.c.b16 %v3128, %v3127
    %v3154 = vpack.c.b16 %v3130, %v3129
    %v3155 = vpack.c.b16 %v3132, %v3131
    %v3156 = vpack.c.b16 %v3134, %v3133
    %v3157 = vpack.c.b16 %v3136, %v3135
    %v3158 = vpack.c.b16 %v3138, %v3137
    %v3159 = vpack.c.b16 %v3140, %v3139
    %v3160 = vpack.c.b16 %v3142, %v3141
    %v3161 = vpack.c.b16 %v3144, %v3143
    %v3162 = vpack.c.b16 %v3146, %v3145
    %3179 = vmatprep.subr.bf16.mxu0 0
    %3180 = vmatpush1.bf16.msra.mxu0 %v3154
    %3181 = vmatprep.subr.bf16.mxu0 0
    %3182 = vmatpush1.bf16.msra.mxu0 %v3153
    %3183 = vmatprep.subr.bf16.mxu0 0
    %3184 = vmatpush1.bf16.msra.mxu0 %v3152
    %3185 = vmatprep.subr.bf16.mxu0 0
    %3186 = vmatpush1.bf16.msra.mxu0 %v3151
    %3187 = vmatprep.subr.bf16.mxu0 0
    %3188 = vmatpush1.bf16.msra.mxu0 %v3150
    %3189 = vmatprep.subr.bf16.mxu0 0
    %3190 = vmatpush1.bf16.msra.mxu0 %v3149
    %3191 = vmatprep.subr.bf16.mxu0 0
    %3192 = vmatpush1.bf16.msra.mxu0 %v3148
    %3193 = vmatprep.subr.bf16.mxu0 0
    %3194 = vmatpush1.bf16.msra.mxu0 %v3147
    %3195 = vmatprep.subr.bf16.mxu0 0
    %3196 = vmatpush2.bf16.msra.mxu0 %v3162
    %3197 = vmatprep.subr.bf16.mxu0 0
    %3198 = vmatpush2.bf16.msra.mxu0 %v3161
    %3199 = vmatprep.subr.bf16.mxu0 0
    %3200 = vmatpush2.bf16.msra.mxu0 %v3160
    %3201 = vmatprep.subr.bf16.mxu0 0
    %3202 = vmatpush2.bf16.msra.mxu0 %v3159
    %3203 = vmatprep.subr.bf16.mxu0 0
    %3204 = vmatpush2.bf16.msra.mxu0 %v3158
    %3205 = vmatprep.subr.bf16.mxu0 0
    %3206 = vmatpush2.bf16.msra.mxu0 %v3157
    %3207 = vmatprep.subr.bf16.mxu0 0
    %3208 = vmatpush2.bf16.msra.mxu0 %v3156
    %3209 = vmatprep.subr.bf16.mxu0 0
    %3210 = vmatpush2.bf16.msra.mxu0 %v3155
    %3211 = vmatprep.mubr.bf16.mxu0 %v3039
    %3212 = vmatmul.mubr.bf16.gmra.mxu0 %v3038
    %v3213 = vpop.f32.mrf.mxu0
    %v3214 = vadd.f32 %v3081, %v3213
    %v3215 = vpop.f32.mrf.mxu0
    %v3216 = vpop.f32.mrf.mxu0
    %v3217 = vadd.f32 %v3081, %v3216
    %v3218 = vpop.f32.mrf.mxu0
    %3219 = vmatprep.mubr.bf16.mxu0 %v3041
    %3220 = vmatmul.mubr.bf16.gmra.mxu0 %v3040
    %v3221 = vpop.f32.mrf.mxu0
    %v3222 = vadd.f32 %v3081, %v3221
    %v3223 = vpop.f32.mrf.mxu0
    %v3224 = vpop.f32.mrf.mxu0
    %v3225 = vadd.f32 %v3081, %v3224
    %v3226 = vpop.f32.mrf.mxu0
    %3227 = vdwg.mxu0
    %v3228 = vadd.f32 %v2797, %v3214
    %v3229 = vadd.f32 %v2798, %v3217
    %v3230 = vadd.f32 %v2799, %v3222
    %v3231 = vadd.f32 %v2800, %v3225
    %s3232 = scalar_lea.vmem %s14, 1
    %v3233 = vld [vmem:[%s3232] sm:$0x1]
    %s3234 = scalar_lea.vmem %s15, 1
    %v3235 = vld [vmem:[%s3234] sm:$0x1]
    %3236 = vadd.xlane.f32.xlu0 %v3228
    %v3237 = vpop.xlane.xlu0 %3236
    %3238 = vadd.xlane.f32.xlu0 %v3229
    %v3239 = vpop.xlane.xlu0 %3238
    %3240 = vadd.xlane.f32.xlu0 %v3230
    %v3241 = vpop.xlane.xlu0 %3240
    %3242 = vadd.xlane.f32.xlu0 %v3231
    %v3243 = vpop.xlane.xlu0 %3242
    %v3244 = vmul.f32 %v3237, %v117
    %v3245 = vmul.f32 %v3239, %v117
    %v3246 = vmul.f32 %v3241, %v117
    %v3247 = vmul.f32 %v3243, %v117
    %v3248 = vsub.f32 %v3228, %v3244
    %v3249 = vsub.f32 %v3229, %v3245
    %v3250 = vsub.f32 %v3230, %v3246
    %v3251 = vsub.f32 %v3231, %v3247
    %v3252 = vmul.f32 %v3248, %v3248
    %v3253 = vmul.f32 %v3249, %v3249
    %v3254 = vmul.f32 %v3250, %v3250
    %v3255 = vmul.f32 %v3251, %v3251
    %3256 = vadd.xlane.f32.xlu0 %v3252
    %v3257 = vpop.xlane.xlu0 %3256
    %3258 = vadd.xlane.f32.xlu0 %v3253
    %v3259 = vpop.xlane.xlu0 %3258
    %3260 = vadd.xlane.f32.xlu0 %v3254
    %v3261 = vpop.xlane.xlu0 %3260
    %3262 = vadd.xlane.f32.xlu0 %v3255
    %v3263 = vpop.xlane.xlu0 %3262
    %v3264 = vmul.f32 %v3257, %v117
    %v3265 = vmul.f32 %v3259, %v117
    %v3266 = vmul.f32 %v3261, %v117
    %v3267 = vmul.f32 %v3263, %v117
    %v3268 = vadd.f32 %v3264, 1e-05
    %v3269 = vadd.f32 %v3265, 1e-05
    %v3270 = vadd.f32 %v3266, 1e-05
    %v3271 = vadd.f32 %v3267, 1e-05
    %v3272 = vrsqrt.pop %v3268
    %v3273 = vrsqrt.pop %v3269
    %v3274 = vrsqrt.pop %v3270
    %v3275 = vrsqrt.pop %v3271
    %v3276 = vmul.f32 %v3248, %v3272
    %v3277 = vmul.f32 %v3249, %v3273
    %v3278 = vmul.f32 %v3250, %v3274
    %v3279 = vmul.f32 %v3251, %v3275
    %v3281 = vlaneseq
    %v3282 = vshrl.u32 %v3281, 7
    %v3283 = vsub.s32 0, %v3282
    %v3284 = vrot.slane %v3233, %v3283
    %v3286 = vmul.f32 %v3276, %v3284
    %v3287 = vmul.f32 %v3277, %v3284
    %v3288 = vmul.f32 %v3278, %v3284
    %v3289 = vmul.f32 %v3279, %v3284
    %v3291 = vlaneseq
    %v3292 = vshrl.u32 %v3291, 7
    %v3293 = vsub.s32 0, %v3292
    %v3294 = vrot.slane %v3235, %v3293
    %v3296 = vadd.f32 %v3286, %v3294
    %v3297 = vadd.f32 %v3287, %v3294
    %v3298 = vadd.f32 %v3288, %v3294
    %v3299 = vadd.f32 %v3289, %v3294
    %3300 = vst [vmem:[#allocation8] sm:$0xff] %v3296
    %3301 = vst [vmem:[#allocation8 + $0x8] sm:$0xff] %v3297
    %3302 = vst [vmem:[#allocation8 + $0x10] sm:$0xff] %v3298
    %3303 = vst [vmem:[#allocation8 + $0x18] sm:$0xff] %v3299
    %v3304 = vpack.c.bf16 %v3296, %v3296
    %v3305 = vpack.c.bf16 %v3298, %v3298
    %v3306 = vld [vmem:[%s16] sm:$0xf]
    %v3307 = vld [vmem:[%s16 + $0x4] sm:$0xf]
    %v3308 = vld [vmem:[%s16 + $0x8] sm:$0xf]
    %v3309 = vld [vmem:[%s16 + $0xc] sm:$0xf]
    %v3310 = vld [vmem:[%s16 + $0x10] sm:$0xf]
    %v3311 = vld [vmem:[%s16 + $0x14] sm:$0xf]
    %v3312 = vld [vmem:[%s16 + $0x18] sm:$0xf]
    %v3313 = vld [vmem:[%s16 + $0x1c] sm:$0xf]
    %v3314 = vld [vmem:[%s16 + $0x20] sm:$0xf]
    %v3315 = vld [vmem:[%s16 + $0x24] sm:$0xf]
    %v3316 = vld [vmem:[%s16 + $0x28] sm:$0xf]
    %v3317 = vld [vmem:[%s16 + $0x2c] sm:$0xf]
    %v3318 = vld [vmem:[%s16 + $0x30] sm:$0xf]
    %v3319 = vld [vmem:[%s16 + $0x34] sm:$0xf]
    %v3320 = vld [vmem:[%s16 + $0x38] sm:$0xf]
    %v3321 = vld [vmem:[%s16 + $0x3c] sm:$0xf]
    %v3322 = vld [vmem:[#allocation7] sm:$0x1]
    %v3324 = vlaneseq
    %v3325 = vshrl.u32 %v3324, 7
    %v3326 = vsub.s32 0, %v3325
    %v3327 = vrot.slane %v3322, %v3326
    %v3331 = vunpack.c.l.b16 %v3304
    %v3332 = vunpack.c.l.b16 %v3305
    %v3333 = vrot.slane %v3332, 7
    %vm3334 = vcmask 1041409
    %v3335 = vsel %vm3334, %v3333, %v3331
    %v3336 = vpack.c.b16 %v3335, %v3335
    %v3354 = vunpack.c.l.b16 %v3306
    %v3355 = vunpack.c.l.b16 %v3307
    %v3356 = vunpack.c.l.b16 %v3308
    %v3357 = vunpack.c.l.b16 %v3309
    %v3358 = vunpack.c.l.b16 %v3310
    %v3359 = vunpack.c.l.b16 %v3311
    %v3360 = vunpack.c.l.b16 %v3312
    %v3361 = vunpack.c.l.b16 %v3313
    %v3362 = vunpack.c.l.b16 %v3314
    %v3363 = vunpack.c.l.b16 %v3315
    %v3364 = vunpack.c.l.b16 %v3316
    %v3365 = vunpack.c.l.b16 %v3317
    %v3366 = vunpack.c.l.b16 %v3318
    %v3367 = vunpack.c.l.b16 %v3319
    %v3368 = vunpack.c.l.b16 %v3320
    %v3369 = vunpack.c.l.b16 %v3321
    %v3370 = vpack.c.b16 %v3355, %v3354
    %v3371 = vpack.c.b16 %v3357, %v3356
    %v3372 = vpack.c.b16 %v3359, %v3358
    %v3373 = vpack.c.b16 %v3361, %v3360
    %v3374 = vpack.c.b16 %v3363, %v3362
    %v3375 = vpack.c.b16 %v3365, %v3364
    %v3376 = vpack.c.b16 %v3367, %v3366
    %v3377 = vpack.c.b16 %v3369, %v3368
    %3386 = vmatprep.subr.bf16.mxu0 0
    %3387 = vmatpush1.bf16.msra.mxu0 %v3377
    %3388 = vmatprep.subr.bf16.mxu0 0
    %3389 = vmatpush1.bf16.msra.mxu0 %v3376
    %3390 = vmatprep.subr.bf16.mxu0 0
    %3391 = vmatpush1.bf16.msra.mxu0 %v3375
    %3392 = vmatprep.subr.bf16.mxu0 0
    %3393 = vmatpush1.bf16.msra.mxu0 %v3374
    %3394 = vmatprep.subr.bf16.mxu0 0
    %3395 = vmatpush1.bf16.msra.mxu0 %v3373
    %3396 = vmatprep.subr.bf16.mxu0 0
    %3397 = vmatpush1.bf16.msra.mxu0 %v3372
    %3398 = vmatprep.subr.bf16.mxu0 0
    %3399 = vmatpush1.bf16.msra.mxu0 %v3371
    %3400 = vmatprep.subr.bf16.mxu0 0
    %3401 = vmatpush1.bf16.msra.mxu0 %v3370
    %3402 = vmatprep.subr.bf16.mxu0 0
    %3403 = vmatpush2.bf16.msra.mxu0 0
    %3404 = vmatprep.subr.bf16.mxu0 0
    %3405 = vmatpush2.bf16.msra.mxu0 0
    %3406 = vmatprep.subr.bf16.mxu0 0
    %3407 = vmatpush2.bf16.msra.mxu0 0
    %3408 = vmatprep.subr.bf16.mxu0 0
    %3409 = vmatpush2.bf16.msra.mxu0 0
    %3410 = vmatprep.subr.bf16.mxu0 0
    %3411 = vmatpush2.bf16.msra.mxu0 0
    %3412 = vmatprep.subr.bf16.mxu0 0
    %3413 = vmatpush2.bf16.msra.mxu0 0
    %3414 = vmatprep.subr.bf16.mxu0 0
    %3415 = vmatpush2.bf16.msra.mxu0 0
    %3416 = vmatprep.subr.bf16.mxu0 0
    %3417 = vmatpush2.bf16.msra.mxu0 0
    %3418 = vmatprep.mubr.bf16.mxu0 0
    %3419 = vmatmul.mubr.bf16.gmra.mxu0 %v3336
    %v3420 = vpop.f32.mrf.mxu0
    %v3421 = vadd.f32 %v3327, %v3420
    %v3422 = vpop.f32.mrf.mxu0
    %v3423 = vpop.f32.mrf.mxu0
    %v3424 = vpop.f32.mrf.mxu0
    %3425 = vdwg.mxu0
    %v3426 = vtanh.pop %v3421
    %v3429 = vunpack.c.l.s4 1966171168
    %v3430 = vunpack.c.0.s8 %v3429
    %v3431 = vlaneseq
    %v3432 = vshrl.u32 %v3431, 7
    %v3433 = vsub.s32 %v3430, %v3432
    %v3434 = vrot.slane %v3426, %v3433
    %v3435 = vcombine.high %v3434, %v3434
    %v3437 = vunpack.c.l.s4 1966171168
    %v3438 = vunpack.c.0.s8 %v3437
    %v3439 = vlaneseq
    %v3440 = vshrl.u32 %v3439, 7
    %v3441 = vsub.s32 %v3438, %v3440
    %v3442 = vrot.slane %v3434, %v3441
    %v3444 = vunpack.c.l.s4 1966171168
    %v3445 = vunpack.c.0.s8 %v3444
    %v3446 = vlaneseq
    %v3447 = vshrl.u32 %v3446, 7
    %v3448 = vsub.s32 %v3445, %v3447
    %v3449 = vrot.slane %v3435, %v3448
    %3452 = vst [vmem:[#allocation9] sm:$0x1] %v3442
    %3453 = vst [vmem:[#allocation9 + $0x1] sm:$0x1] %v3449
    // Predicated region
    $region86: #{_encode.1} parent=1 // pred_check
      _
    $region87: #{_encode.1} parent=1 // pred_check_branch
      %3455 = sbr.rel (0) target = $region89
    $region88: #{_encode.1} parent=1 // pred_region
      %s3457 = ssub.s32 512, 512
      %3458 = vsyncadd [#allocation4], %s3457
      %s3459 = sshll.u32 [#allocation8], 4
      %s3460 = int_to_ptr.vmem [resolvable:$true] %s3459
      %3465 = dma.vmem_to_hbm [thread:$0]  %s3460, 512, %s18, [#allocation4], 128, 128, 8
    $region89: #{_encode.1} parent=1 // pred_fallthru
      _
    // Predicated region
    $region90: #{_encode.1} parent=1 // pred_check
      _
    $region91: #{_encode.1} parent=1 // pred_check_branch
      %3467 = sbr.rel (0) target = $region93
    $region92: #{_encode.1} parent=1 // pred_region
      %s3469 = ssub.s32 32, 32
      %3470 = vsyncadd [#allocation10], %s3469
      %s3471 = sshll.u32 [#allocation9], 4
      %s3472 = int_to_ptr.vmem [resolvable:$true] %s3471
      %3477 = dma.vmem_to_hbm [thread:$0]  %s3472, 32, %s19, [#allocation10], 16, 16, 1
    $region93: #{_encode.1} parent=1 // pred_fallthru
      _
    // Predicated region
    $region94: #{_encode.1} parent=1 // pred_check
      _
    $region95: #{_encode.1} parent=1 // pred_check_branch
      %3479 = sbr.rel (0) target = $region97
    $region96: #{_encode.1} parent=1 // pred_region
      %3480 = dma.done [#allocation4], 512
    $region97: #{_encode.1} parent=1 // pred_fallthru
      _
    // Predicated region
    $region98: #{_encode.1} parent=1 // pred_check
      _
    $region99: #{_encode.1} parent=1 // pred_check_branch
      %3482 = sbr.rel (0) target = $region101
    $region100: #{_encode.1} parent=1 // pred_region
      %3483 = dma.done [#allocation10], 32
    $region101: #{_encode.1} parent=1 // pred_fallthru
      _
    %3484 = vsyncpa [#allocation3], 1
    %3485 = vsyncpa [#allocation6], 1
    %3486 = vsyncpa [#allocation4], 1
    %3487 = vsyncpa [#allocation10], 1

</llo_original>
